<compile_context>
chip_gen: v7x
topology: tpu7x:2x2x1
jax: 0.10.0
libtpu: 0.0.40
codegen_flags: <defaults>
</compile_context>

<pallas_src>
import functools
import math

import numpy as np
import jax
import jax.numpy as jnp
from jax.experimental import pallas as pl
from jax.experimental.pallas import tpu as pltpu


_GELU_C = 0.7978845608028654          # sqrt(2/pi)
# TODO(synk): size tiles / limit per-generation via pltpu.get_tpu_info (v7x: 64 MiB VMEM).
_VMEM_LIMIT = 48 * 1024 * 1024


def _gelu(x):
    # tanh-approx GELU (== jax.nn.gelu(approximate=True)); used in-kernel and in the
    # pure-JAX reference so the comparison is apples-to-apples.
    return 0.5 * x * (1.0 + jnp.tanh(_GELU_C * (x + 0.044715 * x * x * x)))


def _round_up(x, m):
    return (x + m - 1) // m * m


# ----------------------------------------------------------------------------
# Pallas kernels
# ----------------------------------------------------------------------------
def _coord_mlp_kernel(pos_ref, w1, b1, w2, b2, w3, b3, out_ref):
    """coord_embedding: Linear(3,H) -> GELU -> Linear(H,H) -> GELU -> Linear(H,E).
    pos is zero-padded to 8 lanes and w1 to [8,H] so the first layer is one MXU pass."""
    h = _gelu(jnp.dot(pos_ref[...], w1[...], preferred_element_type=jnp.float32) + b1[...])
    h = _gelu(jnp.dot(h, w2[...], preferred_element_type=jnp.float32) + b2[...])
    out_ref[...] = jnp.dot(h, w3[...], preferred_element_type=jnp.float32) + b3[...]


def _pointconv_kernel(tgt_ref, xj_ref, rel_ref, wl1x, wl1r, bl1, wl2, bl2,
                      wg1, bg1, wg2, bg2, out_ref, acc_ref, *, out_gelu):
    """One PointNetConv('add') layer, tiled (node tiles x edge tiles):
         msg  = local_nn([x_j, pos_j - pos_i])   (split weights -> 2+1 bf16 MXU dots)
         acc += onehot(tgt) @ msg                (scatter-add; one-hot bf16, built in vregs)
         out  = global_nn(acc)  [+ GELU]         (only at the last edge tile)
    Padded edges carry tgt = -1 so they match no node row."""
    k = pl.program_id(1)
    n_tile = out_ref.shape[0]
    e_tile = xj_ref.shape[0]

    @pl.when(k == 0)
    def _():
        acc_ref[...] = jnp.zeros_like(acc_ref)

    # local_nn: bf16 MXU dots, f32 accumulation; GELU/bias in f32.
    h = (jnp.dot(xj_ref[...], wl1x[...], preferred_element_type=jnp.float32)
         + jnp.dot(rel_ref[...], wl1r[...], preferred_element_type=jnp.float32)
         + bl1[...])
    h = _gelu(h)
    msg = jnp.dot(h.astype(jnp.bfloat16), wl2[...],
                  preferred_element_type=jnp.float32) + bl2[...]

    # scatter-add over target nodes: one-hot built per tile (never hits HBM), bf16 MXU.
    row_ids = (jax.lax.broadcasted_iota(jnp.int32, (n_tile, e_tile), 0)
               + pl.program_id(0) * n_tile)
    onehot = (row_ids == tgt_ref[...]).astype(jnp.bfloat16)          # [N_TILE, E_TILE]
    acc_ref[...] += jnp.dot(onehot, msg.astype(jnp.bfloat16),
                            preferred_element_type=jnp.float32)

    @pl.when(k == pl.num_programs(1) - 1)
    def _():
        g = _gelu(jnp.dot(acc_ref[...].astype(jnp.bfloat16), wg1[...],
                          preferred_element_type=jnp.float32) + bg1[...])
        out = jnp.dot(g.astype(jnp.bfloat16), wg2[...],
                      preferred_element_type=jnp.float32) + bg2[...]
        if out_gelu:
            out = _gelu(out)
        out_ref[...] = out


def _readout_fc_kernel(node_ref, batch_ref, w1, b1, w2, b2, w3, b3, out_ref):
    """Global add-pool over `batch` (one-hot in-kernel) + fc head + sigmoid.
    Final weight/bias are zero-padded to 128 columns -> lane-dense output store."""
    n_graphs = out_ref.shape[0]
    n_nodes = node_ref.shape[0]
    onehot = (jax.lax.broadcasted_iota(jnp.int32, (n_graphs, n_nodes), 0)
              == batch_ref[...]).astype(jnp.float32)
    pooled = jnp.dot(onehot, node_ref[...], preferred_element_type=jnp.float32)

    h = _gelu(jnp.dot(pooled, w1[...], preferred_element_type=jnp.float32) + b1[...])
    h = _gelu(jnp.dot(h, w2[...], preferred_element_type=jnp.float32) + b2[...])
    y = jnp.dot(h, w3[...], preferred_element_type=jnp.float32) + b3[...]   # [G, 128]
    # sigmoid with EUP approx reciprocal (exp already on EUP; keeps the VALU free)
    out_ref[...] = pl.reciprocal(1.0 + jnp.exp(-y), approx=True)


# ----------------------------------------------------------------------------
# pallas_call wrappers
# ----------------------------------------------------------------------------
def _full_spec(a, n_grid_args):
    nd = a.ndim
    return pl.BlockSpec(tuple(a.shape), lambda *g, _nd=nd: (0,) * _nd)


def _coord_mlp(pos8, w1p, b1, w2, b2, w3, b3, n_tile):
    n_pad = pos8.shape[0]
    e_sz = w3.shape[1]
    consts = [w1p, b1, w2, b2, w3, b3]
    return pl.pallas_call(
        _coord_mlp_kernel,
        out_shape=jax.ShapeDtypeStruct((n_pad, e_sz), jnp.float32),
        grid=(n_pad // n_tile,),
        in_specs=[pl.BlockSpec((n_tile, 8), lambda i: (i, 0))]
                 + [_full_spec(a, 1) for a in consts],
        out_specs=pl.BlockSpec((n_tile, e_sz), lambda i: (i, 0)),
        compiler_params=pltpu.CompilerParams(
            dimension_semantics=("parallel",),
            vmem_limit_bytes=_VMEM_LIMIT),
    )(pos8, *consts)


def _pointconv(tgt_row, xj, rel8, weights, n_pad, hidden, n_tile, e_tile, out_gelu):
    e_pad, f_in = xj.shape
    kern = functools.partial(_pointconv_kernel, out_gelu=out_gelu)
    return pl.pallas_call(
        kern,
        out_shape=jax.ShapeDtypeStruct((n_pad, hidden), jnp.float32),
        grid=(n_pad // n_tile, e_pad // e_tile),
        in_specs=[pl.BlockSpec((1, e_tile), lambda i, k: (0, k)),        # tgt indices
                  pl.BlockSpec((e_tile, f_in), lambda i, k: (k, 0)),     # x_j  (bf16 stream)
                  pl.BlockSpec((e_tile, 8), lambda i, k: (k, 0))]        # rel  (bf16 stream)
                 + [_full_spec(a, 2) for a in weights],
        out_specs=pl.BlockSpec((n_tile, hidden), lambda i, k: (i, 0)),
        scratch_shapes=[pltpu.VMEM((n_tile, hidden), jnp.float32)],
        compiler_params=pltpu.CompilerParams(
            dimension_semantics=("parallel", "arbitrary"),
            vmem_limit_bytes=_VMEM_LIMIT),
    )(tgt_row, xj, rel8, *weights)


def _readout(node, batch_row, w1, b1, w2, b2, w3p, b3p, g_pad):
    ins = [node, batch_row, w1, b1, w2, b2, w3p, b3p]
    return pl.pallas_call(
        _readout_fc_kernel,
        out_shape=jax.ShapeDtypeStruct((g_pad, 128), jnp.float32),
        grid=(1,),
        in_specs=[_full_spec(a, 1) for a in ins],
        out_specs=pl.BlockSpec((g_pad, 128), lambda i: (0, 0)),
        compiler_params=pltpu.CompilerParams(
            dimension_semantics=("arbitrary",),
            vmem_limit_bytes=_VMEM_LIMIT),
    )(*ins)


# ----------------------------------------------------------------------------
# Forward pass (jit'ed; all Linear / scatter / activation work inside Pallas)
# ----------------------------------------------------------------------------
@functools.partial(jax.jit, static_argnames=("num_graphs", "n_tile", "e_tile"))
def pointgcn_forward(params, z, pos, batch, src, tgt, *, num_graphs,
                     n_tile=128, e_tile=512):
    assert n_tile % 8 == 0 and e_tile % 128 == 0
    n_nodes = pos.shape[0]
    n_edges = src.shape[0]
    hidden = params["fc"][0]["w"].shape[0]

    n_pad = _round_up(n_nodes, n_tile)
    e_pad = _round_up(n_edges, e_tile)
    g_pad = _round_up(num_graphs, 8)

    # node features: Embedding gather (XLA glue) || coord MLP (fused Pallas kernel)
    emb = params["embedding"][z]                                      # [N, E_SZ]
    cp = params["coord"]
    pos8 = jnp.pad(pos, ((0, n_pad - n_nodes), (0, 5)))               # [N_pad, 8]
    w1p = jnp.pad(cp[0]["w"], ((0, 5), (0, 0)))                       # [8, H]
    coord = _coord_mlp(pos8, w1p, cp[0]["b"], cp[1]["w"], cp[1]["b"],
                       cp[2]["w"], cp[2]["b"], n_tile)[:n_nodes]
    node = jnp.concatenate([emb, coord], axis=-1)                     # [N, 2*E_SZ]

    # Edge stream: padded / bf16-cast ONCE, reused by every conv layer.
    src_p = jnp.pad(src, (0, e_pad - n_edges))                              # pads with node 0
    tgt_row = jnp.pad(tgt, (0, e_pad - n_edges), constant_values=-1)        # -1 matches no node
    tgt_row = tgt_row.reshape(1, -1).astype(jnp.int32)
    rel = pos[src] - pos[tgt]                                               # pos_j - pos_i
    rel8 = jnp.pad(rel, ((0, e_pad - n_edges), (0, 5))).astype(jnp.bfloat16)

    num_layers = len(params["gcns"])
    for li, gp in enumerate(params["gcns"]):
        f_in = node.shape[1]
        # TODO(synk): neighbor gather node[src] stays in XLA; at scale it could move
        # in-kernel via PrefetchScalarGridSpec + pl.Element row gathers.
        xj = node[src_p].astype(jnp.bfloat16)                         # [E_pad, F] bf16 stream
        w_l1 = gp["l1"]["w"]
        weights = (
            w_l1[:f_in].astype(jnp.bfloat16),                                   # wl1_x
            jnp.pad(w_l1[f_in:f_in + 3], ((0, 5), (0, 0))).astype(jnp.bfloat16),  # wl1_rel
            gp["l1"]["b"],
            gp["l2"]["w"].astype(jnp.bfloat16), gp["l2"]["b"],
            gp["g1"]["w"].astype(jnp.bfloat16), gp["g1"]["b"],
            gp["g2"]["w"].astype(jnp.bfloat16), gp["g2"]["b"],
        )
        node = _pointconv(tgt_row, xj, rel8, weights, n_pad, hidden,
                          n_tile, e_tile, out_gelu=(li != num_layers - 1))

    # readout: add-pool over batch + fc head + sigmoid (lane-dense [G_pad,128] output)
    fc = params["fc"]
    batch_row = jnp.pad(batch, (0, n_pad - n_nodes), constant_values=-1)
    batch_row = batch_row.reshape(1, -1).astype(jnp.int32)
    w3p = jnp.pad(fc[2]["w"], ((0, 0), (0, 127)))
    b3p = jnp.pad(fc[2]["b"], ((0, 0), (0, 127)))
    out = _readout(node, batch_row, fc[0]["w"], fc[0]["b"], fc[1]["w"], fc[1]["b"],
                   w3p, b3p, g_pad)
    return out[:num_graphs, 0]                                        # squeeze(-1)


# ----------------------------------------------------------------------------
# Pure-JAX f32 reference (same math, XLA ops) for correctness checking
# ----------------------------------------------------------------------------
def reference_forward(params, z, pos, batch, src, tgt, num_graphs):
    def lin(x, p):
        return x @ p["w"] + p["b"]

    n_nodes = pos.shape[0]
    emb = params["embedding"][z]
    cp = params["coord"]
    h = _gelu(lin(pos, cp[0]))
    h = _gelu(lin(h, cp[1]))
    coord = lin(h, cp[2])
    node = jnp.concatenate([emb, coord], axis=-1)

    num_layers = len(params["gcns"])
    for li, gp in enumerate(params["gcns"]):
        rel = pos[src] - pos[tgt]
        edge_x = jnp.concatenate([node[src], rel], axis=-1)
        m = _gelu(lin(edge_x, gp["l1"]))
        m = lin(m, gp["l2"])
        agg = jax.ops.segment_sum(m, tgt, num_segments=n_nodes)
        g = _gelu(lin(agg, gp["g1"]))
        node = lin(g, gp["g2"])
        if li != num_layers - 1:
            node = _gelu(node)

    pooled = jax.ops.segment_sum(node, batch, num_segments=num_graphs)
    fc = params["fc"]
    h = _gelu(lin(pooled, fc[0]))
    h = _gelu(lin(h, fc[1]))
    return jax.nn.sigmoid(lin(h, fc[2]))[:, 0]


# ----------------------------------------------------------------------------
# Graph construction (host-side) and parameters
# ----------------------------------------------------------------------------
# TODO(synk): radius_graph has a data-dependent edge count, so it is built host-side;
# the jitted forward specializes on the resulting (padded) static edge count.
# TODO(synk): PyG radius_graph caps neighbors at max_num_neighbors=32; not enforced here.
def build_radius_graph(pos_np, batch_np, cutoff):
    n = pos_np.shape[0]
    diff = pos_np[:, None, :] - pos_np[None, :, :]
    dist2 = (diff ** 2).sum(-1)
    adj = (dist2 < cutoff ** 2) & (batch_np[:, None] == batch_np[None, :])
    np.fill_diagonal(adj, False)
    tgt, src = np.nonzero(adj)                      # symmetric: both directions present
    loops = np.arange(n)                            # PointNetConv default add_self_loops=True
    src = np.concatenate([src, loops]).astype(np.int32)
    tgt = np.concatenate([tgt, loops]).astype(np.int32)
    return src, tgt


def _linear_init(key, fan_in, fan_out):
    kw, kb = jax.random.split(key)
    bound = 1.0 / math.sqrt(fan_in)
    return {"w": jax.random.uniform(kw, (fan_in, fan_out), jnp.float32, -bound, bound),
            "b": jax.random.uniform(kb, (1, fan_out), jnp.float32, -bound, bound)}


def init_params(key, embed_size, hidden_size, num_layers):
    keys = iter(jax.random.split(key, 64))
    params = {
        "embedding": jax.random.normal(next(keys), (100, embed_size), jnp.float32),
        "coord": [_linear_init(next(keys), 3, hidden_size),
                  _linear_init(next(keys), hidden_size, hidden_size),
                  _linear_init(next(keys), hidden_size, embed_size)],
        "gcns": [],
        "fc": [_linear_init(next(keys), hidden_size, 2 * hidden_size),
               _linear_init(next(keys), 2 * hidden_size, hidden_size),
               _linear_init(next(keys), hidden_size, 1)],
    }
    for i in range(num_layers):
        in_dim = (2 * embed_size if i == 0 else hidden_size) + 3
        params["gcns"].append({
            "l1": _linear_init(next(keys), in_dim, 2 * hidden_size),
            "l2": _linear_init(next(keys), 2 * hidden_size, hidden_size),
            "g1": _linear_init(next(keys), hidden_size, 2 * hidden_size),
            "g2": _linear_init(next(keys), 2 * hidden_size, hidden_size),
        })
    return params


# ----------------------------------------------------------------------------
if __name__ == "__main__":
    embed_size, hidden_size, num_layers, cutoff = 16, 32, 3, 5.0
    atoms_per_mol, num_mols = 16, 4
    n_atoms = atoms_per_mol * num_mols

    key = jax.random.PRNGKey(0)
    k_pos, k_z, k_par = jax.random.split(key, 3)
    pos = jax.random.normal(k_pos, (n_atoms, 3), jnp.float32)
    z = jax.random.randint(k_z, (n_atoms,), 0, 100, dtype=jnp.int32)
    batch = jnp.asarray(np.repeat(np.arange(num_mols), atoms_per_mol), jnp.int32)

    src_np, tgt_np = build_radius_graph(np.asarray(pos), np.asarray(batch), cutoff)
    src = jnp.asarray(src_np)
    tgt = jnp.asarray(tgt_np)

    params = init_params(k_par, embed_size, hidden_size, num_layers)

    # small tiles so the demo exercises the multi-tile node ("parallel") and
    # edge-accumulation ("arbitrary") paths; at scale use e_tile 512-2048, n_tile 128-256.
    out = pointgcn_forward(params, z, pos, batch, src, tgt,
                           num_graphs=num_mols, n_tile=32, e_tile=256)
    out = jax.block_until_ready(out)
    got = np.asarray(out)

    ref = np.asarray(jax.block_until_ready(
        reference_forward(params, z, pos, batch, src, tgt, num_mols)))

    assert got.shape == (num_mols,)
    assert np.all(np.isfinite(got))
    # sigmoid range with a little slack for the EUP approx-reciprocal
    assert np.all((got > -1e-3) & (got < 1.0 + 1e-3))
    # tolerance covers bf16 MXU operands (f32 accumulate) + approx reciprocal in the kernel
    np.testing.assert_allclose(got, ref, atol=2e-2, rtol=2e-2)
    print("KERNEL_OK")
</pallas_src>

<mosaic_0001>
module attributes {stable_mosaic.version = 11 : i64} {
  func.func @_coord_mlp_kernel(%arg0: i32, %arg1: memref<32x8xf32, #tpu.memory_space<vmem>>, %arg2: memref<8x32xf32, #tpu.memory_space<vmem>>, %arg3: memref<1x32xf32, #tpu.memory_space<vmem>>, %arg4: memref<32x32xf32, #tpu.memory_space<vmem>>, %arg5: memref<1x32xf32, #tpu.memory_space<vmem>>, %arg6: memref<32x16xf32, #tpu.memory_space<vmem>>, %arg7: memref<1x16xf32, #tpu.memory_space<vmem>>, %arg8: memref<32x16xf32, #tpu.memory_space<vmem>>) attributes {dimension_semantics = [#tpu.dimension_semantics<parallel>], iteration_bounds = array<i64: 2>, scalar_prefetch = 0 : i64, scratch_operands = 0 : i64, tpu.core_type = #tpu.core_type<tc>, window_params = [{transform_indices = @transform_0, window_bounds = array<i64: 32, 8>}, {pipeline_mode = #tpu.pipeline_mode<synchronous>, transform_indices = @transform_1, window_bounds = array<i64: 8, 32>}, {pipeline_mode = #tpu.pipeline_mode<synchronous>, transform_indices = @transform_2, window_bounds = array<i64: 1, 32>}, {pipeline_mode = #tpu.pipeline_mode<synchronous>, transform_indices = @transform_3, window_bounds = array<i64: 32, 32>}, {pipeline_mode = #tpu.pipeline_mode<synchronous>, transform_indices = @transform_4, window_bounds = array<i64: 1, 32>}, {pipeline_mode = #tpu.pipeline_mode<synchronous>, transform_indices = @transform_5, window_bounds = array<i64: 32, 16>}, {pipeline_mode = #tpu.pipeline_mode<synchronous>, transform_indices = @transform_6, window_bounds = array<i64: 1, 16>}, {transform_indices = @transform_7, window_bounds = array<i64: 32, 16>}]} {
    %c0 = arith.constant 0 : index
    %c0_0 = arith.constant 0 : index
    %0 = vector.load %arg1[%c0, %c0_0] : memref<32x8xf32, #tpu.memory_space<vmem>>, vector<32x8xf32>
    %c0_1 = arith.constant 0 : index
    %c0_2 = arith.constant 0 : index
    %1 = vector.load %arg2[%c0_1, %c0_2] : memref<8x32xf32, #tpu.memory_space<vmem>>, vector<8x32xf32>
    %cst = arith.constant dense<0.000000e+00> : vector<32x32xf32>
    %2 = tpu.matmul %0, %1, %cst {dimension_numbers = #tpu.dot_dimension_numbers<[1], [0], [0], [1], [0, 0, 1, 1], [], []>} : vector<32x8xf32>, vector<8x32xf32>, vector<32x32xf32> -> vector<32x32xf32>
    %c0_3 = arith.constant 0 : index
    %c0_4 = arith.constant 0 : index
    %3 = vector.load %arg3[%c0_3, %c0_4] : memref<1x32xf32, #tpu.memory_space<vmem>>, vector<1x32xf32>
    %4 = vector.broadcast %3 : vector<1x32xf32> to vector<32x32xf32>
    %5 = arith.addf %2, %4 : vector<32x32xf32>
    %cst_5 = arith.constant 5.000000e-01 : f32
    %6 = vector.broadcast %cst_5 : f32 to vector<32x32xf32>
    %7 = arith.mulf %6, %5 : vector<32x32xf32>
    %cst_6 = arith.constant 4.471500e-02 : f32
    %8 = vector.broadcast %cst_6 : f32 to vector<32x32xf32>
    %9 = arith.mulf %8, %5 : vector<32x32xf32>
    %10 = arith.mulf %9, %5 : vector<32x32xf32>
    %11 = arith.mulf %10, %5 : vector<32x32xf32>
    %12 = arith.addf %5, %11 : vector<32x32xf32>
    %cst_7 = arith.constant 0.797884583 : f32
    %13 = vector.broadcast %cst_7 : f32 to vector<32x32xf32>
    %14 = arith.mulf %13, %12 : vector<32x32xf32>
    %15 = math.tanh %14 : vector<32x32xf32>
    %cst_8 = arith.constant 1.000000e+00 : f32
    %16 = vector.broadcast %cst_8 : f32 to vector<32x32xf32>
    %17 = arith.addf %16, %15 : vector<32x32xf32>
    %18 = arith.mulf %7, %17 : vector<32x32xf32>
    %c0_9 = arith.constant 0 : index
    %c0_10 = arith.constant 0 : index
    %19 = vector.load %arg4[%c0_9, %c0_10] : memref<32x32xf32, #tpu.memory_space<vmem>>, vector<32x32xf32>
    %cst_11 = arith.constant dense<0.000000e+00> : vector<32x32xf32>
    %20 = tpu.matmul %18, %19, %cst_11 {dimension_numbers = #tpu.dot_dimension_numbers<[1], [0], [0], [1], [0, 0, 1, 1], [], []>} : vector<32x32xf32>, vector<32x32xf32>, vector<32x32xf32> -> vector<32x32xf32>
    %c0_12 = arith.constant 0 : index
    %c0_13 = arith.constant 0 : index
    %21 = vector.load %arg5[%c0_12, %c0_13] : memref<1x32xf32, #tpu.memory_space<vmem>>, vector<1x32xf32>
    %22 = vector.broadcast %21 : vector<1x32xf32> to vector<32x32xf32>
    %23 = arith.addf %20, %22 : vector<32x32xf32>
    %cst_14 = arith.constant 5.000000e-01 : f32
    %24 = vector.broadcast %cst_14 : f32 to vector<32x32xf32>
    %25 = arith.mulf %24, %23 : vector<32x32xf32>
    %cst_15 = arith.constant 4.471500e-02 : f32
    %26 = vector.broadcast %cst_15 : f32 to vector<32x32xf32>
    %27 = arith.mulf %26, %23 : vector<32x32xf32>
    %28 = arith.mulf %27, %23 : vector<32x32xf32>
    %29 = arith.mulf %28, %23 : vector<32x32xf32>
    %30 = arith.addf %23, %29 : vector<32x32xf32>
    %cst_16 = arith.constant 0.797884583 : f32
    %31 = vector.broadcast %cst_16 : f32 to vector<32x32xf32>
    %32 = arith.mulf %31, %30 : vector<32x32xf32>
    %33 = math.tanh %32 : vector<32x32xf32>
    %cst_17 = arith.constant 1.000000e+00 : f32
    %34 = vector.broadcast %cst_17 : f32 to vector<32x32xf32>
    %35 = arith.addf %34, %33 : vector<32x32xf32>
    %36 = arith.mulf %25, %35 : vector<32x32xf32>
    %c0_18 = arith.constant 0 : index
    %c0_19 = arith.constant 0 : index
    %37 = vector.load %arg6[%c0_18, %c0_19] : memref<32x16xf32, #tpu.memory_space<vmem>>, vector<32x16xf32>
    %cst_20 = arith.constant dense<0.000000e+00> : vector<32x16xf32>
    %38 = tpu.matmul %36, %37, %cst_20 {dimension_numbers = #tpu.dot_dimension_numbers<[1], [0], [0], [1], [0, 0, 1, 1], [], []>} : vector<32x32xf32>, vector<32x16xf32>, vector<32x16xf32> -> vector<32x16xf32>
    %c0_21 = arith.constant 0 : index
    %c0_22 = arith.constant 0 : index
    %39 = vector.load %arg7[%c0_21, %c0_22] : memref<1x16xf32, #tpu.memory_space<vmem>>, vector<1x16xf32>
    %40 = vector.broadcast %39 : vector<1x16xf32> to vector<32x16xf32>
    %41 = arith.addf %38, %40 : vector<32x16xf32>
    %c0_23 = arith.constant 0 : index
    %c0_24 = arith.constant 0 : index
    %42 = vector.load %arg8[%c0_23, %c0_24] : memref<32x16xf32, #tpu.memory_space<vmem>>, vector<32x16xf32>
    tpu.vector_store %arg8[%c0_23, %c0_24], %41 {strides = array<i32>} : memref<32x16xf32, #tpu.memory_space<vmem>>, vector<32x16xf32>,
    return
  }
  func.func @transform_0(%arg0: i32) -> (i32, i32) {
    %c0_i32 = arith.constant 0 : i32
    %c0_i32_0 = arith.constant 0 : i32
    return %arg0, %c0_i32 : i32, i32
  }
  func.func @transform_1(%arg0: i32) -> (i32, i32) {
    %c0_i32 = arith.constant 0 : i32
    %c0_i32_0 = arith.constant 0 : i32
    %c0_i32_1 = arith.constant 0 : i32
    return %c0_i32, %c0_i32_0 : i32, i32
  }
  func.func @transform_2(%arg0: i32) -> (i32, i32) {
    %c0_i32 = arith.constant 0 : i32
    %c0_i32_0 = arith.constant 0 : i32
    %c0_i32_1 = arith.constant 0 : i32
    return %c0_i32, %c0_i32_0 : i32, i32
  }
  func.func @transform_3(%arg0: i32) -> (i32, i32) {
    %c0_i32 = arith.constant 0 : i32
    %c0_i32_0 = arith.constant 0 : i32
    %c0_i32_1 = arith.constant 0 : i32
    return %c0_i32, %c0_i32_0 : i32, i32
  }
  func.func @transform_4(%arg0: i32) -> (i32, i32) {
    %c0_i32 = arith.constant 0 : i32
    %c0_i32_0 = arith.constant 0 : i32
    %c0_i32_1 = arith.constant 0 : i32
    return %c0_i32, %c0_i32_0 : i32, i32
  }
  func.func @transform_5(%arg0: i32) -> (i32, i32) {
    %c0_i32 = arith.constant 0 : i32
    %c0_i32_0 = arith.constant 0 : i32
    %c0_i32_1 = arith.constant 0 : i32
    return %c0_i32, %c0_i32_0 : i32, i32
  }
  func.func @transform_6(%arg0: i32) -> (i32, i32) {
    %c0_i32 = arith.constant 0 : i32
    %c0_i32_0 = arith.constant 0 : i32
    %c0_i32_1 = arith.constant 0 : i32
    return %c0_i32, %c0_i32_0 : i32, i32
  }
  func.func @transform_7(%arg0: i32) -> (i32, i32) {
    %c0_i32 = arith.constant 0 : i32
    %c0_i32_0 = arith.constant 0 : i32
    return %arg0, %c0_i32 : i32, i32
  }
}

module attributes {stable_mosaic.version = 11 : i64} {
  func.func @_pointconv_kernel(%arg0: i32, %arg1: i32, %arg2: memref<1x256xi32, #tpu.memory_space<vmem>>, %arg3: memref<256x32xbf16, #tpu.memory_space<vmem>>, %arg4: memref<256x8xbf16, #tpu.memory_space<vmem>>, %arg5: memref<32x64xbf16, #tpu.memory_space<vmem>>, %arg6: memref<8x64xbf16, #tpu.memory_space<vmem>>, %arg7: memref<1x64xf32, #tpu.memory_space<vmem>>, %arg8: memref<64x32xbf16, #tpu.memory_space<vmem>>, %arg9: memref<1x32xf32, #tpu.memory_space<vmem>>, %arg10: memref<32x64xbf16, #tpu.memory_space<vmem>>, %arg11: memref<1x64xf32, #tpu.memory_space<vmem>>, %arg12: memref<64x32xbf16, #tpu.memory_space<vmem>>, %arg13: memref<1x32xf32, #tpu.memory_space<vmem>>, %arg14: memref<32x32xf32, #tpu.memory_space<vmem>>, %arg15: memref<32x32xf32, #tpu.memory_space<vmem>>) attributes {dimension_semantics = [#tpu.dimension_semantics<parallel>, #tpu.dimension_semantics<arbitrary>], iteration_bounds = array<i64: 2, 4>, scalar_prefetch = 0 : i64, scratch_operands = 1 : i64, tpu.core_type = #tpu.core_type<tc>, window_params = [{transform_indices = @transform_0, window_bounds = array<i64: 1, 256>}, {transform_indices = @transform_1, window_bounds = array<i64: 256, 32>}, {transform_indices = @transform_2, window_bounds = array<i64: 256, 8>}, {pipeline_mode = #tpu.pipeline_mode<synchronous>, transform_indices = @transform_3, window_bounds = array<i64: 32, 64>}, {pipeline_mode = #tpu.pipeline_mode<synchronous>, transform_indices = @transform_4, window_bounds = array<i64: 8, 64>}, {pipeline_mode = #tpu.pipeline_mode<synchronous>, transform_indices = @transform_5, window_bounds = array<i64: 1, 64>}, {pipeline_mode = #tpu.pipeline_mode<synchronous>, transform_indices = @transform_6, window_bounds = array<i64: 64, 32>}, {pipeline_mode = #tpu.pipeline_mode<synchronous>, transform_indices = @transform_7, window_bounds = array<i64: 1, 32>}, {pipeline_mode = #tpu.pipeline_mode<synchronous>, transform_indices = @transform_8, window_bounds = array<i64: 32, 64>}, {pipeline_mode = #tpu.pipeline_mode<synchronous>, transform_indices = @transform_9, window_bounds = array<i64: 1, 64>}, {pipeline_mode = #tpu.pipeline_mode<synchronous>, transform_indices = @transform_10, window_bounds = array<i64: 64, 32>}, {pipeline_mode = #tpu.pipeline_mode<synchronous>, transform_indices = @transform_11, window_bounds = array<i64: 1, 32>}, {transform_indices = @transform_12, window_bounds = array<i64: 32, 32>}]} {
    %c0_i32 = arith.constant 0 : i32
    %0 = arith.cmpi eq, %arg1, %c0_i32 : i32
    %1 = arith.extui %0 : i1 to i32
    %c0_i32_0 = arith.constant 0 : i32
    %2 = arith.cmpi ne, %1, %c0_i32_0 : i32
    scf.if %2 {
      %cst_28 = arith.constant 0.000000e+00 : f32
      %50 = vector.broadcast %cst_28 : f32 to vector<32x32xf32>
      %c0_29 = arith.constant 0 : index
      %c0_30 = arith.constant 0 : index
      %51 = vector.load %arg15[%c0_29, %c0_30] : memref<32x32xf32, #tpu.memory_space<vmem>>, vector<32x32xf32>
      tpu.vector_store %arg15[%c0_29, %c0_30], %50 {strides = array<i32>} : memref<32x32xf32, #tpu.memory_space<vmem>>, vector<32x32xf32>,
    } else {
    }
    %c0 = arith.constant 0 : index
    %c0_1 = arith.constant 0 : index
    %3 = vector.load %arg3[%c0, %c0_1] : memref<256x32xbf16, #tpu.memory_space<vmem>>, vector<256x32xbf16>
    %c0_2 = arith.constant 0 : index
    %c0_3 = arith.constant 0 : index
    %4 = vector.load %arg5[%c0_2, %c0_3] : memref<32x64xbf16, #tpu.memory_space<vmem>>, vector<32x64xbf16>
    %cst = arith.constant dense<0.000000e+00> : vector<256x64xf32>
    %5 = tpu.matmul %3, %4, %cst {dimension_numbers = #tpu.dot_dimension_numbers<[1], [0], [0], [1], [0, 0, 1, 1], [], []>} : vector<256x32xbf16>, vector<32x64xbf16>, vector<256x64xf32> -> vector<256x64xf32>
    %c0_4 = arith.constant 0 : index
    %c0_5 = arith.constant 0 : index
    %6 = vector.load %arg4[%c0_4, %c0_5] : memref<256x8xbf16, #tpu.memory_space<vmem>>, vector<256x8xbf16>
    %c0_6 = arith.constant 0 : index
    %c0_7 = arith.constant 0 : index
    %7 = vector.load %arg6[%c0_6, %c0_7] : memref<8x64xbf16, #tpu.memory_space<vmem>>, vector<8x64xbf16>
    %cst_8 = arith.constant dense<0.000000e+00> : vector<256x64xf32>
    %8 = tpu.matmul %6, %7, %cst_8 {dimension_numbers = #tpu.dot_dimension_numbers<[1], [0], [0], [1], [0, 0, 1, 1], [], []>} : vector<256x8xbf16>, vector<8x64xbf16>, vector<256x64xf32> -> vector<256x64xf32>
    %9 = arith.addf %5, %8 : vector<256x64xf32>
    %c0_9 = arith.constant 0 : index
    %c0_10 = arith.constant 0 : index
    %10 = vector.load %arg7[%c0_9, %c0_10] : memref<1x64xf32, #tpu.memory_space<vmem>>, vector<1x64xf32>
    %11 = vector.broadcast %10 : vector<1x64xf32> to vector<256x64xf32>
    %12 = arith.addf %9, %11 : vector<256x64xf32>
    %cst_11 = arith.constant 5.000000e-01 : f32
    %13 = vector.broadcast %cst_11 : f32 to vector<256x64xf32>
    %14 = arith.mulf %13, %12 : vector<256x64xf32>
    %cst_12 = arith.constant 4.471500e-02 : f32
    %15 = vector.broadcast %cst_12 : f32 to vector<256x64xf32>
    %16 = arith.mulf %15, %12 : vector<256x64xf32>
    %17 = arith.mulf %16, %12 : vector<256x64xf32>
    %18 = arith.mulf %17, %12 : vector<256x64xf32>
    %19 = arith.addf %12, %18 : vector<256x64xf32>
    %cst_13 = arith.constant 0.797884583 : f32
    %20 = vector.broadcast %cst_13 : f32 to vector<256x64xf32>
    %21 = arith.mulf %20, %19 : vector<256x64xf32>
    %22 = math.tanh %21 : vector<256x64xf32>
    %cst_14 = arith.constant 1.000000e+00 : f32
    %23 = vector.broadcast %cst_14 : f32 to vector<256x64xf32>
    %24 = arith.addf %23, %22 : vector<256x64xf32>
    %25 = arith.mulf %14, %24 : vector<256x64xf32>
    %26 = arith.truncf %25 : vector<256x64xf32> to vector<256x64xbf16>
    %c0_15 = arith.constant 0 : index
    %c0_16 = arith.constant 0 : index
    %27 = vector.load %arg8[%c0_15, %c0_16] : memref<64x32xbf16, #tpu.memory_space<vmem>>, vector<64x32xbf16>
    %cst_17 = arith.constant dense<0.000000e+00> : vector<256x32xf32>
    %28 = tpu.matmul %26, %27, %cst_17 {dimension_numbers = #tpu.dot_dimension_numbers<[1], [0], [0], [1], [0, 0, 1, 1], [], []>} : vector<256x64xbf16>, vector<64x32xbf16>, vector<256x32xf32> -> vector<256x32xf32>
    %c0_18 = arith.constant 0 : index
    %c0_19 = arith.constant 0 : index
    %29 = vector.load %arg9[%c0_18, %c0_19] : memref<1x32xf32, #tpu.memory_space<vmem>>, vector<1x32xf32>
    %30 = vector.broadcast %29 : vector<1x32xf32> to vector<256x32xf32>
    %31 = arith.addf %28, %30 : vector<256x32xf32>
    %32 = tpu.iota {dimensions = array<i32: 0>} : vector<32x256xi32>
    %c32_i32 = arith.constant 32 : i32
    %33 = arith.muli %arg0, %c32_i32 : i32
    %34 = vector.broadcast %33 : i32 to vector<32x256xi32>
    %35 = arith.addi %32, %34 : vector<32x256xi32>
    %c0_20 = arith.constant 0 : index
    %c0_21 = arith.constant 0 : index
    %36 = vector.load %arg2[%c0_20, %c0_21] : memref<1x256xi32, #tpu.memory_space<vmem>>, vector<1x256xi32>
    %37 = vector.broadcast %36 : vector<1x256xi32> to vector<32x256xi32>
    %38 = arith.cmpi eq, %35, %37 : vector<32x256xi32>
    %39 = arith.extui %38 : vector<32x256xi1> to vector<32x256xi32>
    %40 = arith.sitofp %39 : vector<32x256xi32> to vector<32x256xf32>
    %41 = arith.truncf %40 : vector<32x256xf32> to vector<32x256xbf16>
    %c0_22 = arith.constant 0 : index
    %c0_23 = arith.constant 0 : index
    %42 = vector.load %arg15[%c0_22, %c0_23] : memref<32x32xf32, #tpu.memory_space<vmem>>, vector<32x32xf32>
    %43 = arith.truncf %31 : vector<256x32xf32> to vector<256x32xbf16>
    %cst_24 = arith.constant dense<0.000000e+00> : vector<32x32xf32>
    %44 = tpu.matmul %41, %43, %cst_24 {dimension_numbers = #tpu.dot_dimension_numbers<[1], [0], [0], [1], [0, 0, 1, 1], [], []>} : vector<32x256xbf16>, vector<256x32xbf16>, vector<32x32xf32> -> vector<32x32xf32>
    %45 = arith.addf %42, %44 : vector<32x32xf32>
    %c0_25 = arith.constant 0 : index
    %c0_26 = arith.constant 0 : index
    %46 = vector.load %arg15[%c0_25, %c0_26] : memref<32x32xf32, #tpu.memory_space<vmem>>, vector<32x32xf32>
    tpu.vector_store %arg15[%c0_25, %c0_26], %45 {strides = array<i32>} : memref<32x32xf32, #tpu.memory_space<vmem>>, vector<32x32xf32>,
    %c3_i32 = arith.constant 3 : i32
    %47 = arith.cmpi eq, %arg1, %c3_i32 : i32
    %48 = arith.extui %47 : i1 to i32
    %c0_i32_27 = arith.constant 0 : i32
    %49 = arith.cmpi ne, %48, %c0_i32_27 : i32
    scf.if %49 {
      %c0_28 = arith.constant 0 : index
      %c0_29 = arith.constant 0 : index
      %50 = vector.load %arg15[%c0_28, %c0_29] : memref<32x32xf32, #tpu.memory_space<vmem>>, vector<32x32xf32>
      %51 = arith.truncf %50 : vector<32x32xf32> to vector<32x32xbf16>
      %c0_30 = arith.constant 0 : index
      %c0_31 = arith.constant 0 : index
      %52 = vector.load %arg10[%c0_30, %c0_31] : memref<32x64xbf16, #tpu.memory_space<vmem>>, vector<32x64xbf16>
      %cst_32 = arith.constant dense<0.000000e+00> : vector<32x64xf32>
      %53 = tpu.matmul %51, %52, %cst_32 {dimension_numbers = #tpu.dot_dimension_numbers<[1], [0], [0], [1], [0, 0, 1, 1], [], []>} : vector<32x32xbf16>, vector<32x64xbf16>, vector<32x64xf32> -> vector<32x64xf32>
      %c0_33 = arith.constant 0 : index
      %c0_34 = arith.constant 0 : index
      %54 = vector.load %arg11[%c0_33, %c0_34] : memref<1x64xf32, #tpu.memory_space<vmem>>, vector<1x64xf32>
      %55 = vector.broadcast %54 : vector<1x64xf32> to vector<32x64xf32>
      %56 = arith.addf %53, %55 : vector<32x64xf32>
      %cst_35 = arith.constant 5.000000e-01 : f32
      %57 = vector.broadcast %cst_35 : f32 to vector<32x64xf32>
      %58 = arith.mulf %57, %56 : vector<32x64xf32>
      %cst_36 = arith.constant 4.471500e-02 : f32
      %59 = vector.broadcast %cst_36 : f32 to vector<32x64xf32>
      %60 = arith.mulf %59, %56 : vector<32x64xf32>
      %61 = arith.mulf %60, %56 : vector<32x64xf32>
      %62 = arith.mulf %61, %56 : vector<32x64xf32>
      %63 = arith.addf %56, %62 : vector<32x64xf32>
      %cst_37 = arith.constant 0.797884583 : f32
      %64 = vector.broadcast %cst_37 : f32 to vector<32x64xf32>
      %65 = arith.mulf %64, %63 : vector<32x64xf32>
      %66 = math.tanh %65 : vector<32x64xf32>
      %cst_38 = arith.constant 1.000000e+00 : f32
      %67 = vector.broadcast %cst_38 : f32 to vector<32x64xf32>
      %68 = arith.addf %67, %66 : vector<32x64xf32>
      %69 = arith.mulf %58, %68 : vector<32x64xf32>
      %70 = arith.truncf %69 : vector<32x64xf32> to vector<32x64xbf16>
      %c0_39 = arith.constant 0 : index
      %c0_40 = arith.constant 0 : index
      %71 = vector.load %arg12[%c0_39, %c0_40] : memref<64x32xbf16, #tpu.memory_space<vmem>>, vector<64x32xbf16>
      %cst_41 = arith.constant dense<0.000000e+00> : vector<32x32xf32>
      %72 = tpu.matmul %70, %71, %cst_41 {dimension_numbers = #tpu.dot_dimension_numbers<[1], [0], [0], [1], [0, 0, 1, 1], [], []>} : vector<32x64xbf16>, vector<64x32xbf16>, vector<32x32xf32> -> vector<32x32xf32>
      %c0_42 = arith.constant 0 : index
      %c0_43 = arith.constant 0 : index
      %73 = vector.load %arg13[%c0_42, %c0_43] : memref<1x32xf32, #tpu.memory_space<vmem>>, vector<1x32xf32>
      %74 = vector.broadcast %73 : vector<1x32xf32> to vector<32x32xf32>
      %75 = arith.addf %72, %74 : vector<32x32xf32>
      %cst_44 = arith.constant 5.000000e-01 : f32
      %76 = vector.broadcast %cst_44 : f32 to vector<32x32xf32>
      %77 = arith.mulf %76, %75 : vector<32x32xf32>
      %cst_45 = arith.constant 4.471500e-02 : f32
      %78 = vector.broadcast %cst_45 : f32 to vector<32x32xf32>
      %79 = arith.mulf %78, %75 : vector<32x32xf32>
      %80 = arith.mulf %79, %75 : vector<32x32xf32>
      %81 = arith.mulf %80, %75 : vector<32x32xf32>
      %82 = arith.addf %75, %81 : vector<32x32xf32>
      %cst_46 = arith.constant 0.797884583 : f32
      %83 = vector.broadcast %cst_46 : f32 to vector<32x32xf32>
      %84 = arith.mulf %83, %82 : vector<32x32xf32>
      %85 = math.tanh %84 : vector<32x32xf32>
      %cst_47 = arith.constant 1.000000e+00 : f32
      %86 = vector.broadcast %cst_47 : f32 to vector<32x32xf32>
      %87 = arith.addf %86, %85 : vector<32x32xf32>
      %88 = arith.mulf %77, %87 : vector<32x32xf32>
      %c0_48 = arith.constant 0 : index
      %c0_49 = arith.constant 0 : index
      %89 = vector.load %arg14[%c0_48, %c0_49] : memref<32x32xf32, #tpu.memory_space<vmem>>, vector<32x32xf32>
      tpu.vector_store %arg14[%c0_48, %c0_49], %88 {strides = array<i32>} : memref<32x32xf32, #tpu.memory_space<vmem>>, vector<32x32xf32>,
    } else {
    }
    return
  }
  func.func @transform_0(%arg0: i32, %arg1: i32) -> (i32, i32) {
    %c0_i32 = arith.constant 0 : i32
    %c0_i32_0 = arith.constant 0 : i32
    return %c0_i32, %arg1 : i32, i32
  }
  func.func @transform_1(%arg0: i32, %arg1: i32) -> (i32, i32) {
    %c0_i32 = arith.constant 0 : i32
    %c0_i32_0 = arith.constant 0 : i32
    return %arg1, %c0_i32 : i32, i32
  }
  func.func @transform_2(%arg0: i32, %arg1: i32) -> (i32, i32) {
    %c0_i32 = arith.constant 0 : i32
    %c0_i32_0 = arith.constant 0 : i32
    return %arg1, %c0_i32 : i32, i32
  }
  func.func @transform_3(%arg0: i32, %arg1: i32) -> (i32, i32) {
    %c0_i32 = arith.constant 0 : i32
    %c0_i32_0 = arith.constant 0 : i32
    %c0_i32_1 = arith.constant 0 : i32
    return %c0_i32, %c0_i32_0 : i32, i32
  }
  func.func @transform_4(%arg0: i32, %arg1: i32) -> (i32, i32) {
    %c0_i32 = arith.constant 0 : i32
    %c0_i32_0 = arith.constant 0 : i32
    %c0_i32_1 = arith.constant 0 : i32
    return %c0_i32, %c0_i32_0 : i32, i32
  }
  func.func @transform_5(%arg0: i32, %arg1: i32) -> (i32, i32) {
    %c0_i32 = arith.constant 0 : i32
    %c0_i32_0 = arith.constant 0 : i32
    %c0_i32_1 = arith.constant 0 : i32
    return %c0_i32, %c0_i32_0 : i32, i32
  }
  func.func @transform_6(%arg0: i32, %arg1: i32) -> (i32, i32) {
    %c0_i32 = arith.constant 0 : i32
    %c0_i32_0 = arith.constant 0 : i32
    %c0_i32_1 = arith.constant 0 : i32
    return %c0_i32, %c0_i32_0 : i32, i32
  }
  func.func @transform_7(%arg0: i32, %arg1: i32) -> (i32, i32) {
    %c0_i32 = arith.constant 0 : i32
    %c0_i32_0 = arith.constant 0 : i32
    %c0_i32_1 = arith.constant 0 : i32
    return %c0_i32, %c0_i32_0 : i32, i32
  }
  func.func @transform_8(%arg0: i32, %arg1: i32) -> (i32, i32) {
    %c0_i32 = arith.constant 0 : i32
    %c0_i32_0 = arith.constant 0 : i32
    %c0_i32_1 = arith.constant 0 : i32
    return %c0_i32, %c0_i32_0 : i32, i32
  }
  func.func @transform_9(%arg0: i32, %arg1: i32) -> (i32, i32) {
    %c0_i32 = arith.constant 0 : i32
    %c0_i32_0 = arith.constant 0 : i32
    %c0_i32_1 = arith.constant 0 : i32
    return %c0_i32, %c0_i32_0 : i32, i32
  }
  func.func @transform_10(%arg0: i32, %arg1: i32) -> (i32, i32) {
    %c0_i32 = arith.constant 0 : i32
    %c0_i32_0 = arith.constant 0 : i32
    %c0_i32_1 = arith.constant 0 : i32
    return %c0_i32, %c0_i32_0 : i32, i32
  }
  func.func @transform_11(%arg0: i32, %arg1: i32) -> (i32, i32) {
    %c0_i32 = arith.constant 0 : i32
    %c0_i32_0 = arith.constant 0 : i32
    %c0_i32_1 = arith.constant 0 : i32
    return %c0_i32, %c0_i32_0 : i32, i32
  }
  func.func @transform_12(%arg0: i32, %arg1: i32) -> (i32, i32) {
    %c0_i32 = arith.constant 0 : i32
    %c0_i32_0 = arith.constant 0 : i32
    return %arg0, %c0_i32 : i32, i32
  }
}

module attributes {stable_mosaic.version = 11 : i64} {
  func.func @_pointconv_kernel(%arg0: i32, %arg1: i32, %arg2: memref<1x256xi32, #tpu.memory_space<vmem>>, %arg3: memref<256x32xbf16, #tpu.memory_space<vmem>>, %arg4: memref<256x8xbf16, #tpu.memory_space<vmem>>, %arg5: memref<32x64xbf16, #tpu.memory_space<vmem>>, %arg6: memref<8x64xbf16, #tpu.memory_space<vmem>>, %arg7: memref<1x64xf32, #tpu.memory_space<vmem>>, %arg8: memref<64x32xbf16, #tpu.memory_space<vmem>>, %arg9: memref<1x32xf32, #tpu.memory_space<vmem>>, %arg10: memref<32x64xbf16, #tpu.memory_space<vmem>>, %arg11: memref<1x64xf32, #tpu.memory_space<vmem>>, %arg12: memref<64x32xbf16, #tpu.memory_space<vmem>>, %arg13: memref<1x32xf32, #tpu.memory_space<vmem>>, %arg14: memref<32x32xf32, #tpu.memory_space<vmem>>, %arg15: memref<32x32xf32, #tpu.memory_space<vmem>>) attributes {dimension_semantics = [#tpu.dimension_semantics<parallel>, #tpu.dimension_semantics<arbitrary>], iteration_bounds = array<i64: 2, 4>, scalar_prefetch = 0 : i64, scratch_operands = 1 : i64, tpu.core_type = #tpu.core_type<tc>, window_params = [{transform_indices = @transform_0, window_bounds = array<i64: 1, 256>}, {transform_indices = @transform_1, window_bounds = array<i64: 256, 32>}, {transform_indices = @transform_2, window_bounds = array<i64: 256, 8>}, {pipeline_mode = #tpu.pipeline_mode<synchronous>, transform_indices = @transform_3, window_bounds = array<i64: 32, 64>}, {pipeline_mode = #tpu.pipeline_mode<synchronous>, transform_indices = @transform_4, window_bounds = array<i64: 8, 64>}, {pipeline_mode = #tpu.pipeline_mode<synchronous>, transform_indices = @transform_5, window_bounds = array<i64: 1, 64>}, {pipeline_mode = #tpu.pipeline_mode<synchronous>, transform_indices = @transform_6, window_bounds = array<i64: 64, 32>}, {pipeline_mode = #tpu.pipeline_mode<synchronous>, transform_indices = @transform_7, window_bounds = array<i64: 1, 32>}, {pipeline_mode = #tpu.pipeline_mode<synchronous>, transform_indices = @transform_8, window_bounds = array<i64: 32, 64>}, {pipeline_mode = #tpu.pipeline_mode<synchronous>, transform_indices = @transform_9, window_bounds = array<i64: 1, 64>}, {pipeline_mode = #tpu.pipeline_mode<synchronous>, transform_indices = @transform_10, window_bounds = array<i64: 64, 32>}, {pipeline_mode = #tpu.pipeline_mode<synchronous>, transform_indices = @transform_11, window_bounds = array<i64: 1, 32>}, {transform_indices = @transform_12, window_bounds = array<i64: 32, 32>}]} {
    %c0_i32 = arith.constant 0 : i32
    %0 = arith.cmpi eq, %arg1, %c0_i32 : i32
    %1 = arith.extui %0 : i1 to i32
    %c0_i32_0 = arith.constant 0 : i32
    %2 = arith.cmpi ne, %1, %c0_i32_0 : i32
    scf.if %2 {
      %cst_28 = arith.constant 0.000000e+00 : f32
      %50 = vector.broadcast %cst_28 : f32 to vector<32x32xf32>
      %c0_29 = arith.constant 0 : index
      %c0_30 = arith.constant 0 : index
      %51 = vector.load %arg15[%c0_29, %c0_30] : memref<32x32xf32, #tpu.memory_space<vmem>>, vector<32x32xf32>
      tpu.vector_store %arg15[%c0_29, %c0_30], %50 {strides = array<i32>} : memref<32x32xf32, #tpu.memory_space<vmem>>, vector<32x32xf32>,
    } else {
    }
    %c0 = arith.constant 0 : index
    %c0_1 = arith.constant 0 : index
    %3 = vector.load %arg3[%c0, %c0_1] : memref<256x32xbf16, #tpu.memory_space<vmem>>, vector<256x32xbf16>
    %c0_2 = arith.constant 0 : index
    %c0_3 = arith.constant 0 : index
    %4 = vector.load %arg5[%c0_2, %c0_3] : memref<32x64xbf16, #tpu.memory_space<vmem>>, vector<32x64xbf16>
    %cst = arith.constant dense<0.000000e+00> : vector<256x64xf32>
    %5 = tpu.matmul %3, %4, %cst {dimension_numbers = #tpu.dot_dimension_numbers<[1], [0], [0], [1], [0, 0, 1, 1], [], []>} : vector<256x32xbf16>, vector<32x64xbf16>, vector<256x64xf32> -> vector<256x64xf32>
    %c0_4 = arith.constant 0 : index
    %c0_5 = arith.constant 0 : index
    %6 = vector.load %arg4[%c0_4, %c0_5] : memref<256x8xbf16, #tpu.memory_space<vmem>>, vector<256x8xbf16>
    %c0_6 = arith.constant 0 : index
    %c0_7 = arith.constant 0 : index
    %7 = vector.load %arg6[%c0_6, %c0_7] : memref<8x64xbf16, #tpu.memory_space<vmem>>, vector<8x64xbf16>
    %cst_8 = arith.constant dense<0.000000e+00> : vector<256x64xf32>
    %8 = tpu.matmul %6, %7, %cst_8 {dimension_numbers = #tpu.dot_dimension_numbers<[1], [0], [0], [1], [0, 0, 1, 1], [], []>} : vector<256x8xbf16>, vector<8x64xbf16>, vector<256x64xf32> -> vector<256x64xf32>
    %9 = arith.addf %5, %8 : vector<256x64xf32>
    %c0_9 = arith.constant 0 : index
    %c0_10 = arith.constant 0 : index
    %10 = vector.load %arg7[%c0_9, %c0_10] : memref<1x64xf32, #tpu.memory_space<vmem>>, vector<1x64xf32>
    %11 = vector.broadcast %10 : vector<1x64xf32> to vector<256x64xf32>
    %12 = arith.addf %9, %11 : vector<256x64xf32>
    %cst_11 = arith.constant 5.000000e-01 : f32
    %13 = vector.broadcast %cst_11 : f32 to vector<256x64xf32>
    %14 = arith.mulf %13, %12 : vector<256x64xf32>
    %cst_12 = arith.constant 4.471500e-02 : f32
    %15 = vector.broadcast %cst_12 : f32 to vector<256x64xf32>
    %16 = arith.mulf %15, %12 : vector<256x64xf32>
    %17 = arith.mulf %16, %12 : vector<256x64xf32>
    %18 = arith.mulf %17, %12 : vector<256x64xf32>
    %19 = arith.addf %12, %18 : vector<256x64xf32>
    %cst_13 = arith.constant 0.797884583 : f32
    %20 = vector.broadcast %cst_13 : f32 to vector<256x64xf32>
    %21 = arith.mulf %20, %19 : vector<256x64xf32>
    %22 = math.tanh %21 : vector<256x64xf32>
    %cst_14 = arith.constant 1.000000e+00 : f32
    %23 = vector.broadcast %cst_14 : f32 to vector<256x64xf32>
    %24 = arith.addf %23, %22 : vector<256x64xf32>
    %25 = arith.mulf %14, %24 : vector<256x64xf32>
    %26 = arith.truncf %25 : vector<256x64xf32> to vector<256x64xbf16>
    %c0_15 = arith.constant 0 : index
    %c0_16 = arith.constant 0 : index
    %27 = vector.load %arg8[%c0_15, %c0_16] : memref<64x32xbf16, #tpu.memory_space<vmem>>, vector<64x32xbf16>
    %cst_17 = arith.constant dense<0.000000e+00> : vector<256x32xf32>
    %28 = tpu.matmul %26, %27, %cst_17 {dimension_numbers = #tpu.dot_dimension_numbers<[1], [0], [0], [1], [0, 0, 1, 1], [], []>} : vector<256x64xbf16>, vector<64x32xbf16>, vector<256x32xf32> -> vector<256x32xf32>
    %c0_18 = arith.constant 0 : index
    %c0_19 = arith.constant 0 : index
    %29 = vector.load %arg9[%c0_18, %c0_19] : memref<1x32xf32, #tpu.memory_space<vmem>>, vector<1x32xf32>
    %30 = vector.broadcast %29 : vector<1x32xf32> to vector<256x32xf32>
    %31 = arith.addf %28, %30 : vector<256x32xf32>
    %32 = tpu.iota {dimensions = array<i32: 0>} : vector<32x256xi32>
    %c32_i32 = arith.constant 32 : i32
    %33 = arith.muli %arg0, %c32_i32 : i32
    %34 = vector.broadcast %33 : i32 to vector<32x256xi32>
    %35 = arith.addi %32, %34 : vector<32x256xi32>
    %c0_20 = arith.constant 0 : index
    %c0_21 = arith.constant 0 : index
    %36 = vector.load %arg2[%c0_20, %c0_21] : memref<1x256xi32, #tpu.memory_space<vmem>>, vector<1x256xi32>
    %37 = vector.broadcast %36 : vector<1x256xi32> to vector<32x256xi32>
    %38 = arith.cmpi eq, %35, %37 : vector<32x256xi32>
    %39 = arith.extui %38 : vector<32x256xi1> to vector<32x256xi32>
    %40 = arith.sitofp %39 : vector<32x256xi32> to vector<32x256xf32>
    %41 = arith.truncf %40 : vector<32x256xf32> to vector<32x256xbf16>
    %c0_22 = arith.constant 0 : index
    %c0_23 = arith.constant 0 : index
    %42 = vector.load %arg15[%c0_22, %c0_23] : memref<32x32xf32, #tpu.memory_space<vmem>>, vector<32x32xf32>
    %43 = arith.truncf %31 : vector<256x32xf32> to vector<256x32xbf16>
    %cst_24 = arith.constant dense<0.000000e+00> : vector<32x32xf32>
    %44 = tpu.matmul %41, %43, %cst_24 {dimension_numbers = #tpu.dot_dimension_numbers<[1], [0], [0], [1], [0, 0, 1, 1], [], []>} : vector<32x256xbf16>, vector<256x32xbf16>, vector<32x32xf32> -> vector<32x32xf32>
    %45 = arith.addf %42, %44 : vector<32x32xf32>
    %c0_25 = arith.constant 0 : index
    %c0_26 = arith.constant 0 : index
    %46 = vector.load %arg15[%c0_25, %c0_26] : memref<32x32xf32, #tpu.memory_space<vmem>>, vector<32x32xf32>
    tpu.vector_store %arg15[%c0_25, %c0_26], %45 {strides = array<i32>} : memref<32x32xf32, #tpu.memory_space<vmem>>, vector<32x32xf32>,
    %c3_i32 = arith.constant 3 : i32
    %47 = arith.cmpi eq, %arg1, %c3_i32 : i32
    %48 = arith.extui %47 : i1 to i32
    %c0_i32_27 = arith.constant 0 : i32
    %49 = arith.cmpi ne, %48, %c0_i32_27 : i32
    scf.if %49 {
      %c0_28 = arith.constant 0 : index
      %c0_29 = arith.constant 0 : index
      %50 = vector.load %arg15[%c0_28, %c0_29] : memref<32x32xf32, #tpu.memory_space<vmem>>, vector<32x32xf32>
      %51 = arith.truncf %50 : vector<32x32xf32> to vector<32x32xbf16>
      %c0_30 = arith.constant 0 : index
      %c0_31 = arith.constant 0 : index
      %52 = vector.load %arg10[%c0_30, %c0_31] : memref<32x64xbf16, #tpu.memory_space<vmem>>, vector<32x64xbf16>
      %cst_32 = arith.constant dense<0.000000e+00> : vector<32x64xf32>
      %53 = tpu.matmul %51, %52, %cst_32 {dimension_numbers = #tpu.dot_dimension_numbers<[1], [0], [0], [1], [0, 0, 1, 1], [], []>} : vector<32x32xbf16>, vector<32x64xbf16>, vector<32x64xf32> -> vector<32x64xf32>
      %c0_33 = arith.constant 0 : index
      %c0_34 = arith.constant 0 : index
      %54 = vector.load %arg11[%c0_33, %c0_34] : memref<1x64xf32, #tpu.memory_space<vmem>>, vector<1x64xf32>
      %55 = vector.broadcast %54 : vector<1x64xf32> to vector<32x64xf32>
      %56 = arith.addf %53, %55 : vector<32x64xf32>
      %cst_35 = arith.constant 5.000000e-01 : f32
      %57 = vector.broadcast %cst_35 : f32 to vector<32x64xf32>
      %58 = arith.mulf %57, %56 : vector<32x64xf32>
      %cst_36 = arith.constant 4.471500e-02 : f32
      %59 = vector.broadcast %cst_36 : f32 to vector<32x64xf32>
      %60 = arith.mulf %59, %56 : vector<32x64xf32>
      %61 = arith.mulf %60, %56 : vector<32x64xf32>
      %62 = arith.mulf %61, %56 : vector<32x64xf32>
      %63 = arith.addf %56, %62 : vector<32x64xf32>
      %cst_37 = arith.constant 0.797884583 : f32
      %64 = vector.broadcast %cst_37 : f32 to vector<32x64xf32>
      %65 = arith.mulf %64, %63 : vector<32x64xf32>
      %66 = math.tanh %65 : vector<32x64xf32>
      %cst_38 = arith.constant 1.000000e+00 : f32
      %67 = vector.broadcast %cst_38 : f32 to vector<32x64xf32>
      %68 = arith.addf %67, %66 : vector<32x64xf32>
      %69 = arith.mulf %58, %68 : vector<32x64xf32>
      %70 = arith.truncf %69 : vector<32x64xf32> to vector<32x64xbf16>
      %c0_39 = arith.constant 0 : index
      %c0_40 = arith.constant 0 : index
      %71 = vector.load %arg12[%c0_39, %c0_40] : memref<64x32xbf16, #tpu.memory_space<vmem>>, vector<64x32xbf16>
      %cst_41 = arith.constant dense<0.000000e+00> : vector<32x32xf32>
      %72 = tpu.matmul %70, %71, %cst_41 {dimension_numbers = #tpu.dot_dimension_numbers<[1], [0], [0], [1], [0, 0, 1, 1], [], []>} : vector<32x64xbf16>, vector<64x32xbf16>, vector<32x32xf32> -> vector<32x32xf32>
      %c0_42 = arith.constant 0 : index
      %c0_43 = arith.constant 0 : index
      %73 = vector.load %arg13[%c0_42, %c0_43] : memref<1x32xf32, #tpu.memory_space<vmem>>, vector<1x32xf32>
      %74 = vector.broadcast %73 : vector<1x32xf32> to vector<32x32xf32>
      %75 = arith.addf %72, %74 : vector<32x32xf32>
      %c0_44 = arith.constant 0 : index
      %c0_45 = arith.constant 0 : index
      %76 = vector.load %arg14[%c0_44, %c0_45] : memref<32x32xf32, #tpu.memory_space<vmem>>, vector<32x32xf32>
      tpu.vector_store %arg14[%c0_44, %c0_45], %75 {strides = array<i32>} : memref<32x32xf32, #tpu.memory_space<vmem>>, vector<32x32xf32>,
    } else {
    }
    return
  }
  func.func @transform_0(%arg0: i32, %arg1: i32) -> (i32, i32) {
    %c0_i32 = arith.constant 0 : i32
    %c0_i32_0 = arith.constant 0 : i32
    return %c0_i32, %arg1 : i32, i32
  }
  func.func @transform_1(%arg0: i32, %arg1: i32) -> (i32, i32) {
    %c0_i32 = arith.constant 0 : i32
    %c0_i32_0 = arith.constant 0 : i32
    return %arg1, %c0_i32 : i32, i32
  }
  func.func @transform_2(%arg0: i32, %arg1: i32) -> (i32, i32) {
    %c0_i32 = arith.constant 0 : i32
    %c0_i32_0 = arith.constant 0 : i32
    return %arg1, %c0_i32 : i32, i32
  }
  func.func @transform_3(%arg0: i32, %arg1: i32) -> (i32, i32) {
    %c0_i32 = arith.constant 0 : i32
    %c0_i32_0 = arith.constant 0 : i32
    %c0_i32_1 = arith.constant 0 : i32
    return %c0_i32, %c0_i32_0 : i32, i32
  }
  func.func @transform_4(%arg0: i32, %arg1: i32) -> (i32, i32) {
    %c0_i32 = arith.constant 0 : i32
    %c0_i32_0 = arith.constant 0 : i32
    %c0_i32_1 = arith.constant 0 : i32
    return %c0_i32, %c0_i32_0 : i32, i32
  }
  func.func @transform_5(%arg0: i32, %arg1: i32) -> (i32, i32) {
    %c0_i32 = arith.constant 0 : i32
    %c0_i32_0 = arith.constant 0 : i32
    %c0_i32_1 = arith.constant 0 : i32
    return %c0_i32, %c0_i32_0 : i32, i32
  }
  func.func @transform_6(%arg0: i32, %arg1: i32) -> (i32, i32) {
    %c0_i32 = arith.constant 0 : i32
    %c0_i32_0 = arith.constant 0 : i32
    %c0_i32_1 = arith.constant 0 : i32
    return %c0_i32, %c0_i32_0 : i32, i32
  }
  func.func @transform_7(%arg0: i32, %arg1: i32) -> (i32, i32) {
    %c0_i32 = arith.constant 0 : i32
    %c0_i32_0 = arith.constant 0 : i32
    %c0_i32_1 = arith.constant 0 : i32
    return %c0_i32, %c0_i32_0 : i32, i32
  }
  func.func @transform_8(%arg0: i32, %arg1: i32) -> (i32, i32) {
    %c0_i32 = arith.constant 0 : i32
    %c0_i32_0 = arith.constant 0 : i32
    %c0_i32_1 = arith.constant 0 : i32
    return %c0_i32, %c0_i32_0 : i32, i32
  }
  func.func @transform_9(%arg0: i32, %arg1: i32) -> (i32, i32) {
    %c0_i32 = arith.constant 0 : i32
    %c0_i32_0 = arith.constant 0 : i32
    %c0_i32_1 = arith.constant 0 : i32
    return %c0_i32, %c0_i32_0 : i32, i32
  }
  func.func @transform_10(%arg0: i32, %arg1: i32) -> (i32, i32) {
    %c0_i32 = arith.constant 0 : i32
    %c0_i32_0 = arith.constant 0 : i32
    %c0_i32_1 = arith.constant 0 : i32
    return %c0_i32, %c0_i32_0 : i32, i32
  }
  func.func @transform_11(%arg0: i32, %arg1: i32) -> (i32, i32) {
    %c0_i32 = arith.constant 0 : i32
    %c0_i32_0 = arith.constant 0 : i32
    %c0_i32_1 = arith.constant 0 : i32
    return %c0_i32, %c0_i32_0 : i32, i32
  }
  func.func @transform_12(%arg0: i32, %arg1: i32) -> (i32, i32) {
    %c0_i32 = arith.constant 0 : i32
    %c0_i32_0 = arith.constant 0 : i32
    return %arg0, %c0_i32 : i32, i32
  }
}

module attributes {stable_mosaic.version = 11 : i64} {
  func.func @_readout_fc_kernel(%arg0: i32, %arg1: memref<64x32xf32, #tpu.memory_space<vmem>>, %arg2: memref<1x64xi32, #tpu.memory_space<vmem>>, %arg3: memref<32x64xf32, #tpu.memory_space<vmem>>, %arg4: memref<1x64xf32, #tpu.memory_space<vmem>>, %arg5: memref<64x32xf32, #tpu.memory_space<vmem>>, %arg6: memref<1x32xf32, #tpu.memory_space<vmem>>, %arg7: memref<32x128xf32, #tpu.memory_space<vmem>>, %arg8: memref<1x128xf32, #tpu.memory_space<vmem>>, %arg9: memref<8x128xf32, #tpu.memory_space<vmem>>) attributes {dimension_semantics = [#tpu.dimension_semantics<arbitrary>], iteration_bounds = array<i64: 1>, scalar_prefetch = 0 : i64, scratch_operands = 0 : i64, tpu.core_type = #tpu.core_type<tc>, window_params = [{pipeline_mode = #tpu.pipeline_mode<synchronous>, transform_indices = @transform_0, window_bounds = array<i64: 64, 32>}, {pipeline_mode = #tpu.pipeline_mode<synchronous>, transform_indices = @transform_1, window_bounds = array<i64: 1, 64>}, {pipeline_mode = #tpu.pipeline_mode<synchronous>, transform_indices = @transform_2, window_bounds = array<i64: 32, 64>}, {pipeline_mode = #tpu.pipeline_mode<synchronous>, transform_indices = @transform_3, window_bounds = array<i64: 1, 64>}, {pipeline_mode = #tpu.pipeline_mode<synchronous>, transform_indices = @transform_4, window_bounds = array<i64: 64, 32>}, {pipeline_mode = #tpu.pipeline_mode<synchronous>, transform_indices = @transform_5, window_bounds = array<i64: 1, 32>}, {pipeline_mode = #tpu.pipeline_mode<synchronous>, transform_indices = @transform_6, window_bounds = array<i64: 32, 128>}, {pipeline_mode = #tpu.pipeline_mode<synchronous>, transform_indices = @transform_7, window_bounds = array<i64: 1, 128>}, {pipeline_mode = #tpu.pipeline_mode<synchronous>, transform_indices = @transform_8, window_bounds = array<i64: 8, 128>}]} {
    %0 = tpu.iota {dimensions = array<i32: 0>} : vector<8x64xi32>
    %c0 = arith.constant 0 : index
    %c0_0 = arith.constant 0 : index
    %1 = vector.load %arg2[%c0, %c0_0] : memref<1x64xi32, #tpu.memory_space<vmem>>, vector<1x64xi32>
    %2 = vector.broadcast %1 : vector<1x64xi32> to vector<8x64xi32>
    %3 = arith.cmpi eq, %0, %2 : vector<8x64xi32>
    %4 = arith.extui %3 : vector<8x64xi1> to vector<8x64xi32>
    %5 = arith.sitofp %4 : vector<8x64xi32> to vector<8x64xf32>
    %c0_1 = arith.constant 0 : index
    %c0_2 = arith.constant 0 : index
    %6 = vector.load %arg1[%c0_1, %c0_2] : memref<64x32xf32, #tpu.memory_space<vmem>>, vector<64x32xf32>
    %cst = arith.constant dense<0.000000e+00> : vector<8x32xf32>
    %7 = tpu.matmul %5, %6, %cst {dimension_numbers = #tpu.dot_dimension_numbers<[1], [0], [0], [1], [0, 0, 1, 1], [], []>} : vector<8x64xf32>, vector<64x32xf32>, vector<8x32xf32> -> vector<8x32xf32>
    %c0_3 = arith.constant 0 : index
    %c0_4 = arith.constant 0 : index
    %8 = vector.load %arg3[%c0_3, %c0_4] : memref<32x64xf32, #tpu.memory_space<vmem>>, vector<32x64xf32>
    %cst_5 = arith.constant dense<0.000000e+00> : vector<8x64xf32>
    %9 = tpu.matmul %7, %8, %cst_5 {dimension_numbers = #tpu.dot_dimension_numbers<[1], [0], [0], [1], [0, 0, 1, 1], [], []>} : vector<8x32xf32>, vector<32x64xf32>, vector<8x64xf32> -> vector<8x64xf32>
    %c0_6 = arith.constant 0 : index
    %c0_7 = arith.constant 0 : index
    %10 = vector.load %arg4[%c0_6, %c0_7] : memref<1x64xf32, #tpu.memory_space<vmem>>, vector<1x64xf32>
    %11 = vector.broadcast %10 : vector<1x64xf32> to vector<8x64xf32>
    %12 = arith.addf %9, %11 : vector<8x64xf32>
    %cst_8 = arith.constant 5.000000e-01 : f32
    %13 = vector.broadcast %cst_8 : f32 to vector<8x64xf32>
    %14 = arith.mulf %13, %12 : vector<8x64xf32>
    %cst_9 = arith.constant 4.471500e-02 : f32
    %15 = vector.broadcast %cst_9 : f32 to vector<8x64xf32>
    %16 = arith.mulf %15, %12 : vector<8x64xf32>
    %17 = arith.mulf %16, %12 : vector<8x64xf32>
    %18 = arith.mulf %17, %12 : vector<8x64xf32>
    %19 = arith.addf %12, %18 : vector<8x64xf32>
    %cst_10 = arith.constant 0.797884583 : f32
    %20 = vector.broadcast %cst_10 : f32 to vector<8x64xf32>
    %21 = arith.mulf %20, %19 : vector<8x64xf32>
    %22 = math.tanh %21 : vector<8x64xf32>
    %cst_11 = arith.constant 1.000000e+00 : f32
    %23 = vector.broadcast %cst_11 : f32 to vector<8x64xf32>
    %24 = arith.addf %23, %22 : vector<8x64xf32>
    %25 = arith.mulf %14, %24 : vector<8x64xf32>
    %c0_12 = arith.constant 0 : index
    %c0_13 = arith.constant 0 : index
    %26 = vector.load %arg5[%c0_12, %c0_13] : memref<64x32xf32, #tpu.memory_space<vmem>>, vector<64x32xf32>
    %cst_14 = arith.constant dense<0.000000e+00> : vector<8x32xf32>
    %27 = tpu.matmul %25, %26, %cst_14 {dimension_numbers = #tpu.dot_dimension_numbers<[1], [0], [0], [1], [0, 0, 1, 1], [], []>} : vector<8x64xf32>, vector<64x32xf32>, vector<8x32xf32> -> vector<8x32xf32>
    %c0_15 = arith.constant 0 : index
    %c0_16 = arith.constant 0 : index
    %28 = vector.load %arg6[%c0_15, %c0_16] : memref<1x32xf32, #tpu.memory_space<vmem>>, vector<1x32xf32>
    %29 = vector.broadcast %28 : vector<1x32xf32> to vector<8x32xf32>
    %30 = arith.addf %27, %29 : vector<8x32xf32>
    %cst_17 = arith.constant 5.000000e-01 : f32
    %31 = vector.broadcast %cst_17 : f32 to vector<8x32xf32>
    %32 = arith.mulf %31, %30 : vector<8x32xf32>
    %cst_18 = arith.constant 4.471500e-02 : f32
    %33 = vector.broadcast %cst_18 : f32 to vector<8x32xf32>
    %34 = arith.mulf %33, %30 : vector<8x32xf32>
    %35 = arith.mulf %34, %30 : vector<8x32xf32>
    %36 = arith.mulf %35, %30 : vector<8x32xf32>
    %37 = arith.addf %30, %36 : vector<8x32xf32>
    %cst_19 = arith.constant 0.797884583 : f32
    %38 = vector.broadcast %cst_19 : f32 to vector<8x32xf32>
    %39 = arith.mulf %38, %37 : vector<8x32xf32>
    %40 = math.tanh %39 : vector<8x32xf32>
    %cst_20 = arith.constant 1.000000e+00 : f32
    %41 = vector.broadcast %cst_20 : f32 to vector<8x32xf32>
    %42 = arith.addf %41, %40 : vector<8x32xf32>
    %43 = arith.mulf %32, %42 : vector<8x32xf32>
    %c0_21 = arith.constant 0 : index
    %c0_22 = arith.constant 0 : index
    %44 = vector.load %arg7[%c0_21, %c0_22] : memref<32x128xf32, #tpu.memory_space<vmem>>, vector<32x128xf32>
    %cst_23 = arith.constant dense<0.000000e+00> : vector<8x128xf32>
    %45 = tpu.matmul %43, %44, %cst_23 {dimension_numbers = #tpu.dot_dimension_numbers<[1], [0], [0], [1], [0, 0, 1, 1], [], []>} : vector<8x32xf32>, vector<32x128xf32>, vector<8x128xf32> -> vector<8x128xf32>
    %c0_24 = arith.constant 0 : index
    %c0_25 = arith.constant 0 : index
    %46 = vector.load %arg8[%c0_24, %c0_25] : memref<1x128xf32, #tpu.memory_space<vmem>>, vector<1x128xf32>
    %47 = vector.broadcast %46 : vector<1x128xf32> to vector<8x128xf32>
    %48 = arith.addf %45, %47 : vector<8x128xf32>
    %cst_26 = arith.constant 0.000000e+00 : f32
    %49 = vector.broadcast %cst_26 : f32 to vector<8x128xf32>
    %50 = arith.subf %49, %48 : vector<8x128xf32>
    %51 = math.exp %50 : vector<8x128xf32>
    %cst_27 = arith.constant 1.000000e+00 : f32
    %52 = vector.broadcast %cst_27 : f32 to vector<8x128xf32>
    %53 = arith.addf %52, %51 : vector<8x128xf32>
    %54 = tpu.reciprocal %53 {approx = true} : vector<8x128xf32> -> vector<8x128xf32>
    %c0_28 = arith.constant 0 : index
    %c0_29 = arith.constant 0 : index
    %55 = vector.load %arg9[%c0_28, %c0_29] : memref<8x128xf32, #tpu.memory_space<vmem>>, vector<8x128xf32>
    tpu.vector_store %arg9[%c0_28, %c0_29], %54 {strides = array<i32>} : memref<8x128xf32, #tpu.memory_space<vmem>>, vector<8x128xf32>,
    return
  }
  func.func @transform_0(%arg0: i32) -> (i32, i32) {
    %c0_i32 = arith.constant 0 : i32
    %c0_i32_0 = arith.constant 0 : i32
    %c0_i32_1 = arith.constant 0 : i32
    return %c0_i32, %c0_i32_0 : i32, i32
  }
  func.func @transform_1(%arg0: i32) -> (i32, i32) {
    %c0_i32 = arith.constant 0 : i32
    %c0_i32_0 = arith.constant 0 : i32
    %c0_i32_1 = arith.constant 0 : i32
    return %c0_i32, %c0_i32_0 : i32, i32
  }
  func.func @transform_2(%arg0: i32) -> (i32, i32) {
    %c0_i32 = arith.constant 0 : i32
    %c0_i32_0 = arith.constant 0 : i32
    %c0_i32_1 = arith.constant 0 : i32
    return %c0_i32, %c0_i32_0 : i32, i32
  }
  func.func @transform_3(%arg0: i32) -> (i32, i32) {
    %c0_i32 = arith.constant 0 : i32
    %c0_i32_0 = arith.constant 0 : i32
    %c0_i32_1 = arith.constant 0 : i32
    return %c0_i32, %c0_i32_0 : i32, i32
  }
  func.func @transform_4(%arg0: i32) -> (i32, i32) {
    %c0_i32 = arith.constant 0 : i32
    %c0_i32_0 = arith.constant 0 : i32
    %c0_i32_1 = arith.constant 0 : i32
    return %c0_i32, %c0_i32_0 : i32, i32
  }
  func.func @transform_5(%arg0: i32) -> (i32, i32) {
    %c0_i32 = arith.constant 0 : i32
    %c0_i32_0 = arith.constant 0 : i32
    %c0_i32_1 = arith.constant 0 : i32
    return %c0_i32, %c0_i32_0 : i32, i32
  }
  func.func @transform_6(%arg0: i32) -> (i32, i32) {
    %c0_i32 = arith.constant 0 : i32
    %c0_i32_0 = arith.constant 0 : i32
    %c0_i32_1 = arith.constant 0 : i32
    return %c0_i32, %c0_i32_0 : i32, i32
  }
  func.func @transform_7(%arg0: i32) -> (i32, i32) {
    %c0_i32 = arith.constant 0 : i32
    %c0_i32_0 = arith.constant 0 : i32
    %c0_i32_1 = arith.constant 0 : i32
    return %c0_i32, %c0_i32_0 : i32, i32
  }
  func.func @transform_8(%arg0: i32) -> (i32, i32) {
    %c0_i32 = arith.constant 0 : i32
    %c0_i32_0 = arith.constant 0 : i32
    %c0_i32_1 = arith.constant 0 : i32
    return %c0_i32, %c0_i32_0 : i32, i32
  }
}

</mosaic_0001>

<llo_original>
// kernel: pointgcn_forward.5
$region0: #{pointgcn_forward.5}
  #allocation0 [shape = 'u32[]', space=smem, size = 0x4, offset = 0x4, fixed_abs, tag = 'smem constant byte address 0x4 - core index']
  #allocation1 [shape = 'u32[144,128]{1,0:T(1,128)}', space=vmem, size = 0x12000, scoped, tag = 'internal scratch']
  %s0 = inlined_call_operand.vmem [shape: f32[64,8], index: 0, kind: input, shape index: {}]
  %s1 = inlined_call_operand.vmem [shape: f32[8,32], index: 1, kind: input, shape index: {}]
  %s2 = inlined_call_operand.vmem [shape: f32[1,32], index: 2, kind: input, shape index: {}]
  %s3 = inlined_call_operand.vmem [shape: f32[32,32], index: 3, kind: input, shape index: {}]
  %s4 = inlined_call_operand.vmem [shape: f32[1,32], index: 4, kind: input, shape index: {}]
  %s5 = inlined_call_operand.vmem [shape: f32[32,16], index: 5, kind: input, shape index: {}]
  %s6 = inlined_call_operand.vmem [shape: f32[1,16], index: 6, kind: input, shape index: {}]
  %s7 = inlined_call_operand.vmem [shape: f32[64,16], index: 7, kind: output, shape index: {}]
  %s8 = sld [smem:[#allocation0]]
  $region61: #{pointgcn_forward.5} parent=0
    _
  %s10 = ssub.s32 1, %s8
  %s11 = scalar_select 0, %s10, %s8
  loop: start=0, step=1, limit=4
  $region2: #{pointgcn_forward.5} parent=0 // loop_pre_header
    _
  $region3: #{pointgcn_forward.5} parent=0 // loop_header
    %s13 = sphi 0, %s17
    %p14 = scmp.ge.s32.totalorder %s13, 4
    %s23 = sphi 0, %s25
    %s26 = sphi 0, %s23
    %s27 = sphi 0, %s26
    %s43 = sphi 0, %s27
    %s47 = sphi 0, %s47
    %s49 = sphi 0, %s47
    %s50 = sphi 0, %s49
    %s64 = sphi 0, %s50
    %s68 = sphi 0, %s68
    %s70 = sphi 0, %s68
    %s71 = sphi 0, %s70
    %s85 = sphi 0, %s71
    %s89 = sphi 0, %s89
    %s91 = sphi 0, %s89
    %s92 = sphi 0, %s91
    %s106 = sphi 0, %s92
    %s110 = sphi 0, %s110
    %s112 = sphi 0, %s110
    %s113 = sphi 0, %s112
    %s127 = sphi 0, %s113
    %s131 = sphi 0, %s131
    %s133 = sphi 0, %s131
    %s134 = sphi 0, %s133
    %s148 = sphi 0, %s134
    %s152 = sphi 0, %s152
    %s154 = sphi 0, %s152
    %s155 = sphi 0, %s154
    %s169 = sphi 0, %s155
    %s175 = sphi 0, %s177
    %s178 = sphi 0, %s175
    %s179 = sphi 0, %s178
    %s195 = sphi 0, %s179
  $region4: #{pointgcn_forward.5} parent=0 // loop_header_branch
    %16 = sbr.rel (%p14) target = $region8
  $region5: #{pointgcn_forward.5} parent=0 // loop_body
    %s18 = ssub.s32 %s13, 1
    %s19 = ssub.s32 %s13, 2
    %s20 = sadd.s32 %s13, 1
    %s21 = ssub.s32 %s13, %s20
    %p22 = scmp.eq.s32.totalorder %s21, 0
    %s24 = sadd.s32 %s23, 1
    %s25 = scalar_select %p22, %s23, %s24
    %p28 = pneg %p22
    %p29 = scmp.eq.s32.totalorder %s13, 1
    %p30 = por %p28, %p29
    %p31 = scmp.ne.s32.totalorder %s23, %s26
    %p32 = scmp.eq.s32.totalorder %s13, 0
    %p33 = por %p31, %p32
    %p34 = scmp.ne.s32.totalorder %s23, %s26
    %p35 = scmp.eq.s32.totalorder %s18, 1
    %p36 = por %p34, %p35
    %p37 = scmp.ne.s32.totalorder %s26, %s27
    %p38 = scmp.eq.s32.totalorder %s18, 0
    %p39 = por %p37, %p38
    %p40 = scmp.ne.s32.totalorder %s26, %s27
    %p41 = scmp.eq.s32.totalorder %s19, 1
    %p42 = por %p40, %p41
    %p44 = scmp.ne.s32.totalorder %s27, %s43
    %p45 = scmp.eq.s32.totalorder %s19, 0
    %p46 = por %p44, %p45
    %s48 = sadd.s32 %s47, 1
    %p51 = scmp.eq.s32.totalorder %s13, 1
    %p52 = scmp.ne.s32.totalorder %s47, %s49
    %p53 = scmp.eq.s32.totalorder %s13, 0
    %p54 = por %p52, %p53
    %p55 = scmp.ne.s32.totalorder %s47, %s49
    %p56 = scmp.eq.s32.totalorder %s18, 1
    %p57 = por %p55, %p56
    %p58 = scmp.ne.s32.totalorder %s49, %s50
    %p59 = scmp.eq.s32.totalorder %s18, 0
    %p60 = por %p58, %p59
    %p61 = scmp.ne.s32.totalorder %s49, %s50
    %p62 = scmp.eq.s32.totalorder %s19, 1
    %p63 = por %p61, %p62
    %p65 = scmp.ne.s32.totalorder %s50, %s64
    %p66 = scmp.eq.s32.totalorder %s19, 0
    %p67 = por %p65, %p66
    %s69 = sadd.s32 %s68, 1
    %p72 = scmp.eq.s32.totalorder %s13, 1
    %p73 = scmp.ne.s32.totalorder %s68, %s70
    %p74 = scmp.eq.s32.totalorder %s13, 0
    %p75 = por %p73, %p74
    %p76 = scmp.ne.s32.totalorder %s68, %s70
    %p77 = scmp.eq.s32.totalorder %s18, 1
    %p78 = por %p76, %p77
    %p79 = scmp.ne.s32.totalorder %s70, %s71
    %p80 = scmp.eq.s32.totalorder %s18, 0
    %p81 = por %p79, %p80
    %p82 = scmp.ne.s32.totalorder %s70, %s71
    %p83 = scmp.eq.s32.totalorder %s19, 1
    %p84 = por %p82, %p83
    %p86 = scmp.ne.s32.totalorder %s71, %s85
    %p87 = scmp.eq.s32.totalorder %s19, 0
    %p88 = por %p86, %p87
    %s90 = sadd.s32 %s89, 1
    %p93 = scmp.eq.s32.totalorder %s13, 1
    %p94 = scmp.ne.s32.totalorder %s89, %s91
    %p95 = scmp.eq.s32.totalorder %s13, 0
    %p96 = por %p94, %p95
    %p97 = scmp.ne.s32.totalorder %s89, %s91
    %p98 = scmp.eq.s32.totalorder %s18, 1
    %p99 = por %p97, %p98
    %p100 = scmp.ne.s32.totalorder %s91, %s92
    %p101 = scmp.eq.s32.totalorder %s18, 0
    %p102 = por %p100, %p101
    %p103 = scmp.ne.s32.totalorder %s91, %s92
    %p104 = scmp.eq.s32.totalorder %s19, 1
    %p105 = por %p103, %p104
    %p107 = scmp.ne.s32.totalorder %s92, %s106
    %p108 = scmp.eq.s32.totalorder %s19, 0
    %p109 = por %p107, %p108
    %s111 = sadd.s32 %s110, 1
    %p114 = scmp.eq.s32.totalorder %s13, 1
    %p115 = scmp.ne.s32.totalorder %s110, %s112
    %p116 = scmp.eq.s32.totalorder %s13, 0
    %p117 = por %p115, %p116
    %p118 = scmp.ne.s32.totalorder %s110, %s112
    %p119 = scmp.eq.s32.totalorder %s18, 1
    %p120 = por %p118, %p119
    %p121 = scmp.ne.s32.totalorder %s112, %s113
    %p122 = scmp.eq.s32.totalorder %s18, 0
    %p123 = por %p121, %p122
    %p124 = scmp.ne.s32.totalorder %s112, %s113
    %p125 = scmp.eq.s32.totalorder %s19, 1
    %p126 = por %p124, %p125
    %p128 = scmp.ne.s32.totalorder %s113, %s127
    %p129 = scmp.eq.s32.totalorder %s19, 0
    %p130 = por %p128, %p129
    %s132 = sadd.s32 %s131, 1
    %p135 = scmp.eq.s32.totalorder %s13, 1
    %p136 = scmp.ne.s32.totalorder %s131, %s133
    %p137 = scmp.eq.s32.totalorder %s13, 0
    %p138 = por %p136, %p137
    %p139 = scmp.ne.s32.totalorder %s131, %s133
    %p140 = scmp.eq.s32.totalorder %s18, 1
    %p141 = por %p139, %p140
    %p142 = scmp.ne.s32.totalorder %s133, %s134
    %p143 = scmp.eq.s32.totalorder %s18, 0
    %p144 = por %p142, %p143
    %p145 = scmp.ne.s32.totalorder %s133, %s134
    %p146 = scmp.eq.s32.totalorder %s19, 1
    %p147 = por %p145, %p146
    %p149 = scmp.ne.s32.totalorder %s134, %s148
    %p150 = scmp.eq.s32.totalorder %s19, 0
    %p151 = por %p149, %p150
    %s153 = sadd.s32 %s152, 1
    %p156 = scmp.eq.s32.totalorder %s13, 1
    %p157 = scmp.ne.s32.totalorder %s152, %s154
    %p158 = scmp.eq.s32.totalorder %s13, 0
    %p159 = por %p157, %p158
    %p160 = scmp.ne.s32.totalorder %s152, %s154
    %p161 = scmp.eq.s32.totalorder %s18, 1
    %p162 = por %p160, %p161
    %p163 = scmp.ne.s32.totalorder %s154, %s155
    %p164 = scmp.eq.s32.totalorder %s18, 0
    %p165 = por %p163, %p164
    %p166 = scmp.ne.s32.totalorder %s154, %s155
    %p167 = scmp.eq.s32.totalorder %s19, 1
    %p168 = por %p166, %p167
    %p170 = scmp.ne.s32.totalorder %s155, %s169
    %p171 = scmp.eq.s32.totalorder %s19, 0
    %p172 = por %p170, %p171
    %s173 = ssub.s32 %s13, %s20
    %p174 = scmp.eq.s32.totalorder %s173, 0
    %s176 = sadd.s32 %s175, 1
    %s177 = scalar_select %p174, %s175, %s176
    %p180 = pneg %p174
    %p181 = scmp.eq.s32.totalorder %s13, 1
    %p182 = por %p180, %p181
    %p183 = scmp.ne.s32.totalorder %s175, %s178
    %p184 = scmp.eq.s32.totalorder %s13, 0
    %p185 = por %p183, %p184
    %p186 = scmp.ne.s32.totalorder %s175, %s178
    %p187 = scmp.eq.s32.totalorder %s18, 1
    %p188 = por %p186, %p187
    %p189 = scmp.ne.s32.totalorder %s178, %s179
    %p190 = scmp.eq.s32.totalorder %s18, 0
    %p191 = por %p189, %p190
    %p192 = scmp.ne.s32.totalorder %s178, %s179
    %p193 = scmp.eq.s32.totalorder %s19, 1
    %p194 = por %p192, %p193
    %p196 = scmp.ne.s32.totalorder %s179, %s195
    %p197 = scmp.eq.s32.totalorder %s19, 0
    %p198 = por %p196, %p197
    %p199 = scmp.le.s32.totalorder 1, %s13
    %p200 = scmp.lt.s32.totalorder %s13, 3
    %p201 = pnand %p199, %p200
    %p202 = pneg %p201
    // Predicated region
    $region9: #{pointgcn_forward.5} parent=5 // pred_check
      _
    $region10: #{pointgcn_forward.5} parent=5 // pred_check_branch
      %204 = sbr.rel (%p201) target = $region12
    $region11: #{pointgcn_forward.5} parent=5 // pred_region
      %s205 = ssub.s32 %s13, 1
      // Predicated region
      $region13: #{pointgcn_forward.5} parent=11 // pred_check
        %p206 = pneg %p60
      $region14: #{pointgcn_forward.5} parent=11 // pred_check_branch
        %208 = sbr.rel (%p206) target = $region16
      $region15: #{pointgcn_forward.5} parent=11 // pred_region
        _
      $region16: #{pointgcn_forward.5} parent=11 // pred_fallthru
        _
      // Predicated region
      $region17: #{pointgcn_forward.5} parent=11 // pred_check
        %p209 = pneg %p81
      $region18: #{pointgcn_forward.5} parent=11 // pred_check_branch
        %211 = sbr.rel (%p209) target = $region20
      $region19: #{pointgcn_forward.5} parent=11 // pred_region
        _
      $region20: #{pointgcn_forward.5} parent=11 // pred_fallthru
        _
      // Predicated region
      $region21: #{pointgcn_forward.5} parent=11 // pred_check
        %p212 = pneg %p102
      $region22: #{pointgcn_forward.5} parent=11 // pred_check_branch
        %214 = sbr.rel (%p212) target = $region24
      $region23: #{pointgcn_forward.5} parent=11 // pred_region
        _
      $region24: #{pointgcn_forward.5} parent=11 // pred_fallthru
        _
      // Predicated region
      $region25: #{pointgcn_forward.5} parent=11 // pred_check
        %p215 = pneg %p123
      $region26: #{pointgcn_forward.5} parent=11 // pred_check_branch
        %217 = sbr.rel (%p215) target = $region28
      $region27: #{pointgcn_forward.5} parent=11 // pred_region
        _
      $region28: #{pointgcn_forward.5} parent=11 // pred_fallthru
        _
      // Predicated region
      $region29: #{pointgcn_forward.5} parent=11 // pred_check
        %p218 = pneg %p144
      $region30: #{pointgcn_forward.5} parent=11 // pred_check_branch
        %220 = sbr.rel (%p218) target = $region32
      $region31: #{pointgcn_forward.5} parent=11 // pred_region
        _
      $region32: #{pointgcn_forward.5} parent=11 // pred_fallthru
        _
      // Predicated region
      $region33: #{pointgcn_forward.5} parent=11 // pred_check
        %p221 = pneg %p165
      $region34: #{pointgcn_forward.5} parent=11 // pred_check_branch
        %223 = sbr.rel (%p221) target = $region36
      $region35: #{pointgcn_forward.5} parent=11 // pred_region
        _
      $region36: #{pointgcn_forward.5} parent=11 // pred_fallthru
        _
    $region12: #{pointgcn_forward.5} parent=5 // pred_fallthru
      _
    %p224 = scmp.lt.s32.totalorder %s13, 2
    // Predicated region
    $region37: #{pointgcn_forward.5} parent=5 // pred_check
      %p225 = pneg %p224
    $region38: #{pointgcn_forward.5} parent=5 // pred_check_branch
      %227 = sbr.rel (%p225) target = $region40
    $region39: #{pointgcn_forward.5} parent=5 // pred_region
      // Predicated region
      $region41: #{pointgcn_forward.5} parent=39 // pred_check
        %p228 = pneg %p33
      $region42: #{pointgcn_forward.5} parent=39 // pred_check_branch
        %230 = sbr.rel (%p228) target = $region44
      $region43: #{pointgcn_forward.5} parent=39 // pred_region
        %s231 = smul.u32 4, %s13
        %p232 = scmp.lt.s32.totalorder %s231, 7
        %s233 = scalar_select %p232, %s231, 7
        %s234 = smul.addr %s233, 8
        %s235 = scalar_lea.vmem %s0, %s234
        %s236 = smul.u32 4, %s13
      $region44: #{pointgcn_forward.5} parent=39 // pred_fallthru
        _
    $region40: #{pointgcn_forward.5} parent=5 // pred_fallthru
      _
    %p237 = scmp.le.s32.totalorder 1, %s13
    %p238 = scmp.lt.s32.totalorder %s13, 3
    %p239 = pnand %p237, %p238
    %p240 = pneg %p239
    // Predicated region
    $region45: #{pointgcn_forward.5} parent=5 // pred_check
      _
    $region46: #{pointgcn_forward.5} parent=5 // pred_check_branch
      %242 = sbr.rel (%p239) target = $region48
    $region47: #{pointgcn_forward.5} parent=5 // pred_region
      %s243 = ssub.s32 %s13, 1
      %s244 = smul.u32 4, %s18
      %p245 = scmp.lt.s32.totalorder %s244, 7
      %s246 = scalar_select %p245, %s244, 7
      %s247 = smul.addr %s246, 8
      %s248 = scalar_lea.vmem %s0, %s247
      %p249 = pneg %p39
      %p250 = pneg %p36
      %p251 = pneg %p60
      %p252 = pneg %p57
      %p253 = pneg %p81
      %p254 = pneg %p78
      %p255 = pneg %p102
      %p256 = pneg %p99
      %p257 = pneg %p123
      %p258 = pneg %p120
      %p259 = pneg %p144
      %p260 = pneg %p141
      %p261 = pneg %p165
      %p262 = pneg %p162
      %p263 = pneg %p191
      %p264 = pneg %p188
      %s265 = smul.u32 4, %s18
      %p266 = scmp.lt.s32.totalorder %s265, 7
      %s267 = scalar_select %p266, %s265, 7
      %s268 = smul.addr %s267, 8
      %s269 = scalar_lea.vmem %s7, %s268
      %s270 = smul.u32 4, %s18
      %p271 = scmp.lt.s32.totalorder %s270, 7
      %s272 = scalar_select %p271, %s270, 7
      %s273 = smul.addr %s272, 8
      %s274 = scalar_lea.vmem %s0, %s273
      %s275 = smul.u32 4, %s18
      %s276 = smul.u32 4, %s18
      %p277 = scmp.lt.s32.totalorder %s276, 7
      %s278 = scalar_select %p277, %s276, 7
      %s279 = smul.addr %s278, 8
      %s280 = scalar_lea.vmem %s7, %s279
      %s281 = smul.u32 4, %s18
      %v282 = vld [vmem:[%s274] sm:$0xff]
      %v283 = vld [vmem:[%s274 + $0x8] sm:$0xff]
      %v284 = vld [vmem:[%s274 + $0x10] sm:$0xff]
      %v285 = vld [vmem:[%s274 + $0x18] sm:$0xff]
      %v286 = vld [vmem:[%s1] sm:$0xff]
      %v287 = vld [vmem:[%s2] sm:$0x1]
      %v289 = vlaneseq
      %v290 = vshrl.u32 %v289, 7
      %v291 = vsub.s32 0, %v290
      %v292 = vrot.slane %v287, %v291
      %vm294 = vcmask 64512
      %v296 = vsel %vm294, %v282, 0
      %v299 = vsel %vm294, %v283, 0
      %v302 = vsel %vm294, %v284, 0
      %v305 = vsel %vm294, %v285, 0
      %307 = vmatprep.subr.mxu0 0.0
      %308 = vmatpush1.msra.mxu0 %v286
      %309 = vmatprep.subr.mxu0 0.0
      %310 = vmatpush1.msra.mxu0 0.0
      %311 = vmatprep.subr.mxu0 0.0
      %312 = vmatpush1.msra.mxu0 0.0
      %313 = vmatprep.subr.mxu0 0.0
      %314 = vmatpush1.msra.mxu0 0.0
      %315 = vmatprep.subr.mxu0 0.0
      %316 = vmatpush1.msra.mxu0 0.0
      %317 = vmatprep.subr.mxu0 0.0
      %318 = vmatpush1.msra.mxu0 0.0
      %319 = vmatprep.subr.mxu0 0.0
      %320 = vmatpush1.msra.mxu0 0.0
      %321 = vmatprep.subr.mxu0 0.0
      %322 = vmatpush1.msra.mxu0 0.0
      %323 = vmatprep.subr.mxu0 0.0
      %324 = vmatpush1.msra.mxu0 0.0
      %325 = vmatprep.subr.mxu0 0.0
      %326 = vmatpush1.msra.mxu0 0.0
      %327 = vmatprep.subr.mxu0 0.0
      %328 = vmatpush1.msra.mxu0 0.0
      %329 = vmatprep.subr.mxu0 0.0
      %330 = vmatpush1.msra.mxu0 0.0
      %331 = vmatprep.subr.mxu0 0.0
      %332 = vmatpush1.msra.mxu0 0.0
      %333 = vmatprep.subr.mxu0 0.0
      %334 = vmatpush1.msra.mxu0 0.0
      %335 = vmatprep.subr.mxu0 0.0
      %336 = vmatpush1.msra.mxu0 0.0
      %337 = vmatprep.subr.mxu0 0.0
      %338 = vmatpush1.msra.mxu0 0.0
      %339 = vmatprep.subr.mxu0 0.0
      %340 = vmatpush1.msra.mxu0 0.0
      %341 = vmatprep.subr.mxu0 0.0
      %342 = vmatpush1.msra.mxu0 0.0
      %343 = vmatprep.subr.mxu0 0.0
      %344 = vmatpush1.msra.mxu0 0.0
      %345 = vmatprep.subr.mxu0 0.0
      %346 = vmatpush1.msra.mxu0 0.0
      %347 = vmatprep.subr.mxu0 0.0
      %348 = vmatpush1.msra.mxu0 0.0
      %349 = vmatprep.subr.mxu0 0.0
      %350 = vmatpush1.msra.mxu0 0.0
      %351 = vmatprep.subr.mxu0 0.0
      %352 = vmatpush1.msra.mxu0 0.0
      %353 = vmatprep.subr.mxu0 0.0
      %354 = vmatpush1.msra.mxu0 0.0
      %355 = vmatprep.subr.mxu0 0.0
      %356 = vmatpush1.msra.mxu0 0.0
      %357 = vmatprep.subr.mxu0 0.0
      %358 = vmatpush1.msra.mxu0 0.0
      %359 = vmatprep.subr.mxu0 0.0
      %360 = vmatpush1.msra.mxu0 0.0
      %361 = vmatprep.subr.mxu0 0.0
      %362 = vmatpush1.msra.mxu0 0.0
      %363 = vmatprep.subr.mxu0 0.0
      %364 = vmatpush1.msra.mxu0 0.0
      %365 = vmatprep.subr.mxu0 0.0
      %366 = vmatpush1.msra.mxu0 0.0
      %367 = vmatprep.subr.mxu0 0.0
      %368 = vmatpush1.msra.mxu0 0.0
      %369 = vmatprep.subr.mxu0 0.0
      %370 = vmatpush1.msra.mxu0 0.0
      %371 = vmatprep.mubr.f32.mxu0 0.0
      %372 = vmatmul.mubr.f32.gmra.mrb[0].mxu0 %v296
      %v373 = vpop.f32.mrb[0].mxu0
      %v374 = vadd.f32 %v292, %v373
      %v375 = vpop.f32.mrb[0].mxu0
      %376 = vmatprep.mubr.f32.mxu0 0.0
      %377 = vmatmul.mubr.f32.gmra.mrb[0].mxu0 %v299
      %v378 = vpop.f32.mrb[0].mxu0
      %v379 = vadd.f32 %v292, %v378
      %v380 = vpop.f32.mrb[0].mxu0
      %381 = vmatprep.mubr.f32.mxu0 0.0
      %382 = vmatmul.mubr.f32.gmra.mrb[0].mxu0 %v302
      %v383 = vpop.f32.mrb[0].mxu0
      %v384 = vadd.f32 %v292, %v383
      %v385 = vpop.f32.mrb[0].mxu0
      %386 = vmatprep.mubr.f32.mxu0 0.0
      %387 = vmatmul.mubr.f32.gmra.mrb[0].mxu0 %v305
      %v388 = vpop.f32.mrb[0].mxu0
      %v389 = vadd.f32 %v292, %v388
      %v390 = vpop.f32.mrb[0].mxu0
      %391 = vdwg.mxu0
      %v392 = vmul.f32 %v374, 0.5
      %v393 = vmul.f32 %v379, 0.5
      %v394 = vmul.f32 %v384, 0.5
      %v395 = vmul.f32 %v389, 0.5
      %v396 = vmul.f32 %v374, 0.044715
      %v397 = vmul.f32 %v379, 0.044715
      %v398 = vmul.f32 %v384, 0.044715
      %v399 = vmul.f32 %v389, 0.044715
      %v400 = vmul.f32 %v396, %v374
      %v401 = vmul.f32 %v397, %v379
      %v402 = vmul.f32 %v398, %v384
      %v403 = vmul.f32 %v399, %v389
      %v404 = vmul.f32 %v400, %v374
      %v405 = vmul.f32 %v401, %v379
      %v406 = vmul.f32 %v402, %v384
      %v407 = vmul.f32 %v403, %v389
      %v408 = vadd.f32 %v374, %v404
      %v409 = vadd.f32 %v379, %v405
      %v410 = vadd.f32 %v384, %v406
      %v411 = vadd.f32 %v389, %v407
      %v412 = vmul.f32 %v408, 0.7978846
      %v413 = vmul.f32 %v409, 0.7978846
      %v414 = vmul.f32 %v410, 0.7978846
      %v415 = vmul.f32 %v411, 0.7978846
      %v416 = vtanh.pop %v412
      %v417 = vtanh.pop %v413
      %v418 = vtanh.pop %v414
      %v419 = vtanh.pop %v415
      %v420 = vadd.f32 %v416, 1.0
      %v421 = vadd.f32 %v417, 1.0
      %v422 = vadd.f32 %v418, 1.0
      %v423 = vadd.f32 %v419, 1.0
      %v424 = vmul.f32 %v392, %v420
      %v425 = vmul.f32 %v393, %v421
      %v426 = vmul.f32 %v394, %v422
      %v427 = vmul.f32 %v395, %v423
      %v428 = vld [vmem:[%s3] sm:$0xff]
      %v429 = vld [vmem:[%s3 + $0x8] sm:$0xff]
      %v430 = vld [vmem:[%s3 + $0x10] sm:$0xff]
      %v431 = vld [vmem:[%s3 + $0x18] sm:$0xff]
      %v432 = vld [vmem:[%s4] sm:$0x1]
      %v434 = vlaneseq
      %v435 = vshrl.u32 %v434, 7
      %v436 = vsub.s32 0, %v435
      %v437 = vrot.slane %v432, %v436
      %vm439 = vcmask 261120
      %v441 = vsel %vm439, %v424, 0
      %v444 = vsel %vm439, %v425, 0
      %v447 = vsel %vm439, %v426, 0
      %v450 = vsel %vm439, %v427, 0
      %452 = vmatprep.subr.mxu0 0.0
      %453 = vmatpush1.msra.mxu0 %v428
      %454 = vmatprep.subr.mxu0 0.0
      %455 = vmatpush1.msra.mxu0 %v429
      %456 = vmatprep.subr.mxu0 0.0
      %457 = vmatpush1.msra.mxu0 %v430
      %458 = vmatprep.subr.mxu0 0.0
      %459 = vmatpush1.msra.mxu0 %v431
      %460 = vmatprep.subr.mxu0 0.0
      %461 = vmatpush1.msra.mxu0 0.0
      %462 = vmatprep.subr.mxu0 0.0
      %463 = vmatpush1.msra.mxu0 0.0
      %464 = vmatprep.subr.mxu0 0.0
      %465 = vmatpush1.msra.mxu0 0.0
      %466 = vmatprep.subr.mxu0 0.0
      %467 = vmatpush1.msra.mxu0 0.0
      %468 = vmatprep.subr.mxu0 0.0
      %469 = vmatpush1.msra.mxu0 0.0
      %470 = vmatprep.subr.mxu0 0.0
      %471 = vmatpush1.msra.mxu0 0.0
      %472 = vmatprep.subr.mxu0 0.0
      %473 = vmatpush1.msra.mxu0 0.0
      %474 = vmatprep.subr.mxu0 0.0
      %475 = vmatpush1.msra.mxu0 0.0
      %476 = vmatprep.subr.mxu0 0.0
      %477 = vmatpush1.msra.mxu0 0.0
      %478 = vmatprep.subr.mxu0 0.0
      %479 = vmatpush1.msra.mxu0 0.0
      %480 = vmatprep.subr.mxu0 0.0
      %481 = vmatpush1.msra.mxu0 0.0
      %482 = vmatprep.subr.mxu0 0.0
      %483 = vmatpush1.msra.mxu0 0.0
      %484 = vmatprep.subr.mxu0 0.0
      %485 = vmatpush1.msra.mxu0 0.0
      %486 = vmatprep.subr.mxu0 0.0
      %487 = vmatpush1.msra.mxu0 0.0
      %488 = vmatprep.subr.mxu0 0.0
      %489 = vmatpush1.msra.mxu0 0.0
      %490 = vmatprep.subr.mxu0 0.0
      %491 = vmatpush1.msra.mxu0 0.0
      %492 = vmatprep.subr.mxu0 0.0
      %493 = vmatpush1.msra.mxu0 0.0
      %494 = vmatprep.subr.mxu0 0.0
      %495 = vmatpush1.msra.mxu0 0.0
      %496 = vmatprep.subr.mxu0 0.0
      %497 = vmatpush1.msra.mxu0 0.0
      %498 = vmatprep.subr.mxu0 0.0
      %499 = vmatpush1.msra.mxu0 0.0
      %500 = vmatprep.subr.mxu0 0.0
      %501 = vmatpush1.msra.mxu0 0.0
      %502 = vmatprep.subr.mxu0 0.0
      %503 = vmatpush1.msra.mxu0 0.0
      %504 = vmatprep.subr.mxu0 0.0
      %505 = vmatpush1.msra.mxu0 0.0
      %506 = vmatprep.subr.mxu0 0.0
      %507 = vmatpush1.msra.mxu0 0.0
      %508 = vmatprep.subr.mxu0 0.0
      %509 = vmatpush1.msra.mxu0 0.0
      %510 = vmatprep.subr.mxu0 0.0
      %511 = vmatpush1.msra.mxu0 0.0
      %512 = vmatprep.subr.mxu0 0.0
      %513 = vmatpush1.msra.mxu0 0.0
      %514 = vmatprep.subr.mxu0 0.0
      %515 = vmatpush1.msra.mxu0 0.0
      %516 = vmatprep.mubr.f32.mxu0 0.0
      %517 = vmatmul.mubr.f32.gmra.mrb[0].mxu0 %v441
      %v518 = vpop.f32.mrb[0].mxu0
      %v519 = vadd.f32 %v437, %v518
      %v520 = vpop.f32.mrb[0].mxu0
      %521 = vmatprep.mubr.f32.mxu0 0.0
      %522 = vmatmul.mubr.f32.gmra.mrb[0].mxu0 %v444
      %v523 = vpop.f32.mrb[0].mxu0
      %v524 = vadd.f32 %v437, %v523
      %v525 = vpop.f32.mrb[0].mxu0
      %526 = vmatprep.mubr.f32.mxu0 0.0
      %527 = vmatmul.mubr.f32.gmra.mrb[0].mxu0 %v447
      %v528 = vpop.f32.mrb[0].mxu0
      %v529 = vadd.f32 %v437, %v528
      %v530 = vpop.f32.mrb[0].mxu0
      %531 = vmatprep.mubr.f32.mxu0 0.0
      %532 = vmatmul.mubr.f32.gmra.mrb[0].mxu0 %v450
      %v533 = vpop.f32.mrb[0].mxu0
      %v534 = vadd.f32 %v437, %v533
      %v535 = vpop.f32.mrb[0].mxu0
      %536 = vdwg.mxu0
      %v537 = vmul.f32 %v519, 0.5
      %v538 = vmul.f32 %v524, 0.5
      %v539 = vmul.f32 %v529, 0.5
      %v540 = vmul.f32 %v534, 0.5
      %v541 = vmul.f32 %v519, 0.044715
      %v542 = vmul.f32 %v524, 0.044715
      %v543 = vmul.f32 %v529, 0.044715
      %v544 = vmul.f32 %v534, 0.044715
      %v545 = vmul.f32 %v541, %v519
      %v546 = vmul.f32 %v542, %v524
      %v547 = vmul.f32 %v543, %v529
      %v548 = vmul.f32 %v544, %v534
      %v549 = vmul.f32 %v545, %v519
      %v550 = vmul.f32 %v546, %v524
      %v551 = vmul.f32 %v547, %v529
      %v552 = vmul.f32 %v548, %v534
      %v553 = vadd.f32 %v519, %v549
      %v554 = vadd.f32 %v524, %v550
      %v555 = vadd.f32 %v529, %v551
      %v556 = vadd.f32 %v534, %v552
      %v557 = vmul.f32 %v553, 0.7978846
      %v558 = vmul.f32 %v554, 0.7978846
      %v559 = vmul.f32 %v555, 0.7978846
      %v560 = vmul.f32 %v556, 0.7978846
      %v561 = vtanh.pop %v557
      %v562 = vtanh.pop %v558
      %v563 = vtanh.pop %v559
      %v564 = vtanh.pop %v560
      %v565 = vadd.f32 %v561, 1.0
      %v566 = vadd.f32 %v562, 1.0
      %v567 = vadd.f32 %v563, 1.0
      %v568 = vadd.f32 %v564, 1.0
      %v569 = vmul.f32 %v537, %v565
      %v570 = vmul.f32 %v538, %v566
      %v571 = vmul.f32 %v539, %v567
      %v572 = vmul.f32 %v540, %v568
      %v573 = vld [vmem:[%s5] sm:$0xff]
      %v574 = vld [vmem:[%s5 + $0x8] sm:$0xff]
      %v575 = vld [vmem:[%s5 + $0x10] sm:$0xff]
      %v576 = vld [vmem:[%s5 + $0x18] sm:$0xff]
      %v577 = vld [vmem:[%s6] sm:$0x1]
      %v579 = vlaneseq
      %v580 = vshrl.u32 %v579, 7
      %v581 = vsub.s32 0, %v580
      %v582 = vrot.slane %v577, %v581
      %v585 = vsel %vm439, %v569, 0
      %v588 = vsel %vm439, %v570, 0
      %v591 = vsel %vm439, %v571, 0
      %v594 = vsel %vm439, %v572, 0
      %596 = vmatprep.subr.mxu0 0.0
      %597 = vmatpush1.msra.mxu0 %v573
      %598 = vmatprep.subr.mxu0 0.0
      %599 = vmatpush1.msra.mxu0 %v574
      %600 = vmatprep.subr.mxu0 0.0
      %601 = vmatpush1.msra.mxu0 %v575
      %602 = vmatprep.subr.mxu0 0.0
      %603 = vmatpush1.msra.mxu0 %v576
      %604 = vmatprep.subr.mxu0 0.0
      %605 = vmatpush1.msra.mxu0 0.0
      %606 = vmatprep.subr.mxu0 0.0
      %607 = vmatpush1.msra.mxu0 0.0
      %608 = vmatprep.subr.mxu0 0.0
      %609 = vmatpush1.msra.mxu0 0.0
      %610 = vmatprep.subr.mxu0 0.0
      %611 = vmatpush1.msra.mxu0 0.0
      %612 = vmatprep.subr.mxu0 0.0
      %613 = vmatpush1.msra.mxu0 0.0
      %614 = vmatprep.subr.mxu0 0.0
      %615 = vmatpush1.msra.mxu0 0.0
      %616 = vmatprep.subr.mxu0 0.0
      %617 = vmatpush1.msra.mxu0 0.0
      %618 = vmatprep.subr.mxu0 0.0
      %619 = vmatpush1.msra.mxu0 0.0
      %620 = vmatprep.subr.mxu0 0.0
      %621 = vmatpush1.msra.mxu0 0.0
      %622 = vmatprep.subr.mxu0 0.0
      %623 = vmatpush1.msra.mxu0 0.0
      %624 = vmatprep.subr.mxu0 0.0
      %625 = vmatpush1.msra.mxu0 0.0
      %626 = vmatprep.subr.mxu0 0.0
      %627 = vmatpush1.msra.mxu0 0.0
      %628 = vmatprep.subr.mxu0 0.0
      %629 = vmatpush1.msra.mxu0 0.0
      %630 = vmatprep.subr.mxu0 0.0
      %631 = vmatpush1.msra.mxu0 0.0
      %632 = vmatprep.subr.mxu0 0.0
      %633 = vmatpush1.msra.mxu0 0.0
      %634 = vmatprep.subr.mxu0 0.0
      %635 = vmatpush1.msra.mxu0 0.0
      %636 = vmatprep.subr.mxu0 0.0
      %637 = vmatpush1.msra.mxu0 0.0
      %638 = vmatprep.subr.mxu0 0.0
      %639 = vmatpush1.msra.mxu0 0.0
      %640 = vmatprep.subr.mxu0 0.0
      %641 = vmatpush1.msra.mxu0 0.0
      %642 = vmatprep.subr.mxu0 0.0
      %643 = vmatpush1.msra.mxu0 0.0
      %644 = vmatprep.subr.mxu0 0.0
      %645 = vmatpush1.msra.mxu0 0.0
      %646 = vmatprep.subr.mxu0 0.0
      %647 = vmatpush1.msra.mxu0 0.0
      %648 = vmatprep.subr.mxu0 0.0
      %649 = vmatpush1.msra.mxu0 0.0
      %650 = vmatprep.subr.mxu0 0.0
      %651 = vmatpush1.msra.mxu0 0.0
      %652 = vmatprep.subr.mxu0 0.0
      %653 = vmatpush1.msra.mxu0 0.0
      %654 = vmatprep.subr.mxu0 0.0
      %655 = vmatpush1.msra.mxu0 0.0
      %656 = vmatprep.subr.mxu0 0.0
      %657 = vmatpush1.msra.mxu0 0.0
      %658 = vmatprep.subr.mxu0 0.0
      %659 = vmatpush1.msra.mxu0 0.0
      %660 = vmatprep.mubr.f32.mxu0 0.0
      %661 = vmatmul.mubr.f32.gmra.mrb[0].mxu0 %v585
      %v662 = vpop.f32.mrb[0].mxu0
      %v663 = vadd.f32 %v582, %v662
      %v664 = vpop.f32.mrb[0].mxu0
      %665 = vmatprep.mubr.f32.mxu0 0.0
      %666 = vmatmul.mubr.f32.gmra.mrb[0].mxu0 %v588
      %v667 = vpop.f32.mrb[0].mxu0
      %v668 = vadd.f32 %v582, %v667
      %v669 = vpop.f32.mrb[0].mxu0
      %670 = vmatprep.mubr.f32.mxu0 0.0
      %671 = vmatmul.mubr.f32.gmra.mrb[0].mxu0 %v591
      %v672 = vpop.f32.mrb[0].mxu0
      %v673 = vadd.f32 %v582, %v672
      %v674 = vpop.f32.mrb[0].mxu0
      %675 = vmatprep.mubr.f32.mxu0 0.0
      %676 = vmatmul.mubr.f32.gmra.mrb[0].mxu0 %v594
      %v677 = vpop.f32.mrb[0].mxu0
      %v678 = vadd.f32 %v582, %v677
      %v679 = vpop.f32.mrb[0].mxu0
      %680 = vdwg.mxu0
      %vm681 = vcmask 130048
      %682 = vst.msk [vmem:[%s280] sm:$0xff] %vm681, %v663
      %683 = vst.msk [vmem:[%s280 + $0x8] sm:$0xff] %vm681, %v668
      %684 = vst.msk [vmem:[%s280 + $0x10] sm:$0xff] %vm681, %v673
      %685 = vst.msk [vmem:[%s280 + $0x18] sm:$0xff] %vm681, %v678
      %s686 = smul.u32 4, %s18
      %p687 = scmp.lt.s32.totalorder %s686, 7
      %s688 = scalar_select %p687, %s686, 7
      %s689 = smul.addr %s688, 8
      %s690 = scalar_lea.vmem %s7, %s689
      // Predicated region
      $region49: #{pointgcn_forward.5} parent=47 // pred_check
        %p691 = pneg %p188
      $region50: #{pointgcn_forward.5} parent=47 // pred_check_branch
        %693 = sbr.rel (%p691) target = $region52
      $region51: #{pointgcn_forward.5} parent=47 // pred_region
        %s694 = smul.u32 4, %s18
      $region52: #{pointgcn_forward.5} parent=47 // pred_fallthru
        _
    $region48: #{pointgcn_forward.5} parent=5 // pred_fallthru
      _
    %p695 = scmp.le.s32.totalorder 2, %s13
    // Predicated region
    $region53: #{pointgcn_forward.5} parent=5 // pred_check
      %p696 = pneg %p695
    $region54: #{pointgcn_forward.5} parent=5 // pred_check_branch
      %698 = sbr.rel (%p696) target = $region56
    $region55: #{pointgcn_forward.5} parent=5 // pred_region
      %s699 = ssub.s32 %s13, 2
      // Predicated region
      $region57: #{pointgcn_forward.5} parent=55 // pred_check
        %p700 = pneg %p194
      $region58: #{pointgcn_forward.5} parent=55 // pred_check_branch
        %702 = sbr.rel (%p700) target = $region60
      $region59: #{pointgcn_forward.5} parent=55 // pred_region
        %s703 = smul.u32 4, %s19
        %p704 = scmp.lt.s32.totalorder %s703, 7
        %s705 = scalar_select %p704, %s703, 7
        %s706 = smul.addr %s705, 8
        %s707 = scalar_lea.vmem %s7, %s706
      $region60: #{pointgcn_forward.5} parent=55 // pred_fallthru
        _
    $region56: #{pointgcn_forward.5} parent=5 // pred_fallthru
      _
  $region6: #{pointgcn_forward.5} parent=0 // loop_footer
    %s17 = sadd.s32 1, %s13
  $region7: #{pointgcn_forward.5} parent=0 // loop_footer_branch
    %12 = sbr.rel target = $region3
  $region8: #{pointgcn_forward.5} parent=0 // loop_exit
    _

// kernel: pointgcn_forward.9
$region0: #{pointgcn_forward.9}
  #allocation0 [shape = 'u32[]', space=smem, size = 0x4, offset = 0x4, fixed_abs, tag = 'smem constant byte address 0x4 - core index']
  #allocation1 [shape = 'u32[144,128]{1,0:T(1,128)}', space=vmem, size = 0x12000, scoped, tag = 'internal scratch']
  %s0 = inlined_call_operand.vmem [shape: f32[64,32], index: 0, kind: input, shape index: {}]
  %s1 = inlined_call_operand.vmem [shape: s32[1,64], index: 1, kind: input, shape index: {}]
  %s2 = inlined_call_operand.vmem [shape: f32[32,64], index: 2, kind: input, shape index: {}]
  %s3 = inlined_call_operand.vmem [shape: f32[1,64], index: 3, kind: input, shape index: {}]
  %s4 = inlined_call_operand.vmem [shape: f32[64,32], index: 4, kind: input, shape index: {}]
  %s5 = inlined_call_operand.vmem [shape: f32[1,32], index: 5, kind: input, shape index: {}]
  %s6 = inlined_call_operand.vmem [shape: f32[32,128], index: 6, kind: input, shape index: {}]
  %s7 = inlined_call_operand.vmem [shape: f32[1,128], index: 7, kind: input, shape index: {}]
  %s8 = inlined_call_operand.vmem [shape: f32[8,128], index: 8, kind: output, shape index: {}]
  %s9 = sld [smem:[#allocation0]]
  $region42: #{pointgcn_forward.9} parent=0
    _
  %s11 = ssub.s32 1, %s9
  %s12 = scalar_select 0, %s11, %s9
  // Predicated region
  $region2: #{pointgcn_forward.9} parent=0 // pred_check
    _
  $region3: #{pointgcn_forward.9} parent=0 // pred_check_branch
    %14 = sbr.rel (0) target = $region5
  $region4: #{pointgcn_forward.9} parent=0 // pred_region
    _
  $region5: #{pointgcn_forward.9} parent=0 // pred_fallthru
    _
  // Predicated region
  $region6: #{pointgcn_forward.9} parent=0 // pred_check
    _
  $region7: #{pointgcn_forward.9} parent=0 // pred_check_branch
    %16 = sbr.rel (0) target = $region9
  $region8: #{pointgcn_forward.9} parent=0 // pred_region
    _
  $region9: #{pointgcn_forward.9} parent=0 // pred_fallthru
    _
  // Predicated region
  $region10: #{pointgcn_forward.9} parent=0 // pred_check
    _
  $region11: #{pointgcn_forward.9} parent=0 // pred_check_branch
    %18 = sbr.rel (0) target = $region13
  $region12: #{pointgcn_forward.9} parent=0 // pred_region
    _
  $region13: #{pointgcn_forward.9} parent=0 // pred_fallthru
    _
  // Predicated region
  $region14: #{pointgcn_forward.9} parent=0 // pred_check
    _
  $region15: #{pointgcn_forward.9} parent=0 // pred_check_branch
    %20 = sbr.rel (0) target = $region17
  $region16: #{pointgcn_forward.9} parent=0 // pred_region
    _
  $region17: #{pointgcn_forward.9} parent=0 // pred_fallthru
    _
  // Predicated region
  $region18: #{pointgcn_forward.9} parent=0 // pred_check
    _
  $region19: #{pointgcn_forward.9} parent=0 // pred_check_branch
    %22 = sbr.rel (0) target = $region21
  $region20: #{pointgcn_forward.9} parent=0 // pred_region
    _
  $region21: #{pointgcn_forward.9} parent=0 // pred_fallthru
    _
  // Predicated region
  $region22: #{pointgcn_forward.9} parent=0 // pred_check
    _
  $region23: #{pointgcn_forward.9} parent=0 // pred_check_branch
    %24 = sbr.rel (0) target = $region25
  $region24: #{pointgcn_forward.9} parent=0 // pred_region
    _
  $region25: #{pointgcn_forward.9} parent=0 // pred_fallthru
    _
  // Predicated region
  $region26: #{pointgcn_forward.9} parent=0 // pred_check
    _
  $region27: #{pointgcn_forward.9} parent=0 // pred_check_branch
    %26 = sbr.rel (0) target = $region29
  $region28: #{pointgcn_forward.9} parent=0 // pred_region
    _
  $region29: #{pointgcn_forward.9} parent=0 // pred_fallthru
    _
  // Predicated region
  $region30: #{pointgcn_forward.9} parent=0 // pred_check
    _
  $region31: #{pointgcn_forward.9} parent=0 // pred_check_branch
    %28 = sbr.rel (0) target = $region33
  $region32: #{pointgcn_forward.9} parent=0 // pred_region
    _
  $region33: #{pointgcn_forward.9} parent=0 // pred_fallthru
    _
  %v29 = vlaneseq
  %v30 = vshrl.u32 %v29, 7
  %v31 = vld [vmem:[%s1] sm:$0x1]
  %v32 = vlaneseq
  %v33 = vshrl.u32 %v32, 7
  %v34 = vsub.s32 0, %v33
  %v35 = vrot.slane %v31, %v34
  %vm36 = vcmp.eq.s32.totalorder %v30, %v35
  %v37 = vsel %vm36, 1, 0
  %v38 = vcvt.s32.f32 %v37
  %v39 = vld [vmem:[%s0] sm:$0xff]
  %v40 = vld [vmem:[%s0 + $0x8] sm:$0xff]
  %v41 = vld [vmem:[%s0 + $0x10] sm:$0xff]
  %v42 = vld [vmem:[%s0 + $0x18] sm:$0xff]
  %v43 = vld [vmem:[%s0 + $0x20] sm:$0xff]
  %v44 = vld [vmem:[%s0 + $0x28] sm:$0xff]
  %v45 = vld [vmem:[%s0 + $0x30] sm:$0xff]
  %v46 = vld [vmem:[%s0 + $0x38] sm:$0xff]
  %vm47 = vcmask 523264
  %v49 = vsel %vm47, %v38, 0
  %51 = vmatprep.subr.mxu0 0.0
  %52 = vmatpush1.msra.mxu0 %v39
  %53 = vmatprep.subr.mxu0 0.0
  %54 = vmatpush1.msra.mxu0 %v40
  %55 = vmatprep.subr.mxu0 0.0
  %56 = vmatpush1.msra.mxu0 %v41
  %57 = vmatprep.subr.mxu0 0.0
  %58 = vmatpush1.msra.mxu0 %v42
  %59 = vmatprep.subr.mxu0 0.0
  %60 = vmatpush1.msra.mxu0 %v43
  %61 = vmatprep.subr.mxu0 0.0
  %62 = vmatpush1.msra.mxu0 %v44
  %63 = vmatprep.subr.mxu0 0.0
  %64 = vmatpush1.msra.mxu0 %v45
  %65 = vmatprep.subr.mxu0 0.0
  %66 = vmatpush1.msra.mxu0 %v46
  %67 = vmatprep.subr.mxu0 0.0
  %68 = vmatpush1.msra.mxu0 0.0
  %69 = vmatprep.subr.mxu0 0.0
  %70 = vmatpush1.msra.mxu0 0.0
  %71 = vmatprep.subr.mxu0 0.0
  %72 = vmatpush1.msra.mxu0 0.0
  %73 = vmatprep.subr.mxu0 0.0
  %74 = vmatpush1.msra.mxu0 0.0
  %75 = vmatprep.subr.mxu0 0.0
  %76 = vmatpush1.msra.mxu0 0.0
  %77 = vmatprep.subr.mxu0 0.0
  %78 = vmatpush1.msra.mxu0 0.0
  %79 = vmatprep.subr.mxu0 0.0
  %80 = vmatpush1.msra.mxu0 0.0
  %81 = vmatprep.subr.mxu0 0.0
  %82 = vmatpush1.msra.mxu0 0.0
  %83 = vmatprep.subr.mxu0 0.0
  %84 = vmatpush1.msra.mxu0 0.0
  %85 = vmatprep.subr.mxu0 0.0
  %86 = vmatpush1.msra.mxu0 0.0
  %87 = vmatprep.subr.mxu0 0.0
  %88 = vmatpush1.msra.mxu0 0.0
  %89 = vmatprep.subr.mxu0 0.0
  %90 = vmatpush1.msra.mxu0 0.0
  %91 = vmatprep.subr.mxu0 0.0
  %92 = vmatpush1.msra.mxu0 0.0
  %93 = vmatprep.subr.mxu0 0.0
  %94 = vmatpush1.msra.mxu0 0.0
  %95 = vmatprep.subr.mxu0 0.0
  %96 = vmatpush1.msra.mxu0 0.0
  %97 = vmatprep.subr.mxu0 0.0
  %98 = vmatpush1.msra.mxu0 0.0
  %99 = vmatprep.subr.mxu0 0.0
  %100 = vmatpush1.msra.mxu0 0.0
  %101 = vmatprep.subr.mxu0 0.0
  %102 = vmatpush1.msra.mxu0 0.0
  %103 = vmatprep.subr.mxu0 0.0
  %104 = vmatpush1.msra.mxu0 0.0
  %105 = vmatprep.subr.mxu0 0.0
  %106 = vmatpush1.msra.mxu0 0.0
  %107 = vmatprep.subr.mxu0 0.0
  %108 = vmatpush1.msra.mxu0 0.0
  %109 = vmatprep.subr.mxu0 0.0
  %110 = vmatpush1.msra.mxu0 0.0
  %111 = vmatprep.subr.mxu0 0.0
  %112 = vmatpush1.msra.mxu0 0.0
  %113 = vmatprep.subr.mxu0 0.0
  %114 = vmatpush1.msra.mxu0 0.0
  %115 = vmatprep.mubr.f32.mxu0 0.0
  %116 = vmatmul.mubr.f32.gmra.mrb[0].mxu0 %v49
  %v117 = vpop.f32.mrb[0].mxu0
  %v118 = vadd.f32 0.0, %v117
  %v119 = vpop.f32.mrb[0].mxu0
  %120 = vdwg.mxu0
  %v121 = vld [vmem:[%s2] sm:$0xff]
  %v122 = vld [vmem:[%s2 + $0x8] sm:$0xff]
  %v123 = vld [vmem:[%s2 + $0x10] sm:$0xff]
  %v124 = vld [vmem:[%s2 + $0x18] sm:$0xff]
  %v125 = vld [vmem:[%s3] sm:$0x1]
  %v127 = vlaneseq
  %v128 = vshrl.u32 %v127, 7
  %v129 = vsub.s32 0, %v128
  %v130 = vrot.slane %v125, %v129
  %vm132 = vcmask 261120
  %v134 = vsel %vm132, %v118, 0
  %136 = vmatprep.subr.mxu0 0.0
  %137 = vmatpush1.msra.mxu0 %v121
  %138 = vmatprep.subr.mxu0 0.0
  %139 = vmatpush1.msra.mxu0 %v122
  %140 = vmatprep.subr.mxu0 0.0
  %141 = vmatpush1.msra.mxu0 %v123
  %142 = vmatprep.subr.mxu0 0.0
  %143 = vmatpush1.msra.mxu0 %v124
  %144 = vmatprep.subr.mxu0 0.0
  %145 = vmatpush1.msra.mxu0 0.0
  %146 = vmatprep.subr.mxu0 0.0
  %147 = vmatpush1.msra.mxu0 0.0
  %148 = vmatprep.subr.mxu0 0.0
  %149 = vmatpush1.msra.mxu0 0.0
  %150 = vmatprep.subr.mxu0 0.0
  %151 = vmatpush1.msra.mxu0 0.0
  %152 = vmatprep.subr.mxu0 0.0
  %153 = vmatpush1.msra.mxu0 0.0
  %154 = vmatprep.subr.mxu0 0.0
  %155 = vmatpush1.msra.mxu0 0.0
  %156 = vmatprep.subr.mxu0 0.0
  %157 = vmatpush1.msra.mxu0 0.0
  %158 = vmatprep.subr.mxu0 0.0
  %159 = vmatpush1.msra.mxu0 0.0
  %160 = vmatprep.subr.mxu0 0.0
  %161 = vmatpush1.msra.mxu0 0.0
  %162 = vmatprep.subr.mxu0 0.0
  %163 = vmatpush1.msra.mxu0 0.0
  %164 = vmatprep.subr.mxu0 0.0
  %165 = vmatpush1.msra.mxu0 0.0
  %166 = vmatprep.subr.mxu0 0.0
  %167 = vmatpush1.msra.mxu0 0.0
  %168 = vmatprep.subr.mxu0 0.0
  %169 = vmatpush1.msra.mxu0 0.0
  %170 = vmatprep.subr.mxu0 0.0
  %171 = vmatpush1.msra.mxu0 0.0
  %172 = vmatprep.subr.mxu0 0.0
  %173 = vmatpush1.msra.mxu0 0.0
  %174 = vmatprep.subr.mxu0 0.0
  %175 = vmatpush1.msra.mxu0 0.0
  %176 = vmatprep.subr.mxu0 0.0
  %177 = vmatpush1.msra.mxu0 0.0
  %178 = vmatprep.subr.mxu0 0.0
  %179 = vmatpush1.msra.mxu0 0.0
  %180 = vmatprep.subr.mxu0 0.0
  %181 = vmatpush1.msra.mxu0 0.0
  %182 = vmatprep.subr.mxu0 0.0
  %183 = vmatpush1.msra.mxu0 0.0
  %184 = vmatprep.subr.mxu0 0.0
  %185 = vmatpush1.msra.mxu0 0.0
  %186 = vmatprep.subr.mxu0 0.0
  %187 = vmatpush1.msra.mxu0 0.0
  %188 = vmatprep.subr.mxu0 0.0
  %189 = vmatpush1.msra.mxu0 0.0
  %190 = vmatprep.subr.mxu0 0.0
  %191 = vmatpush1.msra.mxu0 0.0
  %192 = vmatprep.subr.mxu0 0.0
  %193 = vmatpush1.msra.mxu0 0.0
  %194 = vmatprep.subr.mxu0 0.0
  %195 = vmatpush1.msra.mxu0 0.0
  %196 = vmatprep.subr.mxu0 0.0
  %197 = vmatpush1.msra.mxu0 0.0
  %198 = vmatprep.subr.mxu0 0.0
  %199 = vmatpush1.msra.mxu0 0.0
  %200 = vmatprep.mubr.f32.mxu0 0.0
  %201 = vmatmul.mubr.f32.gmra.mrb[0].mxu0 %v134
  %v202 = vpop.f32.mrb[0].mxu0
  %v203 = vadd.f32 %v130, %v202
  %v204 = vpop.f32.mrb[0].mxu0
  %205 = vdwg.mxu0
  %v206 = vmul.f32 %v203, 0.5
  %v207 = vmul.f32 %v203, 0.044715
  %v208 = vmul.f32 %v207, %v203
  %v209 = vmul.f32 %v208, %v203
  %v210 = vadd.f32 %v203, %v209
  %v211 = vmul.f32 %v210, 0.7978846
  %v212 = vtanh.pop %v211
  %v213 = vadd.f32 %v212, 1.0
  %v214 = vmul.f32 %v206, %v213
  %v215 = vld [vmem:[%s4] sm:$0xff]
  %v216 = vld [vmem:[%s4 + $0x8] sm:$0xff]
  %v217 = vld [vmem:[%s4 + $0x10] sm:$0xff]
  %v218 = vld [vmem:[%s4 + $0x18] sm:$0xff]
  %v219 = vld [vmem:[%s4 + $0x20] sm:$0xff]
  %v220 = vld [vmem:[%s4 + $0x28] sm:$0xff]
  %v221 = vld [vmem:[%s4 + $0x30] sm:$0xff]
  %v222 = vld [vmem:[%s4 + $0x38] sm:$0xff]
  %v223 = vld [vmem:[%s5] sm:$0x1]
  %v225 = vlaneseq
  %v226 = vshrl.u32 %v225, 7
  %v227 = vsub.s32 0, %v226
  %v228 = vrot.slane %v223, %v227
  %v231 = vsel %vm47, %v214, 0
  %233 = vmatprep.subr.mxu0 0.0
  %234 = vmatpush1.msra.mxu0 %v215
  %235 = vmatprep.subr.mxu0 0.0
  %236 = vmatpush1.msra.mxu0 %v216
  %237 = vmatprep.subr.mxu0 0.0
  %238 = vmatpush1.msra.mxu0 %v217
  %239 = vmatprep.subr.mxu0 0.0
  %240 = vmatpush1.msra.mxu0 %v218
  %241 = vmatprep.subr.mxu0 0.0
  %242 = vmatpush1.msra.mxu0 %v219
  %243 = vmatprep.subr.mxu0 0.0
  %244 = vmatpush1.msra.mxu0 %v220
  %245 = vmatprep.subr.mxu0 0.0
  %246 = vmatpush1.msra.mxu0 %v221
  %247 = vmatprep.subr.mxu0 0.0
  %248 = vmatpush1.msra.mxu0 %v222
  %249 = vmatprep.subr.mxu0 0.0
  %250 = vmatpush1.msra.mxu0 0.0
  %251 = vmatprep.subr.mxu0 0.0
  %252 = vmatpush1.msra.mxu0 0.0
  %253 = vmatprep.subr.mxu0 0.0
  %254 = vmatpush1.msra.mxu0 0.0
  %255 = vmatprep.subr.mxu0 0.0
  %256 = vmatpush1.msra.mxu0 0.0
  %257 = vmatprep.subr.mxu0 0.0
  %258 = vmatpush1.msra.mxu0 0.0
  %259 = vmatprep.subr.mxu0 0.0
  %260 = vmatpush1.msra.mxu0 0.0
  %261 = vmatprep.subr.mxu0 0.0
  %262 = vmatpush1.msra.mxu0 0.0
  %263 = vmatprep.subr.mxu0 0.0
  %264 = vmatpush1.msra.mxu0 0.0
  %265 = vmatprep.subr.mxu0 0.0
  %266 = vmatpush1.msra.mxu0 0.0
  %267 = vmatprep.subr.mxu0 0.0
  %268 = vmatpush1.msra.mxu0 0.0
  %269 = vmatprep.subr.mxu0 0.0
  %270 = vmatpush1.msra.mxu0 0.0
  %271 = vmatprep.subr.mxu0 0.0
  %272 = vmatpush1.msra.mxu0 0.0
  %273 = vmatprep.subr.mxu0 0.0
  %274 = vmatpush1.msra.mxu0 0.0
  %275 = vmatprep.subr.mxu0 0.0
  %276 = vmatpush1.msra.mxu0 0.0
  %277 = vmatprep.subr.mxu0 0.0
  %278 = vmatpush1.msra.mxu0 0.0
  %279 = vmatprep.subr.mxu0 0.0
  %280 = vmatpush1.msra.mxu0 0.0
  %281 = vmatprep.subr.mxu0 0.0
  %282 = vmatpush1.msra.mxu0 0.0
  %283 = vmatprep.subr.mxu0 0.0
  %284 = vmatpush1.msra.mxu0 0.0
  %285 = vmatprep.subr.mxu0 0.0
  %286 = vmatpush1.msra.mxu0 0.0
  %287 = vmatprep.subr.mxu0 0.0
  %288 = vmatpush1.msra.mxu0 0.0
  %289 = vmatprep.subr.mxu0 0.0
  %290 = vmatpush1.msra.mxu0 0.0
  %291 = vmatprep.subr.mxu0 0.0
  %292 = vmatpush1.msra.mxu0 0.0
  %293 = vmatprep.subr.mxu0 0.0
  %294 = vmatpush1.msra.mxu0 0.0
  %295 = vmatprep.subr.mxu0 0.0
  %296 = vmatpush1.msra.mxu0 0.0
  %297 = vmatprep.mubr.f32.mxu0 0.0
  %298 = vmatmul.mubr.f32.gmra.mrb[0].mxu0 %v231
  %v299 = vpop.f32.mrb[0].mxu0
  %v300 = vadd.f32 %v228, %v299
  %v301 = vpop.f32.mrb[0].mxu0
  %302 = vdwg.mxu0
  %v303 = vmul.f32 %v300, 0.5
  %v304 = vmul.f32 %v300, 0.044715
  %v305 = vmul.f32 %v304, %v300
  %v306 = vmul.f32 %v305, %v300
  %v307 = vadd.f32 %v300, %v306
  %v308 = vmul.f32 %v307, 0.7978846
  %v309 = vtanh.pop %v308
  %v310 = vadd.f32 %v309, 1.0
  %v311 = vmul.f32 %v303, %v310
  %v312 = vld [vmem:[%s6] sm:$0xff]
  %v313 = vld [vmem:[%s6 + $0x8] sm:$0xff]
  %v314 = vld [vmem:[%s6 + $0x10] sm:$0xff]
  %v315 = vld [vmem:[%s6 + $0x18] sm:$0xff]
  %v316 = vld [vmem:[%s7] sm:$0x1]
  %v318 = vlaneseq
  %v319 = vshrl.u32 %v318, 7
  %v320 = vsub.s32 0, %v319
  %v321 = vrot.slane %v316, %v320
  %v324 = vsel %vm132, %v311, 0
  %326 = vmatprep.subr.mxu0 0.0
  %327 = vmatpush1.msra.mxu0 %v312
  %328 = vmatprep.subr.mxu0 0.0
  %329 = vmatpush1.msra.mxu0 %v313
  %330 = vmatprep.subr.mxu0 0.0
  %331 = vmatpush1.msra.mxu0 %v314
  %332 = vmatprep.subr.mxu0 0.0
  %333 = vmatpush1.msra.mxu0 %v315
  %334 = vmatprep.subr.mxu0 0.0
  %335 = vmatpush1.msra.mxu0 0.0
  %336 = vmatprep.subr.mxu0 0.0
  %337 = vmatpush1.msra.mxu0 0.0
  %338 = vmatprep.subr.mxu0 0.0
  %339 = vmatpush1.msra.mxu0 0.0
  %340 = vmatprep.subr.mxu0 0.0
  %341 = vmatpush1.msra.mxu0 0.0
  %342 = vmatprep.subr.mxu0 0.0
  %343 = vmatpush1.msra.mxu0 0.0
  %344 = vmatprep.subr.mxu0 0.0
  %345 = vmatpush1.msra.mxu0 0.0
  %346 = vmatprep.subr.mxu0 0.0
  %347 = vmatpush1.msra.mxu0 0.0
  %348 = vmatprep.subr.mxu0 0.0
  %349 = vmatpush1.msra.mxu0 0.0
  %350 = vmatprep.subr.mxu0 0.0
  %351 = vmatpush1.msra.mxu0 0.0
  %352 = vmatprep.subr.mxu0 0.0
  %353 = vmatpush1.msra.mxu0 0.0
  %354 = vmatprep.subr.mxu0 0.0
  %355 = vmatpush1.msra.mxu0 0.0
  %356 = vmatprep.subr.mxu0 0.0
  %357 = vmatpush1.msra.mxu0 0.0
  %358 = vmatprep.subr.mxu0 0.0
  %359 = vmatpush1.msra.mxu0 0.0
  %360 = vmatprep.subr.mxu0 0.0
  %361 = vmatpush1.msra.mxu0 0.0
  %362 = vmatprep.subr.mxu0 0.0
  %363 = vmatpush1.msra.mxu0 0.0
  %364 = vmatprep.subr.mxu0 0.0
  %365 = vmatpush1.msra.mxu0 0.0
  %366 = vmatprep.subr.mxu0 0.0
  %367 = vmatpush1.msra.mxu0 0.0
  %368 = vmatprep.subr.mxu0 0.0
  %369 = vmatpush1.msra.mxu0 0.0
  %370 = vmatprep.subr.mxu0 0.0
  %371 = vmatpush1.msra.mxu0 0.0
  %372 = vmatprep.subr.mxu0 0.0
  %373 = vmatpush1.msra.mxu0 0.0
  %374 = vmatprep.subr.mxu0 0.0
  %375 = vmatpush1.msra.mxu0 0.0
  %376 = vmatprep.subr.mxu0 0.0
  %377 = vmatpush1.msra.mxu0 0.0
  %378 = vmatprep.subr.mxu0 0.0
  %379 = vmatpush1.msra.mxu0 0.0
  %380 = vmatprep.subr.mxu0 0.0
  %381 = vmatpush1.msra.mxu0 0.0
  %382 = vmatprep.subr.mxu0 0.0
  %383 = vmatpush1.msra.mxu0 0.0
  %384 = vmatprep.subr.mxu0 0.0
  %385 = vmatpush1.msra.mxu0 0.0
  %386 = vmatprep.subr.mxu0 0.0
  %387 = vmatpush1.msra.mxu0 0.0
  %388 = vmatprep.subr.mxu0 0.0
  %389 = vmatpush1.msra.mxu0 0.0
  %390 = vmatprep.mubr.f32.mxu0 0.0
  %391 = vmatmul.mubr.f32.gmra.mrb[0].mxu0 %v324
  %v392 = vpop.f32.mrb[0].mxu0
  %v393 = vadd.f32 %v321, %v392
  %v394 = vpop.f32.mrb[0].mxu0
  %395 = vdwg.mxu0
  %v396 = vsub.f32 0.0, %v393
  %v397 = vmul.f32 %v396, 1.442695
  %v398 = vpow.pop %v397
  %v399 = vadd.f32 %v398, 1.0
  %v400 = vrcp.pop %v399
  %401 = vst [vmem:[%s8] sm:$0xff] %v400
  // Predicated region
  $region34: #{pointgcn_forward.9} parent=0 // pred_check
    _
  $region35: #{pointgcn_forward.9} parent=0 // pred_check_branch
    %403 = sbr.rel (0) target = $region37
  $region36: #{pointgcn_forward.9} parent=0 // pred_region
    _
  $region37: #{pointgcn_forward.9} parent=0 // pred_fallthru
    _
  // Predicated region
  $region38: #{pointgcn_forward.9} parent=0 // pred_check
    _
  $region39: #{pointgcn_forward.9} parent=0 // pred_check_branch
    %405 = sbr.rel (0) target = $region41
  $region40: #{pointgcn_forward.9} parent=0 // pred_region
    _
  $region41: #{pointgcn_forward.9} parent=0 // pred_fallthru
    _

// kernel: pointgcn_forward.8
$region0: #{pointgcn_forward.8}
  #allocation0 [shape = 'u32[]', space=smem, size = 0x4, offset = 0x4, fixed_abs, tag = 'smem constant byte address 0x4 - core index']
  #allocation1 [shape = 'u32[144,128]{1,0:T(1,128)}', space=vmem, size = 0x12000, scoped, tag = 'internal scratch']
  #allocation2 [shape = 'f32[32,32]{1,0:T(8,128)}', space=vmem, size = 0x4000, scoped, tag = 'scratch operand']
  %s0 = inlined_call_operand.vmem [shape: s32[1,1024], index: 0, kind: input, shape index: {}]
  %s1 = inlined_call_operand.vmem [shape: bf16[1024,32], index: 1, kind: input, shape index: {}]
  %s2 = inlined_call_operand.vmem [shape: bf16[1024,8], index: 2, kind: input, shape index: {}]
  %s3 = inlined_call_operand.vmem [shape: bf16[32,64], index: 3, kind: input, shape index: {}]
  %s4 = inlined_call_operand.vmem [shape: bf16[8,64], index: 4, kind: input, shape index: {}]
  %s5 = inlined_call_operand.vmem [shape: f32[1,64], index: 5, kind: input, shape index: {}]
  %s6 = inlined_call_operand.vmem [shape: bf16[64,32], index: 6, kind: input, shape index: {}]
  %s7 = inlined_call_operand.vmem [shape: f32[1,32], index: 7, kind: input, shape index: {}]
  %s8 = inlined_call_operand.vmem [shape: bf16[32,64], index: 8, kind: input, shape index: {}]
  %s9 = inlined_call_operand.vmem [shape: f32[1,64], index: 9, kind: input, shape index: {}]
  %s10 = inlined_call_operand.vmem [shape: bf16[64,32], index: 10, kind: input, shape index: {}]
  %s11 = inlined_call_operand.vmem [shape: f32[1,32], index: 11, kind: input, shape index: {}]
  %s12 = inlined_call_operand.vmem [shape: f32[64,32], index: 12, kind: output, shape index: {}]
  %s13 = sld [smem:[#allocation0]]
  $region89: #{pointgcn_forward.8} parent=0
    _
  %s15 = ssub.s32 1, %s13
  %s16 = scalar_select 0, %s15, %s13
  loop: start=0, step=1, limit=10
  $region2: #{pointgcn_forward.8} parent=0 // loop_pre_header
    _
  $region3: #{pointgcn_forward.8} parent=0 // loop_header
    %s18 = sphi 0, %s22
    %p19 = scmp.ge.s32.totalorder %s18, 10
    %s25 = sphi 0, %s37
    %s26 = sphi 0, %s33
    %s27 = sphi 0, %s25
    %s28 = sphi 0, %s26
    %s29 = sphi 0, %s27
    %s30 = sphi 0, %s28
    %s40 = sphi 0, %s42
    %s43 = sphi 0, %s40
    %s44 = sphi 0, %s43
    %s60 = sphi 0, %s44
    %s66 = sphi 0, %s68
    %s69 = sphi 0, %s66
    %s70 = sphi 0, %s69
    %s86 = sphi 0, %s70
    %s92 = sphi 0, %s94
    %s95 = sphi 0, %s92
    %s96 = sphi 0, %s95
    %s112 = sphi 0, %s96
    %s116 = sphi 0, %s116
    %s118 = sphi 0, %s116
    %s119 = sphi 0, %s118
    %s133 = sphi 0, %s119
    %s137 = sphi 0, %s137
    %s139 = sphi 0, %s137
    %s140 = sphi 0, %s139
    %s154 = sphi 0, %s140
    %s158 = sphi 0, %s158
    %s160 = sphi 0, %s158
    %s161 = sphi 0, %s160
    %s175 = sphi 0, %s161
    %s179 = sphi 0, %s179
    %s181 = sphi 0, %s179
    %s182 = sphi 0, %s181
    %s196 = sphi 0, %s182
    %s200 = sphi 0, %s200
    %s202 = sphi 0, %s200
    %s203 = sphi 0, %s202
    %s217 = sphi 0, %s203
    %s221 = sphi 0, %s221
    %s223 = sphi 0, %s221
    %s224 = sphi 0, %s223
    %s238 = sphi 0, %s224
    %s242 = sphi 0, %s242
    %s244 = sphi 0, %s242
    %s245 = sphi 0, %s244
    %s259 = sphi 0, %s245
    %s263 = sphi 0, %s263
    %s265 = sphi 0, %s263
    %s266 = sphi 0, %s265
    %s280 = sphi 0, %s266
    %s284 = sphi 0, %s284
    %s286 = sphi 0, %s284
    %s287 = sphi 0, %s286
    %s301 = sphi 0, %s287
    %s307 = sphi 0, %s309
    %s310 = sphi 0, %s307
    %s311 = sphi 0, %s310
    %s327 = sphi 0, %s311
  $region4: #{pointgcn_forward.8} parent=0 // loop_header_branch
    %21 = sbr.rel (%p19) target = $region8
  $region5: #{pointgcn_forward.8} parent=0 // loop_body
    %s23 = ssub.s32 %s18, 1
    %s24 = ssub.s32 %s18, 2
    %s31 = sadd.s32 1, %s26
    %p32 = scmp.ge.s32.totalorder %s31, 4
    %s33 = scalar_select %p32, 0, %s31
    %s34 = sadd.s32 1, %s25
    %s35 = scalar_select %p32, %s34, %s25
    %p36 = scmp.ge.s32.totalorder %s35, 2
    %s37 = scalar_select %p36, 0, %s35
    %s38 = ssub.s32 %s26, %s33
    %p39 = scmp.eq.s32.totalorder %s38, 0
    %s41 = sadd.s32 %s40, 1
    %s42 = scalar_select %p39, %s40, %s41
    %p45 = pneg %p39
    %p46 = scmp.eq.s32.totalorder %s18, 7
    %p47 = por %p45, %p46
    %p48 = scmp.ne.s32.totalorder %s40, %s43
    %p49 = scmp.eq.s32.totalorder %s18, 0
    %p50 = por %p48, %p49
    %p51 = scmp.ne.s32.totalorder %s40, %s43
    %p52 = scmp.eq.s32.totalorder %s23, 7
    %p53 = por %p51, %p52
    %p54 = scmp.ne.s32.totalorder %s43, %s44
    %p55 = scmp.eq.s32.totalorder %s23, 0
    %p56 = por %p54, %p55
    %p57 = scmp.ne.s32.totalorder %s43, %s44
    %p58 = scmp.eq.s32.totalorder %s24, 7
    %p59 = por %p57, %p58
    %p61 = scmp.ne.s32.totalorder %s44, %s60
    %p62 = scmp.eq.s32.totalorder %s24, 0
    %p63 = por %p61, %p62
    %s64 = ssub.s32 %s26, %s33
    %p65 = scmp.eq.s32.totalorder %s64, 0
    %s67 = sadd.s32 %s66, 1
    %s68 = scalar_select %p65, %s66, %s67
    %p71 = pneg %p65
    %p72 = scmp.eq.s32.totalorder %s18, 7
    %p73 = por %p71, %p72
    %p74 = scmp.ne.s32.totalorder %s66, %s69
    %p75 = scmp.eq.s32.totalorder %s18, 0
    %p76 = por %p74, %p75
    %p77 = scmp.ne.s32.totalorder %s66, %s69
    %p78 = scmp.eq.s32.totalorder %s23, 7
    %p79 = por %p77, %p78
    %p80 = scmp.ne.s32.totalorder %s69, %s70
    %p81 = scmp.eq.s32.totalorder %s23, 0
    %p82 = por %p80, %p81
    %p83 = scmp.ne.s32.totalorder %s69, %s70
    %p84 = scmp.eq.s32.totalorder %s24, 7
    %p85 = por %p83, %p84
    %p87 = scmp.ne.s32.totalorder %s70, %s86
    %p88 = scmp.eq.s32.totalorder %s24, 0
    %p89 = por %p87, %p88
    %s90 = ssub.s32 %s26, %s33
    %p91 = scmp.eq.s32.totalorder %s90, 0
    %s93 = sadd.s32 %s92, 1
    %s94 = scalar_select %p91, %s92, %s93
    %p97 = pneg %p91
    %p98 = scmp.eq.s32.totalorder %s18, 7
    %p99 = por %p97, %p98
    %p100 = scmp.ne.s32.totalorder %s92, %s95
    %p101 = scmp.eq.s32.totalorder %s18, 0
    %p102 = por %p100, %p101
    %p103 = scmp.ne.s32.totalorder %s92, %s95
    %p104 = scmp.eq.s32.totalorder %s23, 7
    %p105 = por %p103, %p104
    %p106 = scmp.ne.s32.totalorder %s95, %s96
    %p107 = scmp.eq.s32.totalorder %s23, 0
    %p108 = por %p106, %p107
    %p109 = scmp.ne.s32.totalorder %s95, %s96
    %p110 = scmp.eq.s32.totalorder %s24, 7
    %p111 = por %p109, %p110
    %p113 = scmp.ne.s32.totalorder %s96, %s112
    %p114 = scmp.eq.s32.totalorder %s24, 0
    %p115 = por %p113, %p114
    %s117 = sadd.s32 %s116, 1
    %p120 = scmp.eq.s32.totalorder %s18, 7
    %p121 = scmp.ne.s32.totalorder %s116, %s118
    %p122 = scmp.eq.s32.totalorder %s18, 0
    %p123 = por %p121, %p122
    %p124 = scmp.ne.s32.totalorder %s116, %s118
    %p125 = scmp.eq.s32.totalorder %s23, 7
    %p126 = por %p124, %p125
    %p127 = scmp.ne.s32.totalorder %s118, %s119
    %p128 = scmp.eq.s32.totalorder %s23, 0
    %p129 = por %p127, %p128
    %p130 = scmp.ne.s32.totalorder %s118, %s119
    %p131 = scmp.eq.s32.totalorder %s24, 7
    %p132 = por %p130, %p131
    %p134 = scmp.ne.s32.totalorder %s119, %s133
    %p135 = scmp.eq.s32.totalorder %s24, 0
    %p136 = por %p134, %p135
    %s138 = sadd.s32 %s137, 1
    %p141 = scmp.eq.s32.totalorder %s18, 7
    %p142 = scmp.ne.s32.totalorder %s137, %s139
    %p143 = scmp.eq.s32.totalorder %s18, 0
    %p144 = por %p142, %p143
    %p145 = scmp.ne.s32.totalorder %s137, %s139
    %p146 = scmp.eq.s32.totalorder %s23, 7
    %p147 = por %p145, %p146
    %p148 = scmp.ne.s32.totalorder %s139, %s140
    %p149 = scmp.eq.s32.totalorder %s23, 0
    %p150 = por %p148, %p149
    %p151 = scmp.ne.s32.totalorder %s139, %s140
    %p152 = scmp.eq.s32.totalorder %s24, 7
    %p153 = por %p151, %p152
    %p155 = scmp.ne.s32.totalorder %s140, %s154
    %p156 = scmp.eq.s32.totalorder %s24, 0
    %p157 = por %p155, %p156
    %s159 = sadd.s32 %s158, 1
    %p162 = scmp.eq.s32.totalorder %s18, 7
    %p163 = scmp.ne.s32.totalorder %s158, %s160
    %p164 = scmp.eq.s32.totalorder %s18, 0
    %p165 = por %p163, %p164
    %p166 = scmp.ne.s32.totalorder %s158, %s160
    %p167 = scmp.eq.s32.totalorder %s23, 7
    %p168 = por %p166, %p167
    %p169 = scmp.ne.s32.totalorder %s160, %s161
    %p170 = scmp.eq.s32.totalorder %s23, 0
    %p171 = por %p169, %p170
    %p172 = scmp.ne.s32.totalorder %s160, %s161
    %p173 = scmp.eq.s32.totalorder %s24, 7
    %p174 = por %p172, %p173
    %p176 = scmp.ne.s32.totalorder %s161, %s175
    %p177 = scmp.eq.s32.totalorder %s24, 0
    %p178 = por %p176, %p177
    %s180 = sadd.s32 %s179, 1
    %p183 = scmp.eq.s32.totalorder %s18, 7
    %p184 = scmp.ne.s32.totalorder %s179, %s181
    %p185 = scmp.eq.s32.totalorder %s18, 0
    %p186 = por %p184, %p185
    %p187 = scmp.ne.s32.totalorder %s179, %s181
    %p188 = scmp.eq.s32.totalorder %s23, 7
    %p189 = por %p187, %p188
    %p190 = scmp.ne.s32.totalorder %s181, %s182
    %p191 = scmp.eq.s32.totalorder %s23, 0
    %p192 = por %p190, %p191
    %p193 = scmp.ne.s32.totalorder %s181, %s182
    %p194 = scmp.eq.s32.totalorder %s24, 7
    %p195 = por %p193, %p194
    %p197 = scmp.ne.s32.totalorder %s182, %s196
    %p198 = scmp.eq.s32.totalorder %s24, 0
    %p199 = por %p197, %p198
    %s201 = sadd.s32 %s200, 1
    %p204 = scmp.eq.s32.totalorder %s18, 7
    %p205 = scmp.ne.s32.totalorder %s200, %s202
    %p206 = scmp.eq.s32.totalorder %s18, 0
    %p207 = por %p205, %p206
    %p208 = scmp.ne.s32.totalorder %s200, %s202
    %p209 = scmp.eq.s32.totalorder %s23, 7
    %p210 = por %p208, %p209
    %p211 = scmp.ne.s32.totalorder %s202, %s203
    %p212 = scmp.eq.s32.totalorder %s23, 0
    %p213 = por %p211, %p212
    %p214 = scmp.ne.s32.totalorder %s202, %s203
    %p215 = scmp.eq.s32.totalorder %s24, 7
    %p216 = por %p214, %p215
    %p218 = scmp.ne.s32.totalorder %s203, %s217
    %p219 = scmp.eq.s32.totalorder %s24, 0
    %p220 = por %p218, %p219
    %s222 = sadd.s32 %s221, 1
    %p225 = scmp.eq.s32.totalorder %s18, 7
    %p226 = scmp.ne.s32.totalorder %s221, %s223
    %p227 = scmp.eq.s32.totalorder %s18, 0
    %p228 = por %p226, %p227
    %p229 = scmp.ne.s32.totalorder %s221, %s223
    %p230 = scmp.eq.s32.totalorder %s23, 7
    %p231 = por %p229, %p230
    %p232 = scmp.ne.s32.totalorder %s223, %s224
    %p233 = scmp.eq.s32.totalorder %s23, 0
    %p234 = por %p232, %p233
    %p235 = scmp.ne.s32.totalorder %s223, %s224
    %p236 = scmp.eq.s32.totalorder %s24, 7
    %p237 = por %p235, %p236
    %p239 = scmp.ne.s32.totalorder %s224, %s238
    %p240 = scmp.eq.s32.totalorder %s24, 0
    %p241 = por %p239, %p240
    %s243 = sadd.s32 %s242, 1
    %p246 = scmp.eq.s32.totalorder %s18, 7
    %p247 = scmp.ne.s32.totalorder %s242, %s244
    %p248 = scmp.eq.s32.totalorder %s18, 0
    %p249 = por %p247, %p248
    %p250 = scmp.ne.s32.totalorder %s242, %s244
    %p251 = scmp.eq.s32.totalorder %s23, 7
    %p252 = por %p250, %p251
    %p253 = scmp.ne.s32.totalorder %s244, %s245
    %p254 = scmp.eq.s32.totalorder %s23, 0
    %p255 = por %p253, %p254
    %p256 = scmp.ne.s32.totalorder %s244, %s245
    %p257 = scmp.eq.s32.totalorder %s24, 7
    %p258 = por %p256, %p257
    %p260 = scmp.ne.s32.totalorder %s245, %s259
    %p261 = scmp.eq.s32.totalorder %s24, 0
    %p262 = por %p260, %p261
    %s264 = sadd.s32 %s263, 1
    %p267 = scmp.eq.s32.totalorder %s18, 7
    %p268 = scmp.ne.s32.totalorder %s263, %s265
    %p269 = scmp.eq.s32.totalorder %s18, 0
    %p270 = por %p268, %p269
    %p271 = scmp.ne.s32.totalorder %s263, %s265
    %p272 = scmp.eq.s32.totalorder %s23, 7
    %p273 = por %p271, %p272
    %p274 = scmp.ne.s32.totalorder %s265, %s266
    %p275 = scmp.eq.s32.totalorder %s23, 0
    %p276 = por %p274, %p275
    %p277 = scmp.ne.s32.totalorder %s265, %s266
    %p278 = scmp.eq.s32.totalorder %s24, 7
    %p279 = por %p277, %p278
    %p281 = scmp.ne.s32.totalorder %s266, %s280
    %p282 = scmp.eq.s32.totalorder %s24, 0
    %p283 = por %p281, %p282
    %s285 = sadd.s32 %s284, 1
    %p288 = scmp.eq.s32.totalorder %s18, 7
    %p289 = scmp.ne.s32.totalorder %s284, %s286
    %p290 = scmp.eq.s32.totalorder %s18, 0
    %p291 = por %p289, %p290
    %p292 = scmp.ne.s32.totalorder %s284, %s286
    %p293 = scmp.eq.s32.totalorder %s23, 7
    %p294 = por %p292, %p293
    %p295 = scmp.ne.s32.totalorder %s286, %s287
    %p296 = scmp.eq.s32.totalorder %s23, 0
    %p297 = por %p295, %p296
    %p298 = scmp.ne.s32.totalorder %s286, %s287
    %p299 = scmp.eq.s32.totalorder %s24, 7
    %p300 = por %p298, %p299
    %p302 = scmp.ne.s32.totalorder %s287, %s301
    %p303 = scmp.eq.s32.totalorder %s24, 0
    %p304 = por %p302, %p303
    %s305 = ssub.s32 %s25, %s37
    %p306 = scmp.eq.s32.totalorder %s305, 0
    %s308 = sadd.s32 %s307, 1
    %s309 = scalar_select %p306, %s307, %s308
    %p312 = pneg %p306
    %p313 = scmp.eq.s32.totalorder %s18, 7
    %p314 = por %p312, %p313
    %p315 = scmp.ne.s32.totalorder %s307, %s310
    %p316 = scmp.eq.s32.totalorder %s18, 0
    %p317 = por %p315, %p316
    %p318 = scmp.ne.s32.totalorder %s307, %s310
    %p319 = scmp.eq.s32.totalorder %s23, 7
    %p320 = por %p318, %p319
    %p321 = scmp.ne.s32.totalorder %s310, %s311
    %p322 = scmp.eq.s32.totalorder %s23, 0
    %p323 = por %p321, %p322
    %p324 = scmp.ne.s32.totalorder %s310, %s311
    %p325 = scmp.eq.s32.totalorder %s24, 7
    %p326 = por %p324, %p325
    %p328 = scmp.ne.s32.totalorder %s311, %s327
    %p329 = scmp.eq.s32.totalorder %s24, 0
    %p330 = por %p328, %p329
    %p331 = scmp.le.s32.totalorder 1, %s18
    %p332 = scmp.lt.s32.totalorder %s18, 9
    %p333 = pnand %p331, %p332
    %p334 = pneg %p333
    // Predicated region
    $region9: #{pointgcn_forward.8} parent=5 // pred_check
      _
    $region10: #{pointgcn_forward.8} parent=5 // pred_check_branch
      %336 = sbr.rel (%p333) target = $region12
    $region11: #{pointgcn_forward.8} parent=5 // pred_region
      %s337 = ssub.s32 %s18, 1
      // Predicated region
      $region13: #{pointgcn_forward.8} parent=11 // pred_check
        %p338 = pneg %p129
      $region14: #{pointgcn_forward.8} parent=11 // pred_check_branch
        %340 = sbr.rel (%p338) target = $region16
      $region15: #{pointgcn_forward.8} parent=11 // pred_region
        _
      $region16: #{pointgcn_forward.8} parent=11 // pred_fallthru
        _
      // Predicated region
      $region17: #{pointgcn_forward.8} parent=11 // pred_check
        %p341 = pneg %p150
      $region18: #{pointgcn_forward.8} parent=11 // pred_check_branch
        %343 = sbr.rel (%p341) target = $region20
      $region19: #{pointgcn_forward.8} parent=11 // pred_region
        _
      $region20: #{pointgcn_forward.8} parent=11 // pred_fallthru
        _
      // Predicated region
      $region21: #{pointgcn_forward.8} parent=11 // pred_check
        %p344 = pneg %p171
      $region22: #{pointgcn_forward.8} parent=11 // pred_check_branch
        %346 = sbr.rel (%p344) target = $region24
      $region23: #{pointgcn_forward.8} parent=11 // pred_region
        _
      $region24: #{pointgcn_forward.8} parent=11 // pred_fallthru
        _
      // Predicated region
      $region25: #{pointgcn_forward.8} parent=11 // pred_check
        %p347 = pneg %p192
      $region26: #{pointgcn_forward.8} parent=11 // pred_check_branch
        %349 = sbr.rel (%p347) target = $region28
      $region27: #{pointgcn_forward.8} parent=11 // pred_region
        _
      $region28: #{pointgcn_forward.8} parent=11 // pred_fallthru
        _
      // Predicated region
      $region29: #{pointgcn_forward.8} parent=11 // pred_check
        %p350 = pneg %p213
      $region30: #{pointgcn_forward.8} parent=11 // pred_check_branch
        %352 = sbr.rel (%p350) target = $region32
      $region31: #{pointgcn_forward.8} parent=11 // pred_region
        _
      $region32: #{pointgcn_forward.8} parent=11 // pred_fallthru
        _
      // Predicated region
      $region33: #{pointgcn_forward.8} parent=11 // pred_check
        %p353 = pneg %p234
      $region34: #{pointgcn_forward.8} parent=11 // pred_check_branch
        %355 = sbr.rel (%p353) target = $region36
      $region35: #{pointgcn_forward.8} parent=11 // pred_region
        _
      $region36: #{pointgcn_forward.8} parent=11 // pred_fallthru
        _
      // Predicated region
      $region37: #{pointgcn_forward.8} parent=11 // pred_check
        %p356 = pneg %p255
      $region38: #{pointgcn_forward.8} parent=11 // pred_check_branch
        %358 = sbr.rel (%p356) target = $region40
      $region39: #{pointgcn_forward.8} parent=11 // pred_region
        _
      $region40: #{pointgcn_forward.8} parent=11 // pred_fallthru
        _
      // Predicated region
      $region41: #{pointgcn_forward.8} parent=11 // pred_check
        %p359 = pneg %p276
      $region42: #{pointgcn_forward.8} parent=11 // pred_check_branch
        %361 = sbr.rel (%p359) target = $region44
      $region43: #{pointgcn_forward.8} parent=11 // pred_region
        _
      $region44: #{pointgcn_forward.8} parent=11 // pred_fallthru
        _
      // Predicated region
      $region45: #{pointgcn_forward.8} parent=11 // pred_check
        %p362 = pneg %p297
      $region46: #{pointgcn_forward.8} parent=11 // pred_check_branch
        %364 = sbr.rel (%p362) target = $region48
      $region47: #{pointgcn_forward.8} parent=11 // pred_region
        _
      $region48: #{pointgcn_forward.8} parent=11 // pred_fallthru
        _
    $region12: #{pointgcn_forward.8} parent=5 // pred_fallthru
      _
    %p365 = scmp.lt.s32.totalorder %s18, 8
    // Predicated region
    $region49: #{pointgcn_forward.8} parent=5 // pred_check
      %p366 = pneg %p365
    $region50: #{pointgcn_forward.8} parent=5 // pred_check_branch
      %368 = sbr.rel (%p366) target = $region52
    $region51: #{pointgcn_forward.8} parent=5 // pred_region
      // Predicated region
      $region53: #{pointgcn_forward.8} parent=51 // pred_check
        %p369 = pneg %p50
      $region54: #{pointgcn_forward.8} parent=51 // pred_check_branch
        %371 = sbr.rel (%p369) target = $region56
      $region55: #{pointgcn_forward.8} parent=51 // pred_region
        %s372 = smul.u32 2, %s26
        %p373 = scmp.lt.s32.totalorder %s372, 7
        %s374 = scalar_select %p373, %s372, 7
        %s375 = scalar_lea.vmem %s0, %s374
        %s376 = smul.u32 2, %s26
      $region56: #{pointgcn_forward.8} parent=51 // pred_fallthru
        _
      // Predicated region
      $region57: #{pointgcn_forward.8} parent=51 // pred_check
        %p377 = pneg %p76
      $region58: #{pointgcn_forward.8} parent=51 // pred_check_branch
        %379 = sbr.rel (%p377) target = $region60
      $region59: #{pointgcn_forward.8} parent=51 // pred_region
        %s380 = smul.u32 32, %s26
        %p381 = scmp.lt.s32.totalorder %s380, 127
        %s382 = scalar_select %p381, %s380, 127
        %s383 = smul.addr %s382, 4
        %s384 = scalar_lea.vmem %s1, %s383
        %s385 = smul.u32 32, %s26
      $region60: #{pointgcn_forward.8} parent=51 // pred_fallthru
        _
      // Predicated region
      $region61: #{pointgcn_forward.8} parent=51 // pred_check
        %p386 = pneg %p102
      $region62: #{pointgcn_forward.8} parent=51 // pred_check_branch
        %388 = sbr.rel (%p386) target = $region64
      $region63: #{pointgcn_forward.8} parent=51 // pred_region
        %s389 = smul.u32 32, %s26
        %p390 = scmp.lt.s32.totalorder %s389, 127
        %s391 = scalar_select %p390, %s389, 127
        %s392 = smul.addr %s391, 4
        %s393 = scalar_lea.vmem %s2, %s392
        %s394 = smul.u32 32, %s26
      $region64: #{pointgcn_forward.8} parent=51 // pred_fallthru
        _
    $region52: #{pointgcn_forward.8} parent=5 // pred_fallthru
      _
    %p395 = scmp.le.s32.totalorder 1, %s18
    %p396 = scmp.lt.s32.totalorder %s18, 9
    %p397 = pnand %p395, %p396
    %p398 = pneg %p397
    // Predicated region
    $region65: #{pointgcn_forward.8} parent=5 // pred_check
      _
    $region66: #{pointgcn_forward.8} parent=5 // pred_check_branch
      %400 = sbr.rel (%p397) target = $region68
    $region67: #{pointgcn_forward.8} parent=5 // pred_region
      %s401 = ssub.s32 %s18, 1
      %s402 = smul.u32 2, %s28
      %p403 = scmp.lt.s32.totalorder %s402, 7
      %s404 = scalar_select %p403, %s402, 7
      %s405 = scalar_lea.vmem %s0, %s404
      %p406 = pneg %p56
      %p407 = pneg %p53
      %s408 = smul.u32 32, %s28
      %p409 = scmp.lt.s32.totalorder %s408, 127
      %s410 = scalar_select %p409, %s408, 127
      %s411 = smul.addr %s410, 4
      %s412 = scalar_lea.vmem %s1, %s411
      %p413 = pneg %p82
      %p414 = pneg %p79
      %s415 = smul.u32 32, %s28
      %p416 = scmp.lt.s32.totalorder %s415, 127
      %s417 = scalar_select %p416, %s415, 127
      %s418 = smul.addr %s417, 4
      %s419 = scalar_lea.vmem %s2, %s418
      %p420 = pneg %p108
      %p421 = pneg %p105
      %p422 = pneg %p129
      %p423 = pneg %p126
      %p424 = pneg %p150
      %p425 = pneg %p147
      %p426 = pneg %p171
      %p427 = pneg %p168
      %p428 = pneg %p192
      %p429 = pneg %p189
      %p430 = pneg %p213
      %p431 = pneg %p210
      %p432 = pneg %p234
      %p433 = pneg %p231
      %p434 = pneg %p255
      %p435 = pneg %p252
      %p436 = pneg %p276
      %p437 = pneg %p273
      %p438 = pneg %p297
      %p439 = pneg %p294
      %p440 = pneg %p323
      %p441 = pneg %p320
      %s442 = smul.u32 4, %s27
      %p443 = scmp.lt.s32.totalorder %s442, 7
      %s444 = scalar_select %p443, %s442, 7
      %s445 = smul.addr %s444, 8
      %s446 = scalar_lea.vmem %s12, %s445
      %s447 = smul.u32 2, %s28
      %p448 = scmp.lt.s32.totalorder %s447, 7
      %s449 = scalar_select %p448, %s447, 7
      %s450 = scalar_lea.vmem %s0, %s449
      %s451 = smul.u32 2, %s28
      %s452 = smul.u32 32, %s28
      %p453 = scmp.lt.s32.totalorder %s452, 127
      %s454 = scalar_select %p453, %s452, 127
      %s455 = smul.addr %s454, 4
      %s456 = scalar_lea.vmem %s1, %s455
      %s457 = smul.u32 32, %s28
      %s458 = smul.u32 32, %s28
      %p459 = scmp.lt.s32.totalorder %s458, 127
      %s460 = scalar_select %p459, %s458, 127
      %s461 = smul.addr %s460, 4
      %s462 = scalar_lea.vmem %s2, %s461
      %s463 = smul.u32 32, %s28
      %s464 = smul.u32 4, %s27
      %p465 = scmp.lt.s32.totalorder %s464, 7
      %s466 = scalar_select %p465, %s464, 7
      %s467 = smul.addr %s466, 8
      %s468 = scalar_lea.vmem %s12, %s467
      %s469 = smul.u32 4, %s27
      %p471 = scmp.eq.s32.totalorder %s28, 0
      // Predicated region
      $region69: #{pointgcn_forward.8} parent=67 // pred_check
        %p472 = pneg %p471
      $region70: #{pointgcn_forward.8} parent=67 // pred_check_branch
        %474 = sbr.rel (%p472) target = $region72
      $region71: #{pointgcn_forward.8} parent=67 // pred_region
        %vm475 = vcmask 261120
        %476 = vst.msk [vmem:[#allocation2] sm:$0xff] %vm475, 0.0
        %477 = vst.msk [vmem:[#allocation2 + $0x8] sm:$0xff] %vm475, 0.0
        %478 = vst.msk [vmem:[#allocation2 + $0x10] sm:$0xff] %vm475, 0.0
        %479 = vst.msk [vmem:[#allocation2 + $0x18] sm:$0xff] %vm475, 0.0
      $region72: #{pointgcn_forward.8} parent=67 // pred_fallthru
        _
      %v480 = vld [vmem:[%s456] sm:$0xf]
      %v481 = vld [vmem:[%s456 + $0x4] sm:$0xf]
      %v482 = vld [vmem:[%s456 + $0x8] sm:$0xf]
      %v483 = vld [vmem:[%s456 + $0xc] sm:$0xf]
      %v484 = vld [vmem:[%s456 + $0x10] sm:$0xf]
      %v485 = vld [vmem:[%s456 + $0x14] sm:$0xf]
      %v486 = vld [vmem:[%s456 + $0x18] sm:$0xf]
      %v487 = vld [vmem:[%s456 + $0x1c] sm:$0xf]
      %v488 = vld [vmem:[%s456 + $0x20] sm:$0xf]
      %v489 = vld [vmem:[%s456 + $0x24] sm:$0xf]
      %v490 = vld [vmem:[%s456 + $0x28] sm:$0xf]
      %v491 = vld [vmem:[%s456 + $0x2c] sm:$0xf]
      %v492 = vld [vmem:[%s456 + $0x30] sm:$0xf]
      %v493 = vld [vmem:[%s456 + $0x34] sm:$0xf]
      %v494 = vld [vmem:[%s456 + $0x38] sm:$0xf]
      %v495 = vld [vmem:[%s456 + $0x3c] sm:$0xf]
      %v496 = vld [vmem:[%s456 + $0x40] sm:$0xf]
      %v497 = vld [vmem:[%s456 + $0x44] sm:$0xf]
      %v498 = vld [vmem:[%s456 + $0x48] sm:$0xf]
      %v499 = vld [vmem:[%s456 + $0x4c] sm:$0xf]
      %v500 = vld [vmem:[%s456 + $0x50] sm:$0xf]
      %v501 = vld [vmem:[%s456 + $0x54] sm:$0xf]
      %v502 = vld [vmem:[%s456 + $0x58] sm:$0xf]
      %v503 = vld [vmem:[%s456 + $0x5c] sm:$0xf]
      %v504 = vld [vmem:[%s456 + $0x60] sm:$0xf]
      %v505 = vld [vmem:[%s456 + $0x64] sm:$0xf]
      %v506 = vld [vmem:[%s456 + $0x68] sm:$0xf]
      %v507 = vld [vmem:[%s456 + $0x6c] sm:$0xf]
      %v508 = vld [vmem:[%s456 + $0x70] sm:$0xf]
      %v509 = vld [vmem:[%s456 + $0x74] sm:$0xf]
      %v510 = vld [vmem:[%s456 + $0x78] sm:$0xf]
      %v511 = vld [vmem:[%s456 + $0x7c] sm:$0xf]
      %v512 = vld [vmem:[%s3] sm:$0xf]
      %v513 = vld [vmem:[%s3 + $0x4] sm:$0xf]
      %v514 = vld [vmem:[%s3 + $0x8] sm:$0xf]
      %v515 = vld [vmem:[%s3 + $0xc] sm:$0xf]
      %v516 = vld [vmem:[%s462] sm:$0xf]
      %v517 = vld [vmem:[%s462 + $0x4] sm:$0xf]
      %v518 = vld [vmem:[%s462 + $0x8] sm:$0xf]
      %v519 = vld [vmem:[%s462 + $0xc] sm:$0xf]
      %v520 = vld [vmem:[%s462 + $0x10] sm:$0xf]
      %v521 = vld [vmem:[%s462 + $0x14] sm:$0xf]
      %v522 = vld [vmem:[%s462 + $0x18] sm:$0xf]
      %v523 = vld [vmem:[%s462 + $0x1c] sm:$0xf]
      %v524 = vld [vmem:[%s462 + $0x20] sm:$0xf]
      %v525 = vld [vmem:[%s462 + $0x24] sm:$0xf]
      %v526 = vld [vmem:[%s462 + $0x28] sm:$0xf]
      %v527 = vld [vmem:[%s462 + $0x2c] sm:$0xf]
      %v528 = vld [vmem:[%s462 + $0x30] sm:$0xf]
      %v529 = vld [vmem:[%s462 + $0x34] sm:$0xf]
      %v530 = vld [vmem:[%s462 + $0x38] sm:$0xf]
      %v531 = vld [vmem:[%s462 + $0x3c] sm:$0xf]
      %v532 = vld [vmem:[%s462 + $0x40] sm:$0xf]
      %v533 = vld [vmem:[%s462 + $0x44] sm:$0xf]
      %v534 = vld [vmem:[%s462 + $0x48] sm:$0xf]
      %v535 = vld [vmem:[%s462 + $0x4c] sm:$0xf]
      %v536 = vld [vmem:[%s462 + $0x50] sm:$0xf]
      %v537 = vld [vmem:[%s462 + $0x54] sm:$0xf]
      %v538 = vld [vmem:[%s462 + $0x58] sm:$0xf]
      %v539 = vld [vmem:[%s462 + $0x5c] sm:$0xf]
      %v540 = vld [vmem:[%s462 + $0x60] sm:$0xf]
      %v541 = vld [vmem:[%s462 + $0x64] sm:$0xf]
      %v542 = vld [vmem:[%s462 + $0x68] sm:$0xf]
      %v543 = vld [vmem:[%s462 + $0x6c] sm:$0xf]
      %v544 = vld [vmem:[%s462 + $0x70] sm:$0xf]
      %v545 = vld [vmem:[%s462 + $0x74] sm:$0xf]
      %v546 = vld [vmem:[%s462 + $0x78] sm:$0xf]
      %v547 = vld [vmem:[%s462 + $0x7c] sm:$0xf]
      %v548 = vld [vmem:[%s4] sm:$0xf]
      %v581 = vunpack.c.l.b16 %v516
      %v582 = vunpack.c.l.b16 %v517
      %v583 = vunpack.c.l.b16 %v518
      %v584 = vunpack.c.l.b16 %v519
      %v585 = vunpack.c.l.b16 %v520
      %v586 = vunpack.c.l.b16 %v521
      %v587 = vunpack.c.l.b16 %v522
      %v588 = vunpack.c.l.b16 %v523
      %v589 = vunpack.c.l.b16 %v524
      %v590 = vunpack.c.l.b16 %v525
      %v591 = vunpack.c.l.b16 %v526
      %v592 = vunpack.c.l.b16 %v527
      %v593 = vunpack.c.l.b16 %v528
      %v594 = vunpack.c.l.b16 %v529
      %v595 = vunpack.c.l.b16 %v530
      %v596 = vunpack.c.l.b16 %v531
      %v597 = vunpack.c.l.b16 %v532
      %v598 = vunpack.c.l.b16 %v533
      %v599 = vunpack.c.l.b16 %v534
      %v600 = vunpack.c.l.b16 %v535
      %v601 = vunpack.c.l.b16 %v536
      %v602 = vunpack.c.l.b16 %v537
      %v603 = vunpack.c.l.b16 %v538
      %v604 = vunpack.c.l.b16 %v539
      %v605 = vunpack.c.l.b16 %v540
      %v606 = vunpack.c.l.b16 %v541
      %v607 = vunpack.c.l.b16 %v542
      %v608 = vunpack.c.l.b16 %v543
      %v609 = vunpack.c.l.b16 %v544
      %v610 = vunpack.c.l.b16 %v545
      %v611 = vunpack.c.l.b16 %v546
      %v612 = vunpack.c.l.b16 %v547
      %v613 = vpack.c.b16 %v582, %v581
      %v614 = vpack.c.b16 %v584, %v583
      %v615 = vpack.c.b16 %v586, %v585
      %v616 = vpack.c.b16 %v588, %v587
      %v617 = vpack.c.b16 %v590, %v589
      %v618 = vpack.c.b16 %v592, %v591
      %v619 = vpack.c.b16 %v594, %v593
      %v620 = vpack.c.b16 %v596, %v595
      %v621 = vpack.c.b16 %v598, %v597
      %v622 = vpack.c.b16 %v600, %v599
      %v623 = vpack.c.b16 %v602, %v601
      %v624 = vpack.c.b16 %v604, %v603
      %v625 = vpack.c.b16 %v606, %v605
      %v626 = vpack.c.b16 %v608, %v607
      %v627 = vpack.c.b16 %v610, %v609
      %v628 = vpack.c.b16 %v612, %v611
      %vm629 = vcmask 64512
      %v631 = vsel %vm629, %v613, 0
      %v634 = vsel %vm629, %v614, 0
      %v637 = vsel %vm629, %v615, 0
      %v640 = vsel %vm629, %v616, 0
      %v643 = vsel %vm629, %v617, 0
      %v646 = vsel %vm629, %v618, 0
      %v649 = vsel %vm629, %v619, 0
      %v652 = vsel %vm629, %v620, 0
      %v655 = vsel %vm629, %v621, 0
      %v658 = vsel %vm629, %v622, 0
      %v661 = vsel %vm629, %v623, 0
      %v664 = vsel %vm629, %v624, 0
      %v667 = vsel %vm629, %v625, 0
      %v670 = vsel %vm629, %v626, 0
      %v673 = vsel %vm629, %v627, 0
      %v676 = vsel %vm629, %v628, 0
      %vm678 = vcmask 1043456
      %v680 = vsel %vm678, %v548, 0
      %682 = vmatprep.subr.bf16.mxu0 0
      %683 = vmatpush1.bf16.msra.mxu0 %v680
      %684 = vmatprep.subr.bf16.mxu0 0
      %685 = vmatpush1.bf16.msra.mxu0 0
      %686 = vmatprep.subr.bf16.mxu0 0
      %687 = vmatpush1.bf16.msra.mxu0 0
      %688 = vmatprep.subr.bf16.mxu0 0
      %689 = vmatpush1.bf16.msra.mxu0 0
      %690 = vmatprep.subr.bf16.mxu0 0
      %691 = vmatpush1.bf16.msra.mxu0 0
      %692 = vmatprep.subr.bf16.mxu0 0
      %693 = vmatpush1.bf16.msra.mxu0 0
      %694 = vmatprep.subr.bf16.mxu0 0
      %695 = vmatpush1.bf16.msra.mxu0 0
      %696 = vmatprep.subr.bf16.mxu0 0
      %697 = vmatpush1.bf16.msra.mxu0 0
      %698 = vmatprep.subr.bf16.mxu0 0
      %699 = vmatpush1.bf16.msra.mxu0 0
      %700 = vmatprep.subr.bf16.mxu0 0
      %701 = vmatpush1.bf16.msra.mxu0 0
      %702 = vmatprep.subr.bf16.mxu0 0
      %703 = vmatpush1.bf16.msra.mxu0 0
      %704 = vmatprep.subr.bf16.mxu0 0
      %705 = vmatpush1.bf16.msra.mxu0 0
      %706 = vmatprep.subr.bf16.mxu0 0
      %707 = vmatpush1.bf16.msra.mxu0 0
      %708 = vmatprep.subr.bf16.mxu0 0
      %709 = vmatpush1.bf16.msra.mxu0 0
      %710 = vmatprep.subr.bf16.mxu0 0
      %711 = vmatpush1.bf16.msra.mxu0 0
      %712 = vmatprep.subr.bf16.mxu0 0
      %713 = vmatpush1.bf16.msra.mxu0 0
      %714 = vmatprep.mubr.bf16.mxu0 0
      %715 = vmatmul.mubr.bf16.gmra.mrb[0].mxu0 %v631
      %v716 = vpop.f32.mrb[0].mxu0
      %v717 = vadd.f32 0.0, %v716
      %v718 = vpop.f32.mrb[0].mxu0
      %v719 = vpop.f32.mrb[0].mxu0
      %v720 = vadd.f32 0.0, %v719
      %v721 = vpop.f32.mrb[0].mxu0
      %722 = vmatprep.mubr.bf16.mxu0 0
      %723 = vmatmul.mubr.bf16.gmra.mrb[0].mxu0 %v634
      %v724 = vpop.f32.mrb[0].mxu0
      %v725 = vadd.f32 0.0, %v724
      %v726 = vpop.f32.mrb[0].mxu0
      %v727 = vpop.f32.mrb[0].mxu0
      %v728 = vadd.f32 0.0, %v727
      %v729 = vpop.f32.mrb[0].mxu0
      %730 = vmatprep.mubr.bf16.mxu0 0
      %731 = vmatmul.mubr.bf16.gmra.mrb[0].mxu0 %v637
      %v732 = vpop.f32.mrb[0].mxu0
      %v733 = vadd.f32 0.0, %v732
      %v734 = vpop.f32.mrb[0].mxu0
      %v735 = vpop.f32.mrb[0].mxu0
      %v736 = vadd.f32 0.0, %v735
      %v737 = vpop.f32.mrb[0].mxu0
      %738 = vmatprep.mubr.bf16.mxu0 0
      %739 = vmatmul.mubr.bf16.gmra.mrb[0].mxu0 %v640
      %v740 = vpop.f32.mrb[0].mxu0
      %v741 = vadd.f32 0.0, %v740
      %v742 = vpop.f32.mrb[0].mxu0
      %v743 = vpop.f32.mrb[0].mxu0
      %v744 = vadd.f32 0.0, %v743
      %v745 = vpop.f32.mrb[0].mxu0
      %746 = vmatprep.mubr.bf16.mxu0 0
      %747 = vmatmul.mubr.bf16.gmra.mrb[0].mxu0 %v643
      %v748 = vpop.f32.mrb[0].mxu0
      %v749 = vadd.f32 0.0, %v748
      %v750 = vpop.f32.mrb[0].mxu0
      %v751 = vpop.f32.mrb[0].mxu0
      %v752 = vadd.f32 0.0, %v751
      %v753 = vpop.f32.mrb[0].mxu0
      %754 = vmatprep.mubr.bf16.mxu0 0
      %755 = vmatmul.mubr.bf16.gmra.mrb[0].mxu0 %v646
      %v756 = vpop.f32.mrb[0].mxu0
      %v757 = vadd.f32 0.0, %v756
      %v758 = vpop.f32.mrb[0].mxu0
      %v759 = vpop.f32.mrb[0].mxu0
      %v760 = vadd.f32 0.0, %v759
      %v761 = vpop.f32.mrb[0].mxu0
      %762 = vmatprep.mubr.bf16.mxu0 0
      %763 = vmatmul.mubr.bf16.gmra.mrb[0].mxu0 %v649
      %v764 = vpop.f32.mrb[0].mxu0
      %v765 = vadd.f32 0.0, %v764
      %v766 = vpop.f32.mrb[0].mxu0
      %v767 = vpop.f32.mrb[0].mxu0
      %v768 = vadd.f32 0.0, %v767
      %v769 = vpop.f32.mrb[0].mxu0
      %770 = vmatprep.mubr.bf16.mxu0 0
      %771 = vmatmul.mubr.bf16.gmra.mrb[0].mxu0 %v652
      %v772 = vpop.f32.mrb[0].mxu0
      %v773 = vadd.f32 0.0, %v772
      %v774 = vpop.f32.mrb[0].mxu0
      %v775 = vpop.f32.mrb[0].mxu0
      %v776 = vadd.f32 0.0, %v775
      %v777 = vpop.f32.mrb[0].mxu0
      %778 = vmatprep.mubr.bf16.mxu0 0
      %779 = vmatmul.mubr.bf16.gmra.mrb[0].mxu0 %v655
      %v780 = vpop.f32.mrb[0].mxu0
      %v781 = vadd.f32 0.0, %v780
      %v782 = vpop.f32.mrb[0].mxu0
      %v783 = vpop.f32.mrb[0].mxu0
      %v784 = vadd.f32 0.0, %v783
      %v785 = vpop.f32.mrb[0].mxu0
      %786 = vmatprep.mubr.bf16.mxu0 0
      %787 = vmatmul.mubr.bf16.gmra.mrb[0].mxu0 %v658
      %v788 = vpop.f32.mrb[0].mxu0
      %v789 = vadd.f32 0.0, %v788
      %v790 = vpop.f32.mrb[0].mxu0
      %v791 = vpop.f32.mrb[0].mxu0
      %v792 = vadd.f32 0.0, %v791
      %v793 = vpop.f32.mrb[0].mxu0
      %794 = vmatprep.mubr.bf16.mxu0 0
      %795 = vmatmul.mubr.bf16.gmra.mrb[0].mxu0 %v661
      %v796 = vpop.f32.mrb[0].mxu0
      %v797 = vadd.f32 0.0, %v796
      %v798 = vpop.f32.mrb[0].mxu0
      %v799 = vpop.f32.mrb[0].mxu0
      %v800 = vadd.f32 0.0, %v799
      %v801 = vpop.f32.mrb[0].mxu0
      %802 = vmatprep.mubr.bf16.mxu0 0
      %803 = vmatmul.mubr.bf16.gmra.mrb[0].mxu0 %v664
      %v804 = vpop.f32.mrb[0].mxu0
      %v805 = vadd.f32 0.0, %v804
      %v806 = vpop.f32.mrb[0].mxu0
      %v807 = vpop.f32.mrb[0].mxu0
      %v808 = vadd.f32 0.0, %v807
      %v809 = vpop.f32.mrb[0].mxu0
      %810 = vmatprep.mubr.bf16.mxu0 0
      %811 = vmatmul.mubr.bf16.gmra.mrb[0].mxu0 %v667
      %v812 = vpop.f32.mrb[0].mxu0
      %v813 = vadd.f32 0.0, %v812
      %v814 = vpop.f32.mrb[0].mxu0
      %v815 = vpop.f32.mrb[0].mxu0
      %v816 = vadd.f32 0.0, %v815
      %v817 = vpop.f32.mrb[0].mxu0
      %818 = vmatprep.mubr.bf16.mxu0 0
      %819 = vmatmul.mubr.bf16.gmra.mrb[0].mxu0 %v670
      %v820 = vpop.f32.mrb[0].mxu0
      %v821 = vadd.f32 0.0, %v820
      %v822 = vpop.f32.mrb[0].mxu0
      %v823 = vpop.f32.mrb[0].mxu0
      %v824 = vadd.f32 0.0, %v823
      %v825 = vpop.f32.mrb[0].mxu0
      %826 = vmatprep.mubr.bf16.mxu0 0
      %827 = vmatmul.mubr.bf16.gmra.mrb[0].mxu0 %v673
      %v828 = vpop.f32.mrb[0].mxu0
      %v829 = vadd.f32 0.0, %v828
      %v830 = vpop.f32.mrb[0].mxu0
      %v831 = vpop.f32.mrb[0].mxu0
      %v832 = vadd.f32 0.0, %v831
      %v833 = vpop.f32.mrb[0].mxu0
      %834 = vmatprep.mubr.bf16.mxu0 0
      %835 = vmatmul.mubr.bf16.gmra.mrb[0].mxu0 %v676
      %v836 = vpop.f32.mrb[0].mxu0
      %v837 = vadd.f32 0.0, %v836
      %v838 = vpop.f32.mrb[0].mxu0
      %v839 = vpop.f32.mrb[0].mxu0
      %v840 = vadd.f32 0.0, %v839
      %v841 = vpop.f32.mrb[0].mxu0
      %842 = vdwg.mxu0
      %v875 = vunpack.c.l.b16 %v480
      %v876 = vunpack.c.l.b16 %v481
      %v877 = vunpack.c.l.b16 %v482
      %v878 = vunpack.c.l.b16 %v483
      %v879 = vunpack.c.l.b16 %v484
      %v880 = vunpack.c.l.b16 %v485
      %v881 = vunpack.c.l.b16 %v486
      %v882 = vunpack.c.l.b16 %v487
      %v883 = vunpack.c.l.b16 %v488
      %v884 = vunpack.c.l.b16 %v489
      %v885 = vunpack.c.l.b16 %v490
      %v886 = vunpack.c.l.b16 %v491
      %v887 = vunpack.c.l.b16 %v492
      %v888 = vunpack.c.l.b16 %v493
      %v889 = vunpack.c.l.b16 %v494
      %v890 = vunpack.c.l.b16 %v495
      %v891 = vunpack.c.l.b16 %v496
      %v892 = vunpack.c.l.b16 %v497
      %v893 = vunpack.c.l.b16 %v498
      %v894 = vunpack.c.l.b16 %v499
      %v895 = vunpack.c.l.b16 %v500
      %v896 = vunpack.c.l.b16 %v501
      %v897 = vunpack.c.l.b16 %v502
      %v898 = vunpack.c.l.b16 %v503
      %v899 = vunpack.c.l.b16 %v504
      %v900 = vunpack.c.l.b16 %v505
      %v901 = vunpack.c.l.b16 %v506
      %v902 = vunpack.c.l.b16 %v507
      %v903 = vunpack.c.l.b16 %v508
      %v904 = vunpack.c.l.b16 %v509
      %v905 = vunpack.c.l.b16 %v510
      %v906 = vunpack.c.l.b16 %v511
      %v907 = vpack.c.b16 %v876, %v875
      %v908 = vpack.c.b16 %v878, %v877
      %v909 = vpack.c.b16 %v880, %v879
      %v910 = vpack.c.b16 %v882, %v881
      %v911 = vpack.c.b16 %v884, %v883
      %v912 = vpack.c.b16 %v886, %v885
      %v913 = vpack.c.b16 %v888, %v887
      %v914 = vpack.c.b16 %v890, %v889
      %v915 = vpack.c.b16 %v892, %v891
      %v916 = vpack.c.b16 %v894, %v893
      %v917 = vpack.c.b16 %v896, %v895
      %v918 = vpack.c.b16 %v898, %v897
      %v919 = vpack.c.b16 %v900, %v899
      %v920 = vpack.c.b16 %v902, %v901
      %v921 = vpack.c.b16 %v904, %v903
      %v922 = vpack.c.b16 %v906, %v905
      %v927 = vunpack.c.l.b16 %v512
      %v928 = vunpack.c.l.b16 %v513
      %v929 = vunpack.c.l.b16 %v514
      %v930 = vunpack.c.l.b16 %v515
      %v931 = vpack.c.b16 %v928, %v927
      %v932 = vpack.c.b16 %v930, %v929
      %vm935 = vcmask 261120
      %v937 = vsel %vm935, %v907, 0
      %v940 = vsel %vm935, %v908, 0
      %v943 = vsel %vm935, %v909, 0
      %v946 = vsel %vm935, %v910, 0
      %v949 = vsel %vm935, %v911, 0
      %v952 = vsel %vm935, %v912, 0
      %v955 = vsel %vm935, %v913, 0
      %v958 = vsel %vm935, %v914, 0
      %v961 = vsel %vm935, %v915, 0
      %v964 = vsel %vm935, %v916, 0
      %v967 = vsel %vm935, %v917, 0
      %v970 = vsel %vm935, %v918, 0
      %v973 = vsel %vm935, %v919, 0
      %v976 = vsel %vm935, %v920, 0
      %v979 = vsel %vm935, %v921, 0
      %v982 = vsel %vm935, %v922, 0
      %984 = vmatprep.subr.bf16.mxu0 0
      %985 = vmatpush1.bf16.msra.mxu0 %v931
      %986 = vmatprep.subr.bf16.mxu0 0
      %987 = vmatpush1.bf16.msra.mxu0 %v932
      %988 = vmatprep.subr.bf16.mxu0 0
      %989 = vmatpush1.bf16.msra.mxu0 0
      %990 = vmatprep.subr.bf16.mxu0 0
      %991 = vmatpush1.bf16.msra.mxu0 0
      %992 = vmatprep.subr.bf16.mxu0 0
      %993 = vmatpush1.bf16.msra.mxu0 0
      %994 = vmatprep.subr.bf16.mxu0 0
      %995 = vmatpush1.bf16.msra.mxu0 0
      %996 = vmatprep.subr.bf16.mxu0 0
      %997 = vmatpush1.bf16.msra.mxu0 0
      %998 = vmatprep.subr.bf16.mxu0 0
      %999 = vmatpush1.bf16.msra.mxu0 0
      %1000 = vmatprep.subr.bf16.mxu0 0
      %1001 = vmatpush1.bf16.msra.mxu0 0
      %1002 = vmatprep.subr.bf16.mxu0 0
      %1003 = vmatpush1.bf16.msra.mxu0 0
      %1004 = vmatprep.subr.bf16.mxu0 0
      %1005 = vmatpush1.bf16.msra.mxu0 0
      %1006 = vmatprep.subr.bf16.mxu0 0
      %1007 = vmatpush1.bf16.msra.mxu0 0
      %1008 = vmatprep.subr.bf16.mxu0 0
      %1009 = vmatpush1.bf16.msra.mxu0 0
      %1010 = vmatprep.subr.bf16.mxu0 0
      %1011 = vmatpush1.bf16.msra.mxu0 0
      %1012 = vmatprep.subr.bf16.mxu0 0
      %1013 = vmatpush1.bf16.msra.mxu0 0
      %1014 = vmatprep.subr.bf16.mxu0 0
      %1015 = vmatpush1.bf16.msra.mxu0 0
      %1016 = vmatprep.mubr.bf16.mxu0 0
      %1017 = vmatmul.mubr.bf16.gmra.mrb[0].mxu0 %v937
      %v1018 = vpop.f32.mrb[0].mxu0
      %v1019 = vadd.f32 %v717, %v1018
      %v1020 = vpop.f32.mrb[0].mxu0
      %v1021 = vpop.f32.mrb[0].mxu0
      %v1022 = vadd.f32 %v720, %v1021
      %v1023 = vpop.f32.mrb[0].mxu0
      %1024 = vmatprep.mubr.bf16.mxu0 0
      %1025 = vmatmul.mubr.bf16.gmra.mrb[0].mxu0 %v940
      %v1026 = vpop.f32.mrb[0].mxu0
      %v1027 = vadd.f32 %v725, %v1026
      %v1028 = vpop.f32.mrb[0].mxu0
      %v1029 = vpop.f32.mrb[0].mxu0
      %v1030 = vadd.f32 %v728, %v1029
      %v1031 = vpop.f32.mrb[0].mxu0
      %1032 = vmatprep.mubr.bf16.mxu0 0
      %1033 = vmatmul.mubr.bf16.gmra.mrb[0].mxu0 %v943
      %v1034 = vpop.f32.mrb[0].mxu0
      %v1035 = vadd.f32 %v733, %v1034
      %v1036 = vpop.f32.mrb[0].mxu0
      %v1037 = vpop.f32.mrb[0].mxu0
      %v1038 = vadd.f32 %v736, %v1037
      %v1039 = vpop.f32.mrb[0].mxu0
      %1040 = vmatprep.mubr.bf16.mxu0 0
      %1041 = vmatmul.mubr.bf16.gmra.mrb[0].mxu0 %v946
      %v1042 = vpop.f32.mrb[0].mxu0
      %v1043 = vadd.f32 %v741, %v1042
      %v1044 = vpop.f32.mrb[0].mxu0
      %v1045 = vpop.f32.mrb[0].mxu0
      %v1046 = vadd.f32 %v744, %v1045
      %v1047 = vpop.f32.mrb[0].mxu0
      %1048 = vmatprep.mubr.bf16.mxu0 0
      %1049 = vmatmul.mubr.bf16.gmra.mrb[0].mxu0 %v949
      %v1050 = vpop.f32.mrb[0].mxu0
      %v1051 = vadd.f32 %v749, %v1050
      %v1052 = vpop.f32.mrb[0].mxu0
      %v1053 = vpop.f32.mrb[0].mxu0
      %v1054 = vadd.f32 %v752, %v1053
      %v1055 = vpop.f32.mrb[0].mxu0
      %1056 = vmatprep.mubr.bf16.mxu0 0
      %1057 = vmatmul.mubr.bf16.gmra.mrb[0].mxu0 %v952
      %v1058 = vpop.f32.mrb[0].mxu0
      %v1059 = vadd.f32 %v757, %v1058
      %v1060 = vpop.f32.mrb[0].mxu0
      %v1061 = vpop.f32.mrb[0].mxu0
      %v1062 = vadd.f32 %v760, %v1061
      %v1063 = vpop.f32.mrb[0].mxu0
      %1064 = vmatprep.mubr.bf16.mxu0 0
      %1065 = vmatmul.mubr.bf16.gmra.mrb[0].mxu0 %v955
      %v1066 = vpop.f32.mrb[0].mxu0
      %v1067 = vadd.f32 %v765, %v1066
      %v1068 = vpop.f32.mrb[0].mxu0
      %v1069 = vpop.f32.mrb[0].mxu0
      %v1070 = vadd.f32 %v768, %v1069
      %v1071 = vpop.f32.mrb[0].mxu0
      %1072 = vmatprep.mubr.bf16.mxu0 0
      %1073 = vmatmul.mubr.bf16.gmra.mrb[0].mxu0 %v958
      %v1074 = vpop.f32.mrb[0].mxu0
      %v1075 = vadd.f32 %v773, %v1074
      %v1076 = vpop.f32.mrb[0].mxu0
      %v1077 = vpop.f32.mrb[0].mxu0
      %v1078 = vadd.f32 %v776, %v1077
      %v1079 = vpop.f32.mrb[0].mxu0
      %1080 = vmatprep.mubr.bf16.mxu0 0
      %1081 = vmatmul.mubr.bf16.gmra.mrb[0].mxu0 %v961
      %v1082 = vpop.f32.mrb[0].mxu0
      %v1083 = vadd.f32 %v781, %v1082
      %v1084 = vpop.f32.mrb[0].mxu0
      %v1085 = vpop.f32.mrb[0].mxu0
      %v1086 = vadd.f32 %v784, %v1085
      %v1087 = vpop.f32.mrb[0].mxu0
      %1088 = vmatprep.mubr.bf16.mxu0 0
      %1089 = vmatmul.mubr.bf16.gmra.mrb[0].mxu0 %v964
      %v1090 = vpop.f32.mrb[0].mxu0
      %v1091 = vadd.f32 %v789, %v1090
      %v1092 = vpop.f32.mrb[0].mxu0
      %v1093 = vpop.f32.mrb[0].mxu0
      %v1094 = vadd.f32 %v792, %v1093
      %v1095 = vpop.f32.mrb[0].mxu0
      %1096 = vmatprep.mubr.bf16.mxu0 0
      %1097 = vmatmul.mubr.bf16.gmra.mrb[0].mxu0 %v967
      %v1098 = vpop.f32.mrb[0].mxu0
      %v1099 = vadd.f32 %v797, %v1098
      %v1100 = vpop.f32.mrb[0].mxu0
      %v1101 = vpop.f32.mrb[0].mxu0
      %v1102 = vadd.f32 %v800, %v1101
      %v1103 = vpop.f32.mrb[0].mxu0
      %1104 = vmatprep.mubr.bf16.mxu0 0
      %1105 = vmatmul.mubr.bf16.gmra.mrb[0].mxu0 %v970
      %v1106 = vpop.f32.mrb[0].mxu0
      %v1107 = vadd.f32 %v805, %v1106
      %v1108 = vpop.f32.mrb[0].mxu0
      %v1109 = vpop.f32.mrb[0].mxu0
      %v1110 = vadd.f32 %v808, %v1109
      %v1111 = vpop.f32.mrb[0].mxu0
      %1112 = vmatprep.mubr.bf16.mxu0 0
      %1113 = vmatmul.mubr.bf16.gmra.mrb[0].mxu0 %v973
      %v1114 = vpop.f32.mrb[0].mxu0
      %v1115 = vadd.f32 %v813, %v1114
      %v1116 = vpop.f32.mrb[0].mxu0
      %v1117 = vpop.f32.mrb[0].mxu0
      %v1118 = vadd.f32 %v816, %v1117
      %v1119 = vpop.f32.mrb[0].mxu0
      %1120 = vmatprep.mubr.bf16.mxu0 0
      %1121 = vmatmul.mubr.bf16.gmra.mrb[0].mxu0 %v976
      %v1122 = vpop.f32.mrb[0].mxu0
      %v1123 = vadd.f32 %v821, %v1122
      %v1124 = vpop.f32.mrb[0].mxu0
      %v1125 = vpop.f32.mrb[0].mxu0
      %v1126 = vadd.f32 %v824, %v1125
      %v1127 = vpop.f32.mrb[0].mxu0
      %1128 = vmatprep.mubr.bf16.mxu0 0
      %1129 = vmatmul.mubr.bf16.gmra.mrb[0].mxu0 %v979
      %v1130 = vpop.f32.mrb[0].mxu0
      %v1131 = vadd.f32 %v829, %v1130
      %v1132 = vpop.f32.mrb[0].mxu0
      %v1133 = vpop.f32.mrb[0].mxu0
      %v1134 = vadd.f32 %v832, %v1133
      %v1135 = vpop.f32.mrb[0].mxu0
      %1136 = vmatprep.mubr.bf16.mxu0 0
      %1137 = vmatmul.mubr.bf16.gmra.mrb[0].mxu0 %v982
      %v1138 = vpop.f32.mrb[0].mxu0
      %v1139 = vadd.f32 %v837, %v1138
      %v1140 = vpop.f32.mrb[0].mxu0
      %v1141 = vpop.f32.mrb[0].mxu0
      %v1142 = vadd.f32 %v840, %v1141
      %v1143 = vpop.f32.mrb[0].mxu0
      %1144 = vdwg.mxu0
      %v1145 = vld [vmem:[%s5] sm:$0x1]
      %v1147 = vlaneseq
      %v1148 = vshrl.u32 %v1147, 7
      %v1149 = vsub.s32 0, %v1148
      %v1150 = vrot.slane %v1145, %v1149
      %v1152 = vadd.f32 %v1019, %v1150
      %v1153 = vadd.f32 %v1022, %v1150
      %v1154 = vadd.f32 %v1027, %v1150
      %v1155 = vadd.f32 %v1030, %v1150
      %v1156 = vadd.f32 %v1035, %v1150
      %v1157 = vadd.f32 %v1038, %v1150
      %v1158 = vadd.f32 %v1043, %v1150
      %v1159 = vadd.f32 %v1046, %v1150
      %v1160 = vadd.f32 %v1051, %v1150
      %v1161 = vadd.f32 %v1054, %v1150
      %v1162 = vadd.f32 %v1059, %v1150
      %v1163 = vadd.f32 %v1062, %v1150
      %v1164 = vadd.f32 %v1067, %v1150
      %v1165 = vadd.f32 %v1070, %v1150
      %v1166 = vadd.f32 %v1075, %v1150
      %v1167 = vadd.f32 %v1078, %v1150
      %v1168 = vadd.f32 %v1083, %v1150
      %v1169 = vadd.f32 %v1086, %v1150
      %v1170 = vadd.f32 %v1091, %v1150
      %v1171 = vadd.f32 %v1094, %v1150
      %v1172 = vadd.f32 %v1099, %v1150
      %v1173 = vadd.f32 %v1102, %v1150
      %v1174 = vadd.f32 %v1107, %v1150
      %v1175 = vadd.f32 %v1110, %v1150
      %v1176 = vadd.f32 %v1115, %v1150
      %v1177 = vadd.f32 %v1118, %v1150
      %v1178 = vadd.f32 %v1123, %v1150
      %v1179 = vadd.f32 %v1126, %v1150
      %v1180 = vadd.f32 %v1131, %v1150
      %v1181 = vadd.f32 %v1134, %v1150
      %v1182 = vadd.f32 %v1139, %v1150
      %v1183 = vadd.f32 %v1142, %v1150
      %v1184 = vmul.f32 %v1152, 0.5
      %v1185 = vmul.f32 %v1153, 0.5
      %v1186 = vmul.f32 %v1154, 0.5
      %v1187 = vmul.f32 %v1155, 0.5
      %v1188 = vmul.f32 %v1156, 0.5
      %v1189 = vmul.f32 %v1157, 0.5
      %v1190 = vmul.f32 %v1158, 0.5
      %v1191 = vmul.f32 %v1159, 0.5
      %v1192 = vmul.f32 %v1160, 0.5
      %v1193 = vmul.f32 %v1161, 0.5
      %v1194 = vmul.f32 %v1162, 0.5
      %v1195 = vmul.f32 %v1163, 0.5
      %v1196 = vmul.f32 %v1164, 0.5
      %v1197 = vmul.f32 %v1165, 0.5
      %v1198 = vmul.f32 %v1166, 0.5
      %v1199 = vmul.f32 %v1167, 0.5
      %v1200 = vmul.f32 %v1168, 0.5
      %v1201 = vmul.f32 %v1169, 0.5
      %v1202 = vmul.f32 %v1170, 0.5
      %v1203 = vmul.f32 %v1171, 0.5
      %v1204 = vmul.f32 %v1172, 0.5
      %v1205 = vmul.f32 %v1173, 0.5
      %v1206 = vmul.f32 %v1174, 0.5
      %v1207 = vmul.f32 %v1175, 0.5
      %v1208 = vmul.f32 %v1176, 0.5
      %v1209 = vmul.f32 %v1177, 0.5
      %v1210 = vmul.f32 %v1178, 0.5
      %v1211 = vmul.f32 %v1179, 0.5
      %v1212 = vmul.f32 %v1180, 0.5
      %v1213 = vmul.f32 %v1181, 0.5
      %v1214 = vmul.f32 %v1182, 0.5
      %v1215 = vmul.f32 %v1183, 0.5
      %v1216 = vmul.f32 %v1152, 0.044715
      %v1217 = vmul.f32 %v1153, 0.044715
      %v1218 = vmul.f32 %v1154, 0.044715
      %v1219 = vmul.f32 %v1155, 0.044715
      %v1220 = vmul.f32 %v1156, 0.044715
      %v1221 = vmul.f32 %v1157, 0.044715
      %v1222 = vmul.f32 %v1158, 0.044715
      %v1223 = vmul.f32 %v1159, 0.044715
      %v1224 = vmul.f32 %v1160, 0.044715
      %v1225 = vmul.f32 %v1161, 0.044715
      %v1226 = vmul.f32 %v1162, 0.044715
      %v1227 = vmul.f32 %v1163, 0.044715
      %v1228 = vmul.f32 %v1164, 0.044715
      %v1229 = vmul.f32 %v1165, 0.044715
      %v1230 = vmul.f32 %v1166, 0.044715
      %v1231 = vmul.f32 %v1167, 0.044715
      %v1232 = vmul.f32 %v1168, 0.044715
      %v1233 = vmul.f32 %v1169, 0.044715
      %v1234 = vmul.f32 %v1170, 0.044715
      %v1235 = vmul.f32 %v1171, 0.044715
      %v1236 = vmul.f32 %v1172, 0.044715
      %v1237 = vmul.f32 %v1173, 0.044715
      %v1238 = vmul.f32 %v1174, 0.044715
      %v1239 = vmul.f32 %v1175, 0.044715
      %v1240 = vmul.f32 %v1176, 0.044715
      %v1241 = vmul.f32 %v1177, 0.044715
      %v1242 = vmul.f32 %v1178, 0.044715
      %v1243 = vmul.f32 %v1179, 0.044715
      %v1244 = vmul.f32 %v1180, 0.044715
      %v1245 = vmul.f32 %v1181, 0.044715
      %v1246 = vmul.f32 %v1182, 0.044715
      %v1247 = vmul.f32 %v1183, 0.044715
      %v1248 = vmul.f32 %v1216, %v1152
      %v1249 = vmul.f32 %v1217, %v1153
      %v1250 = vmul.f32 %v1218, %v1154
      %v1251 = vmul.f32 %v1219, %v1155
      %v1252 = vmul.f32 %v1220, %v1156
      %v1253 = vmul.f32 %v1221, %v1157
      %v1254 = vmul.f32 %v1222, %v1158
      %v1255 = vmul.f32 %v1223, %v1159
      %v1256 = vmul.f32 %v1224, %v1160
      %v1257 = vmul.f32 %v1225, %v1161
      %v1258 = vmul.f32 %v1226, %v1162
      %v1259 = vmul.f32 %v1227, %v1163
      %v1260 = vmul.f32 %v1228, %v1164
      %v1261 = vmul.f32 %v1229, %v1165
      %v1262 = vmul.f32 %v1230, %v1166
      %v1263 = vmul.f32 %v1231, %v1167
      %v1264 = vmul.f32 %v1232, %v1168
      %v1265 = vmul.f32 %v1233, %v1169
      %v1266 = vmul.f32 %v1234, %v1170
      %v1267 = vmul.f32 %v1235, %v1171
      %v1268 = vmul.f32 %v1236, %v1172
      %v1269 = vmul.f32 %v1237, %v1173
      %v1270 = vmul.f32 %v1238, %v1174
      %v1271 = vmul.f32 %v1239, %v1175
      %v1272 = vmul.f32 %v1240, %v1176
      %v1273 = vmul.f32 %v1241, %v1177
      %v1274 = vmul.f32 %v1242, %v1178
      %v1275 = vmul.f32 %v1243, %v1179
      %v1276 = vmul.f32 %v1244, %v1180
      %v1277 = vmul.f32 %v1245, %v1181
      %v1278 = vmul.f32 %v1246, %v1182
      %v1279 = vmul.f32 %v1247, %v1183
      %v1280 = vmul.f32 %v1248, %v1152
      %v1281 = vmul.f32 %v1249, %v1153
      %v1282 = vmul.f32 %v1250, %v1154
      %v1283 = vmul.f32 %v1251, %v1155
      %v1284 = vmul.f32 %v1252, %v1156
      %v1285 = vmul.f32 %v1253, %v1157
      %v1286 = vmul.f32 %v1254, %v1158
      %v1287 = vmul.f32 %v1255, %v1159
      %v1288 = vmul.f32 %v1256, %v1160
      %v1289 = vmul.f32 %v1257, %v1161
      %v1290 = vmul.f32 %v1258, %v1162
      %v1291 = vmul.f32 %v1259, %v1163
      %v1292 = vmul.f32 %v1260, %v1164
      %v1293 = vmul.f32 %v1261, %v1165
      %v1294 = vmul.f32 %v1262, %v1166
      %v1295 = vmul.f32 %v1263, %v1167
      %v1296 = vmul.f32 %v1264, %v1168
      %v1297 = vmul.f32 %v1265, %v1169
      %v1298 = vmul.f32 %v1266, %v1170
      %v1299 = vmul.f32 %v1267, %v1171
      %v1300 = vmul.f32 %v1268, %v1172
      %v1301 = vmul.f32 %v1269, %v1173
      %v1302 = vmul.f32 %v1270, %v1174
      %v1303 = vmul.f32 %v1271, %v1175
      %v1304 = vmul.f32 %v1272, %v1176
      %v1305 = vmul.f32 %v1273, %v1177
      %v1306 = vmul.f32 %v1274, %v1178
      %v1307 = vmul.f32 %v1275, %v1179
      %v1308 = vmul.f32 %v1276, %v1180
      %v1309 = vmul.f32 %v1277, %v1181
      %v1310 = vmul.f32 %v1278, %v1182
      %v1311 = vmul.f32 %v1279, %v1183
      %v1312 = vadd.f32 %v1152, %v1280
      %v1313 = vadd.f32 %v1153, %v1281
      %v1314 = vadd.f32 %v1154, %v1282
      %v1315 = vadd.f32 %v1155, %v1283
      %v1316 = vadd.f32 %v1156, %v1284
      %v1317 = vadd.f32 %v1157, %v1285
      %v1318 = vadd.f32 %v1158, %v1286
      %v1319 = vadd.f32 %v1159, %v1287
      %v1320 = vadd.f32 %v1160, %v1288
      %v1321 = vadd.f32 %v1161, %v1289
      %v1322 = vadd.f32 %v1162, %v1290
      %v1323 = vadd.f32 %v1163, %v1291
      %v1324 = vadd.f32 %v1164, %v1292
      %v1325 = vadd.f32 %v1165, %v1293
      %v1326 = vadd.f32 %v1166, %v1294
      %v1327 = vadd.f32 %v1167, %v1295
      %v1328 = vadd.f32 %v1168, %v1296
      %v1329 = vadd.f32 %v1169, %v1297
      %v1330 = vadd.f32 %v1170, %v1298
      %v1331 = vadd.f32 %v1171, %v1299
      %v1332 = vadd.f32 %v1172, %v1300
      %v1333 = vadd.f32 %v1173, %v1301
      %v1334 = vadd.f32 %v1174, %v1302
      %v1335 = vadd.f32 %v1175, %v1303
      %v1336 = vadd.f32 %v1176, %v1304
      %v1337 = vadd.f32 %v1177, %v1305
      %v1338 = vadd.f32 %v1178, %v1306
      %v1339 = vadd.f32 %v1179, %v1307
      %v1340 = vadd.f32 %v1180, %v1308
      %v1341 = vadd.f32 %v1181, %v1309
      %v1342 = vadd.f32 %v1182, %v1310
      %v1343 = vadd.f32 %v1183, %v1311
      %v1344 = vmul.f32 %v1312, 0.7978846
      %v1345 = vmul.f32 %v1313, 0.7978846
      %v1346 = vmul.f32 %v1314, 0.7978846
      %v1347 = vmul.f32 %v1315, 0.7978846
      %v1348 = vmul.f32 %v1316, 0.7978846
      %v1349 = vmul.f32 %v1317, 0.7978846
      %v1350 = vmul.f32 %v1318, 0.7978846
      %v1351 = vmul.f32 %v1319, 0.7978846
      %v1352 = vmul.f32 %v1320, 0.7978846
      %v1353 = vmul.f32 %v1321, 0.7978846
      %v1354 = vmul.f32 %v1322, 0.7978846
      %v1355 = vmul.f32 %v1323, 0.7978846
      %v1356 = vmul.f32 %v1324, 0.7978846
      %v1357 = vmul.f32 %v1325, 0.7978846
      %v1358 = vmul.f32 %v1326, 0.7978846
      %v1359 = vmul.f32 %v1327, 0.7978846
      %v1360 = vmul.f32 %v1328, 0.7978846
      %v1361 = vmul.f32 %v1329, 0.7978846
      %v1362 = vmul.f32 %v1330, 0.7978846
      %v1363 = vmul.f32 %v1331, 0.7978846
      %v1364 = vmul.f32 %v1332, 0.7978846
      %v1365 = vmul.f32 %v1333, 0.7978846
      %v1366 = vmul.f32 %v1334, 0.7978846
      %v1367 = vmul.f32 %v1335, 0.7978846
      %v1368 = vmul.f32 %v1336, 0.7978846
      %v1369 = vmul.f32 %v1337, 0.7978846
      %v1370 = vmul.f32 %v1338, 0.7978846
      %v1371 = vmul.f32 %v1339, 0.7978846
      %v1372 = vmul.f32 %v1340, 0.7978846
      %v1373 = vmul.f32 %v1341, 0.7978846
      %v1374 = vmul.f32 %v1342, 0.7978846
      %v1375 = vmul.f32 %v1343, 0.7978846
      %v1376 = vtanh.pop %v1344
      %v1377 = vtanh.pop %v1345
      %v1378 = vtanh.pop %v1346
      %v1379 = vtanh.pop %v1347
      %v1380 = vtanh.pop %v1348
      %v1381 = vtanh.pop %v1349
      %v1382 = vtanh.pop %v1350
      %v1383 = vtanh.pop %v1351
      %v1384 = vtanh.pop %v1352
      %v1385 = vtanh.pop %v1353
      %v1386 = vtanh.pop %v1354
      %v1387 = vtanh.pop %v1355
      %v1388 = vtanh.pop %v1356
      %v1389 = vtanh.pop %v1357
      %v1390 = vtanh.pop %v1358
      %v1391 = vtanh.pop %v1359
      %v1392 = vtanh.pop %v1360
      %v1393 = vtanh.pop %v1361
      %v1394 = vtanh.pop %v1362
      %v1395 = vtanh.pop %v1363
      %v1396 = vtanh.pop %v1364
      %v1397 = vtanh.pop %v1365
      %v1398 = vtanh.pop %v1366
      %v1399 = vtanh.pop %v1367
      %v1400 = vtanh.pop %v1368
      %v1401 = vtanh.pop %v1369
      %v1402 = vtanh.pop %v1370
      %v1403 = vtanh.pop %v1371
      %v1404 = vtanh.pop %v1372
      %v1405 = vtanh.pop %v1373
      %v1406 = vtanh.pop %v1374
      %v1407 = vtanh.pop %v1375
      %v1408 = vadd.f32 %v1376, 1.0
      %v1409 = vadd.f32 %v1377, 1.0
      %v1410 = vadd.f32 %v1378, 1.0
      %v1411 = vadd.f32 %v1379, 1.0
      %v1412 = vadd.f32 %v1380, 1.0
      %v1413 = vadd.f32 %v1381, 1.0
      %v1414 = vadd.f32 %v1382, 1.0
      %v1415 = vadd.f32 %v1383, 1.0
      %v1416 = vadd.f32 %v1384, 1.0
      %v1417 = vadd.f32 %v1385, 1.0
      %v1418 = vadd.f32 %v1386, 1.0
      %v1419 = vadd.f32 %v1387, 1.0
      %v1420 = vadd.f32 %v1388, 1.0
      %v1421 = vadd.f32 %v1389, 1.0
      %v1422 = vadd.f32 %v1390, 1.0
      %v1423 = vadd.f32 %v1391, 1.0
      %v1424 = vadd.f32 %v1392, 1.0
      %v1425 = vadd.f32 %v1393, 1.0
      %v1426 = vadd.f32 %v1394, 1.0
      %v1427 = vadd.f32 %v1395, 1.0
      %v1428 = vadd.f32 %v1396, 1.0
      %v1429 = vadd.f32 %v1397, 1.0
      %v1430 = vadd.f32 %v1398, 1.0
      %v1431 = vadd.f32 %v1399, 1.0
      %v1432 = vadd.f32 %v1400, 1.0
      %v1433 = vadd.f32 %v1401, 1.0
      %v1434 = vadd.f32 %v1402, 1.0
      %v1435 = vadd.f32 %v1403, 1.0
      %v1436 = vadd.f32 %v1404, 1.0
      %v1437 = vadd.f32 %v1405, 1.0
      %v1438 = vadd.f32 %v1406, 1.0
      %v1439 = vadd.f32 %v1407, 1.0
      %v1440 = vmul.f32 %v1184, %v1408
      %v1441 = vmul.f32 %v1185, %v1409
      %v1442 = vmul.f32 %v1186, %v1410
      %v1443 = vmul.f32 %v1187, %v1411
      %v1444 = vmul.f32 %v1188, %v1412
      %v1445 = vmul.f32 %v1189, %v1413
      %v1446 = vmul.f32 %v1190, %v1414
      %v1447 = vmul.f32 %v1191, %v1415
      %v1448 = vmul.f32 %v1192, %v1416
      %v1449 = vmul.f32 %v1193, %v1417
      %v1450 = vmul.f32 %v1194, %v1418
      %v1451 = vmul.f32 %v1195, %v1419
      %v1452 = vmul.f32 %v1196, %v1420
      %v1453 = vmul.f32 %v1197, %v1421
      %v1454 = vmul.f32 %v1198, %v1422
      %v1455 = vmul.f32 %v1199, %v1423
      %v1456 = vmul.f32 %v1200, %v1424
      %v1457 = vmul.f32 %v1201, %v1425
      %v1458 = vmul.f32 %v1202, %v1426
      %v1459 = vmul.f32 %v1203, %v1427
      %v1460 = vmul.f32 %v1204, %v1428
      %v1461 = vmul.f32 %v1205, %v1429
      %v1462 = vmul.f32 %v1206, %v1430
      %v1463 = vmul.f32 %v1207, %v1431
      %v1464 = vmul.f32 %v1208, %v1432
      %v1465 = vmul.f32 %v1209, %v1433
      %v1466 = vmul.f32 %v1210, %v1434
      %v1467 = vmul.f32 %v1211, %v1435
      %v1468 = vmul.f32 %v1212, %v1436
      %v1469 = vmul.f32 %v1213, %v1437
      %v1470 = vmul.f32 %v1214, %v1438
      %v1471 = vmul.f32 %v1215, %v1439
      %v1472 = vpack.c.bf16 %v1441, %v1440
      %v1473 = vpack.c.bf16 %v1443, %v1442
      %v1474 = vpack.c.bf16 %v1445, %v1444
      %v1475 = vpack.c.bf16 %v1447, %v1446
      %v1476 = vpack.c.bf16 %v1449, %v1448
      %v1477 = vpack.c.bf16 %v1451, %v1450
      %v1478 = vpack.c.bf16 %v1453, %v1452
      %v1479 = vpack.c.bf16 %v1455, %v1454
      %v1480 = vpack.c.bf16 %v1457, %v1456
      %v1481 = vpack.c.bf16 %v1459, %v1458
      %v1482 = vpack.c.bf16 %v1461, %v1460
      %v1483 = vpack.c.bf16 %v1463, %v1462
      %v1484 = vpack.c.bf16 %v1465, %v1464
      %v1485 = vpack.c.bf16 %v1467, %v1466
      %v1486 = vpack.c.bf16 %v1469, %v1468
      %v1487 = vpack.c.bf16 %v1471, %v1470
      %v1488 = vld [vmem:[%s6] sm:$0xf]
      %v1489 = vld [vmem:[%s6 + $0x4] sm:$0xf]
      %v1490 = vld [vmem:[%s6 + $0x8] sm:$0xf]
      %v1491 = vld [vmem:[%s6 + $0xc] sm:$0xf]
      %v1492 = vld [vmem:[%s6 + $0x10] sm:$0xf]
      %v1493 = vld [vmem:[%s6 + $0x14] sm:$0xf]
      %v1494 = vld [vmem:[%s6 + $0x18] sm:$0xf]
      %v1495 = vld [vmem:[%s6 + $0x1c] sm:$0xf]
      %v1496 = vld [vmem:[%s7] sm:$0x1]
      %v1498 = vlaneseq
      %v1499 = vshrl.u32 %v1498, 7
      %v1500 = vsub.s32 0, %v1499
      %v1501 = vrot.slane %v1496, %v1500
      %v1511 = vunpack.c.l.b16 %v1488
      %v1512 = vunpack.c.l.b16 %v1489
      %v1513 = vunpack.c.l.b16 %v1490
      %v1514 = vunpack.c.l.b16 %v1491
      %v1515 = vunpack.c.l.b16 %v1492
      %v1516 = vunpack.c.l.b16 %v1493
      %v1517 = vunpack.c.l.b16 %v1494
      %v1518 = vunpack.c.l.b16 %v1495
      %v1519 = vpack.c.b16 %v1512, %v1511
      %v1520 = vpack.c.b16 %v1514, %v1513
      %v1521 = vpack.c.b16 %v1516, %v1515
      %v1522 = vpack.c.b16 %v1518, %v1517
      %vm1527 = vcmask 523264
      %v1529 = vsel %vm1527, %v1472, 0
      %v1532 = vsel %vm1527, %v1473, 0
      %v1535 = vsel %vm1527, %v1474, 0
      %v1538 = vsel %vm1527, %v1475, 0
      %v1541 = vsel %vm1527, %v1476, 0
      %v1544 = vsel %vm1527, %v1477, 0
      %v1547 = vsel %vm1527, %v1478, 0
      %v1550 = vsel %vm1527, %v1479, 0
      %v1553 = vsel %vm1527, %v1480, 0
      %v1556 = vsel %vm1527, %v1481, 0
      %v1559 = vsel %vm1527, %v1482, 0
      %v1562 = vsel %vm1527, %v1483, 0
      %v1565 = vsel %vm1527, %v1484, 0
      %v1568 = vsel %vm1527, %v1485, 0
      %v1571 = vsel %vm1527, %v1486, 0
      %v1574 = vsel %vm1527, %v1487, 0
      %1576 = vmatprep.subr.bf16.mxu0 0
      %1577 = vmatpush1.bf16.msra.mxu0 %v1519
      %1578 = vmatprep.subr.bf16.mxu0 0
      %1579 = vmatpush1.bf16.msra.mxu0 %v1520
      %1580 = vmatprep.subr.bf16.mxu0 0
      %1581 = vmatpush1.bf16.msra.mxu0 %v1521
      %1582 = vmatprep.subr.bf16.mxu0 0
      %1583 = vmatpush1.bf16.msra.mxu0 %v1522
      %1584 = vmatprep.subr.bf16.mxu0 0
      %1585 = vmatpush1.bf16.msra.mxu0 0
      %1586 = vmatprep.subr.bf16.mxu0 0
      %1587 = vmatpush1.bf16.msra.mxu0 0
      %1588 = vmatprep.subr.bf16.mxu0 0
      %1589 = vmatpush1.bf16.msra.mxu0 0
      %1590 = vmatprep.subr.bf16.mxu0 0
      %1591 = vmatpush1.bf16.msra.mxu0 0
      %1592 = vmatprep.subr.bf16.mxu0 0
      %1593 = vmatpush1.bf16.msra.mxu0 0
      %1594 = vmatprep.subr.bf16.mxu0 0
      %1595 = vmatpush1.bf16.msra.mxu0 0
      %1596 = vmatprep.subr.bf16.mxu0 0
      %1597 = vmatpush1.bf16.msra.mxu0 0
      %1598 = vmatprep.subr.bf16.mxu0 0
      %1599 = vmatpush1.bf16.msra.mxu0 0
      %1600 = vmatprep.subr.bf16.mxu0 0
      %1601 = vmatpush1.bf16.msra.mxu0 0
      %1602 = vmatprep.subr.bf16.mxu0 0
      %1603 = vmatpush1.bf16.msra.mxu0 0
      %1604 = vmatprep.subr.bf16.mxu0 0
      %1605 = vmatpush1.bf16.msra.mxu0 0
      %1606 = vmatprep.subr.bf16.mxu0 0
      %1607 = vmatpush1.bf16.msra.mxu0 0
      %1608 = vmatprep.mubr.bf16.mxu0 0
      %1609 = vmatmul.mubr.bf16.gmra.mrb[0].mxu0 %v1529
      %v1610 = vpop.f32.mrb[0].mxu0
      %v1611 = vadd.f32 %v1501, %v1610
      %v1612 = vpop.f32.mrb[0].mxu0
      %v1613 = vpop.f32.mrb[0].mxu0
      %v1614 = vadd.f32 %v1501, %v1613
      %v1615 = vpop.f32.mrb[0].mxu0
      %1616 = vmatprep.mubr.bf16.mxu0 0
      %1617 = vmatmul.mubr.bf16.gmra.mrb[0].mxu0 %v1532
      %v1618 = vpop.f32.mrb[0].mxu0
      %v1619 = vadd.f32 %v1501, %v1618
      %v1620 = vpop.f32.mrb[0].mxu0
      %v1621 = vpop.f32.mrb[0].mxu0
      %v1622 = vadd.f32 %v1501, %v1621
      %v1623 = vpop.f32.mrb[0].mxu0
      %1624 = vmatprep.mubr.bf16.mxu0 0
      %1625 = vmatmul.mubr.bf16.gmra.mrb[0].mxu0 %v1535
      %v1626 = vpop.f32.mrb[0].mxu0
      %v1627 = vadd.f32 %v1501, %v1626
      %v1628 = vpop.f32.mrb[0].mxu0
      %v1629 = vpop.f32.mrb[0].mxu0
      %v1630 = vadd.f32 %v1501, %v1629
      %v1631 = vpop.f32.mrb[0].mxu0
      %1632 = vmatprep.mubr.bf16.mxu0 0
      %1633 = vmatmul.mubr.bf16.gmra.mrb[0].mxu0 %v1538
      %v1634 = vpop.f32.mrb[0].mxu0
      %v1635 = vadd.f32 %v1501, %v1634
      %v1636 = vpop.f32.mrb[0].mxu0
      %v1637 = vpop.f32.mrb[0].mxu0
      %v1638 = vadd.f32 %v1501, %v1637
      %v1639 = vpop.f32.mrb[0].mxu0
      %1640 = vmatprep.mubr.bf16.mxu0 0
      %1641 = vmatmul.mubr.bf16.gmra.mrb[0].mxu0 %v1541
      %v1642 = vpop.f32.mrb[0].mxu0
      %v1643 = vadd.f32 %v1501, %v1642
      %v1644 = vpop.f32.mrb[0].mxu0
      %v1645 = vpop.f32.mrb[0].mxu0
      %v1646 = vadd.f32 %v1501, %v1645
      %v1647 = vpop.f32.mrb[0].mxu0
      %1648 = vmatprep.mubr.bf16.mxu0 0
      %1649 = vmatmul.mubr.bf16.gmra.mrb[0].mxu0 %v1544
      %v1650 = vpop.f32.mrb[0].mxu0
      %v1651 = vadd.f32 %v1501, %v1650
      %v1652 = vpop.f32.mrb[0].mxu0
      %v1653 = vpop.f32.mrb[0].mxu0
      %v1654 = vadd.f32 %v1501, %v1653
      %v1655 = vpop.f32.mrb[0].mxu0
      %1656 = vmatprep.mubr.bf16.mxu0 0
      %1657 = vmatmul.mubr.bf16.gmra.mrb[0].mxu0 %v1547
      %v1658 = vpop.f32.mrb[0].mxu0
      %v1659 = vadd.f32 %v1501, %v1658
      %v1660 = vpop.f32.mrb[0].mxu0
      %v1661 = vpop.f32.mrb[0].mxu0
      %v1662 = vadd.f32 %v1501, %v1661
      %v1663 = vpop.f32.mrb[0].mxu0
      %1664 = vmatprep.mubr.bf16.mxu0 0
      %1665 = vmatmul.mubr.bf16.gmra.mrb[0].mxu0 %v1550
      %v1666 = vpop.f32.mrb[0].mxu0
      %v1667 = vadd.f32 %v1501, %v1666
      %v1668 = vpop.f32.mrb[0].mxu0
      %v1669 = vpop.f32.mrb[0].mxu0
      %v1670 = vadd.f32 %v1501, %v1669
      %v1671 = vpop.f32.mrb[0].mxu0
      %1672 = vmatprep.mubr.bf16.mxu0 0
      %1673 = vmatmul.mubr.bf16.gmra.mrb[0].mxu0 %v1553
      %v1674 = vpop.f32.mrb[0].mxu0
      %v1675 = vadd.f32 %v1501, %v1674
      %v1676 = vpop.f32.mrb[0].mxu0
      %v1677 = vpop.f32.mrb[0].mxu0
      %v1678 = vadd.f32 %v1501, %v1677
      %v1679 = vpop.f32.mrb[0].mxu0
      %1680 = vmatprep.mubr.bf16.mxu0 0
      %1681 = vmatmul.mubr.bf16.gmra.mrb[0].mxu0 %v1556
      %v1682 = vpop.f32.mrb[0].mxu0
      %v1683 = vadd.f32 %v1501, %v1682
      %v1684 = vpop.f32.mrb[0].mxu0
      %v1685 = vpop.f32.mrb[0].mxu0
      %v1686 = vadd.f32 %v1501, %v1685
      %v1687 = vpop.f32.mrb[0].mxu0
      %1688 = vmatprep.mubr.bf16.mxu0 0
      %1689 = vmatmul.mubr.bf16.gmra.mrb[0].mxu0 %v1559
      %v1690 = vpop.f32.mrb[0].mxu0
      %v1691 = vadd.f32 %v1501, %v1690
      %v1692 = vpop.f32.mrb[0].mxu0
      %v1693 = vpop.f32.mrb[0].mxu0
      %v1694 = vadd.f32 %v1501, %v1693
      %v1695 = vpop.f32.mrb[0].mxu0
      %1696 = vmatprep.mubr.bf16.mxu0 0
      %1697 = vmatmul.mubr.bf16.gmra.mrb[0].mxu0 %v1562
      %v1698 = vpop.f32.mrb[0].mxu0
      %v1699 = vadd.f32 %v1501, %v1698
      %v1700 = vpop.f32.mrb[0].mxu0
      %v1701 = vpop.f32.mrb[0].mxu0
      %v1702 = vadd.f32 %v1501, %v1701
      %v1703 = vpop.f32.mrb[0].mxu0
      %1704 = vmatprep.mubr.bf16.mxu0 0
      %1705 = vmatmul.mubr.bf16.gmra.mrb[0].mxu0 %v1565
      %v1706 = vpop.f32.mrb[0].mxu0
      %v1707 = vadd.f32 %v1501, %v1706
      %v1708 = vpop.f32.mrb[0].mxu0
      %v1709 = vpop.f32.mrb[0].mxu0
      %v1710 = vadd.f32 %v1501, %v1709
      %v1711 = vpop.f32.mrb[0].mxu0
      %1712 = vmatprep.mubr.bf16.mxu0 0
      %1713 = vmatmul.mubr.bf16.gmra.mrb[0].mxu0 %v1568
      %v1714 = vpop.f32.mrb[0].mxu0
      %v1715 = vadd.f32 %v1501, %v1714
      %v1716 = vpop.f32.mrb[0].mxu0
      %v1717 = vpop.f32.mrb[0].mxu0
      %v1718 = vadd.f32 %v1501, %v1717
      %v1719 = vpop.f32.mrb[0].mxu0
      %1720 = vmatprep.mubr.bf16.mxu0 0
      %1721 = vmatmul.mubr.bf16.gmra.mrb[0].mxu0 %v1571
      %v1722 = vpop.f32.mrb[0].mxu0
      %v1723 = vadd.f32 %v1501, %v1722
      %v1724 = vpop.f32.mrb[0].mxu0
      %v1725 = vpop.f32.mrb[0].mxu0
      %v1726 = vadd.f32 %v1501, %v1725
      %v1727 = vpop.f32.mrb[0].mxu0
      %1728 = vmatprep.mubr.bf16.mxu0 0
      %1729 = vmatmul.mubr.bf16.gmra.mrb[0].mxu0 %v1574
      %v1730 = vpop.f32.mrb[0].mxu0
      %v1731 = vadd.f32 %v1501, %v1730
      %v1732 = vpop.f32.mrb[0].mxu0
      %v1733 = vpop.f32.mrb[0].mxu0
      %v1734 = vadd.f32 %v1501, %v1733
      %v1735 = vpop.f32.mrb[0].mxu0
      %1736 = vdwg.mxu0
      %v1737 = vlaneseq
      %v1738 = vshrl.u32 %v1737, 7
      %v1739 = vadd.s32 %v1738, 8
      %v1740 = vadd.s32 %v1738, 16
      %v1741 = vadd.s32 %v1738, 24
      %s1742 = smul.u32 %s27, 32
      %v1743 = vstv %s1742
      %v1744 = vadd.s32 %v1738, %v1743
      %v1745 = vadd.s32 %v1739, %v1743
      %v1746 = vadd.s32 %v1740, %v1743
      %v1747 = vadd.s32 %v1741, %v1743
      %v1748 = vld [vmem:[%s450] sm:$0x3]
      %v1749 = vlaneseq
      %v1750 = vshrl.u32 %v1749, 7
      %v1751 = vsub.s32 0, %v1750
      %v1752 = vrot.slane %v1748, %v1751
      %v1753 = vlaneseq
      %v1754 = vshrl.u32 %v1753, 7
      %v1755 = vsub.s32 1, %v1754
      %v1756 = vrot.slane %v1748, %v1755
      %vm1757 = vcmp.eq.s32.totalorder %v1744, %v1752
      %vm1758 = vcmp.eq.s32.totalorder %v1744, %v1756
      %vm1759 = vcmp.eq.s32.totalorder %v1745, %v1752
      %vm1760 = vcmp.eq.s32.totalorder %v1745, %v1756
      %vm1761 = vcmp.eq.s32.totalorder %v1746, %v1752
      %vm1762 = vcmp.eq.s32.totalorder %v1746, %v1756
      %vm1763 = vcmp.eq.s32.totalorder %v1747, %v1752
      %vm1764 = vcmp.eq.s32.totalorder %v1747, %v1756
      %v1765 = vsel %vm1757, 1, 0
      %v1766 = vsel %vm1758, 1, 0
      %v1767 = vsel %vm1759, 1, 0
      %v1768 = vsel %vm1760, 1, 0
      %v1769 = vsel %vm1761, 1, 0
      %v1770 = vsel %vm1762, 1, 0
      %v1771 = vsel %vm1763, 1, 0
      %v1772 = vsel %vm1764, 1, 0
      %v1773 = vcvt.s32.f32 %v1765
      %v1774 = vcvt.s32.f32 %v1766
      %v1775 = vcvt.s32.f32 %v1767
      %v1776 = vcvt.s32.f32 %v1768
      %v1777 = vcvt.s32.f32 %v1769
      %v1778 = vcvt.s32.f32 %v1770
      %v1779 = vcvt.s32.f32 %v1771
      %v1780 = vcvt.s32.f32 %v1772
      %v1781 = vpack.c.bf16 %v1775, %v1773
      %v1782 = vpack.c.bf16 %v1776, %v1774
      %v1783 = vpack.c.bf16 %v1779, %v1777
      %v1784 = vpack.c.bf16 %v1780, %v1778
      %v1785 = vld [vmem:[#allocation2] sm:$0xff]
      %v1786 = vld [vmem:[#allocation2 + $0x8] sm:$0xff]
      %v1787 = vld [vmem:[#allocation2 + $0x10] sm:$0xff]
      %v1788 = vld [vmem:[#allocation2 + $0x18] sm:$0xff]
      %v1789 = vpack.c.bf16 %v1614, %v1611
      %v1790 = vpack.c.bf16 %v1622, %v1619
      %v1791 = vpack.c.bf16 %v1630, %v1627
      %v1792 = vpack.c.bf16 %v1638, %v1635
      %v1793 = vpack.c.bf16 %v1646, %v1643
      %v1794 = vpack.c.bf16 %v1654, %v1651
      %v1795 = vpack.c.bf16 %v1662, %v1659
      %v1796 = vpack.c.bf16 %v1670, %v1667
      %v1797 = vpack.c.bf16 %v1678, %v1675
      %v1798 = vpack.c.bf16 %v1686, %v1683
      %v1799 = vpack.c.bf16 %v1694, %v1691
      %v1800 = vpack.c.bf16 %v1702, %v1699
      %v1801 = vpack.c.bf16 %v1710, %v1707
      %v1802 = vpack.c.bf16 %v1718, %v1715
      %v1803 = vpack.c.bf16 %v1726, %v1723
      %v1804 = vpack.c.bf16 %v1734, %v1731
      %1805 = vmatprep.subr.bf16.mxu0 0
      %1806 = vmatpush1.bf16.msra.mxu0 %v1789
      %1807 = vmatprep.subr.bf16.mxu0 0
      %1808 = vmatpush1.bf16.msra.mxu0 %v1790
      %1809 = vmatprep.subr.bf16.mxu0 0
      %1810 = vmatpush1.bf16.msra.mxu0 %v1791
      %1811 = vmatprep.subr.bf16.mxu0 0
      %1812 = vmatpush1.bf16.msra.mxu0 %v1792
      %1813 = vmatprep.subr.bf16.mxu0 0
      %1814 = vmatpush1.bf16.msra.mxu0 %v1793
      %1815 = vmatprep.subr.bf16.mxu0 0
      %1816 = vmatpush1.bf16.msra.mxu0 %v1794
      %1817 = vmatprep.subr.bf16.mxu0 0
      %1818 = vmatpush1.bf16.msra.mxu0 %v1795
      %1819 = vmatprep.subr.bf16.mxu0 0
      %1820 = vmatpush1.bf16.msra.mxu0 %v1796
      %1821 = vmatprep.subr.bf16.mxu0 0
      %1822 = vmatpush1.bf16.msra.mxu0 %v1797
      %1823 = vmatprep.subr.bf16.mxu0 0
      %1824 = vmatpush1.bf16.msra.mxu0 %v1798
      %1825 = vmatprep.subr.bf16.mxu0 0
      %1826 = vmatpush1.bf16.msra.mxu0 %v1799
      %1827 = vmatprep.subr.bf16.mxu0 0
      %1828 = vmatpush1.bf16.msra.mxu0 %v1800
      %1829 = vmatprep.subr.bf16.mxu0 0
      %1830 = vmatpush1.bf16.msra.mxu0 %v1801
      %1831 = vmatprep.subr.bf16.mxu0 0
      %1832 = vmatpush1.bf16.msra.mxu0 %v1802
      %1833 = vmatprep.subr.bf16.mxu0 0
      %1834 = vmatpush1.bf16.msra.mxu0 %v1803
      %1835 = vmatprep.subr.bf16.mxu0 0
      %1836 = vmatpush1.bf16.msra.mxu0 %v1804
      %1837 = vmatprep.mubr.bf16.mxu0 %v1782
      %1838 = vmatmul.mubr.bf16.gmra.mrb[0].mxu0 %v1781
      %v1839 = vpop.f32.mrb[0].mxu0
      %v1840 = vadd.f32 0.0, %v1839
      %v1841 = vpop.f32.mrb[0].mxu0
      %v1842 = vpop.f32.mrb[0].mxu0
      %v1843 = vadd.f32 0.0, %v1842
      %v1844 = vpop.f32.mrb[0].mxu0
      %1845 = vmatprep.mubr.bf16.mxu0 %v1784
      %1846 = vmatmul.mubr.bf16.gmra.mrb[0].mxu0 %v1783
      %v1847 = vpop.f32.mrb[0].mxu0
      %v1848 = vadd.f32 0.0, %v1847
      %v1849 = vpop.f32.mrb[0].mxu0
      %v1850 = vpop.f32.mrb[0].mxu0
      %v1851 = vadd.f32 0.0, %v1850
      %v1852 = vpop.f32.mrb[0].mxu0
      %1853 = vdwg.mxu0
      %v1854 = vadd.f32 %v1785, %v1840
      %v1855 = vadd.f32 %v1786, %v1843
      %v1856 = vadd.f32 %v1787, %v1848
      %v1857 = vadd.f32 %v1788, %v1851
      %1858 = vst.msk [vmem:[#allocation2] sm:$0xff] %vm935, %v1854
      %1859 = vst.msk [vmem:[#allocation2 + $0x8] sm:$0xff] %vm935, %v1855
      %1860 = vst.msk [vmem:[#allocation2 + $0x10] sm:$0xff] %vm935, %v1856
      %1861 = vst.msk [vmem:[#allocation2 + $0x18] sm:$0xff] %vm935, %v1857
      %p1862 = scmp.eq.s32.totalorder %s28, 3
      // Predicated region
      $region73: #{pointgcn_forward.8} parent=67 // pred_check
        %p1863 = pneg %p1862
      $region74: #{pointgcn_forward.8} parent=67 // pred_check_branch
        %1865 = sbr.rel (%p1863) target = $region76
      $region75: #{pointgcn_forward.8} parent=67 // pred_region
        %v1866 = vld [vmem:[#allocation2] sm:$0xff]
        %v1867 = vld [vmem:[#allocation2 + $0x8] sm:$0xff]
        %v1868 = vld [vmem:[#allocation2 + $0x10] sm:$0xff]
        %v1869 = vld [vmem:[#allocation2 + $0x18] sm:$0xff]
        %v1870 = vpack.c.bf16 %v1867, %v1866
        %v1871 = vpack.c.bf16 %v1869, %v1868
        %v1872 = vld [vmem:[%s8] sm:$0xf]
        %v1873 = vld [vmem:[%s8 + $0x4] sm:$0xf]
        %v1874 = vld [vmem:[%s8 + $0x8] sm:$0xf]
        %v1875 = vld [vmem:[%s8 + $0xc] sm:$0xf]
        %v1876 = vld [vmem:[%s9] sm:$0x1]
        %v1878 = vlaneseq
        %v1879 = vshrl.u32 %v1878, 7
        %v1880 = vsub.s32 0, %v1879
        %v1881 = vrot.slane %v1876, %v1880
        %v1887 = vunpack.c.l.b16 %v1872
        %v1888 = vunpack.c.l.b16 %v1873
        %v1889 = vunpack.c.l.b16 %v1874
        %v1890 = vunpack.c.l.b16 %v1875
        %v1891 = vpack.c.b16 %v1888, %v1887
        %v1892 = vpack.c.b16 %v1890, %v1889
        %v1896 = vsel %vm935, %v1870, 0
        %v1899 = vsel %vm935, %v1871, 0
        %1901 = vmatprep.subr.bf16.mxu0 0
        %1902 = vmatpush1.bf16.msra.mxu0 %v1891
        %1903 = vmatprep.subr.bf16.mxu0 0
        %1904 = vmatpush1.bf16.msra.mxu0 %v1892
        %1905 = vmatprep.subr.bf16.mxu0 0
        %1906 = vmatpush1.bf16.msra.mxu0 0
        %1907 = vmatprep.subr.bf16.mxu0 0
        %1908 = vmatpush1.bf16.msra.mxu0 0
        %1909 = vmatprep.subr.bf16.mxu0 0
        %1910 = vmatpush1.bf16.msra.mxu0 0
        %1911 = vmatprep.subr.bf16.mxu0 0
        %1912 = vmatpush1.bf16.msra.mxu0 0
        %1913 = vmatprep.subr.bf16.mxu0 0
        %1914 = vmatpush1.bf16.msra.mxu0 0
        %1915 = vmatprep.subr.bf16.mxu0 0
        %1916 = vmatpush1.bf16.msra.mxu0 0
        %1917 = vmatprep.subr.bf16.mxu0 0
        %1918 = vmatpush1.bf16.msra.mxu0 0
        %1919 = vmatprep.subr.bf16.mxu0 0
        %1920 = vmatpush1.bf16.msra.mxu0 0
        %1921 = vmatprep.subr.bf16.mxu0 0
        %1922 = vmatpush1.bf16.msra.mxu0 0
        %1923 = vmatprep.subr.bf16.mxu0 0
        %1924 = vmatpush1.bf16.msra.mxu0 0
        %1925 = vmatprep.subr.bf16.mxu0 0
        %1926 = vmatpush1.bf16.msra.mxu0 0
        %1927 = vmatprep.subr.bf16.mxu0 0
        %1928 = vmatpush1.bf16.msra.mxu0 0
        %1929 = vmatprep.subr.bf16.mxu0 0
        %1930 = vmatpush1.bf16.msra.mxu0 0
        %1931 = vmatprep.subr.bf16.mxu0 0
        %1932 = vmatpush1.bf16.msra.mxu0 0
        %1933 = vmatprep.mubr.bf16.mxu0 0
        %1934 = vmatmul.mubr.bf16.gmra.mrb[0].mxu0 %v1896
        %v1935 = vpop.f32.mrb[0].mxu0
        %v1936 = vadd.f32 %v1881, %v1935
        %v1937 = vpop.f32.mrb[0].mxu0
        %v1938 = vpop.f32.mrb[0].mxu0
        %v1939 = vadd.f32 %v1881, %v1938
        %v1940 = vpop.f32.mrb[0].mxu0
        %1941 = vmatprep.mubr.bf16.mxu0 0
        %1942 = vmatmul.mubr.bf16.gmra.mrb[0].mxu0 %v1899
        %v1943 = vpop.f32.mrb[0].mxu0
        %v1944 = vadd.f32 %v1881, %v1943
        %v1945 = vpop.f32.mrb[0].mxu0
        %v1946 = vpop.f32.mrb[0].mxu0
        %v1947 = vadd.f32 %v1881, %v1946
        %v1948 = vpop.f32.mrb[0].mxu0
        %1949 = vdwg.mxu0
        %v1950 = vmul.f32 %v1936, 0.5
        %v1951 = vmul.f32 %v1939, 0.5
        %v1952 = vmul.f32 %v1944, 0.5
        %v1953 = vmul.f32 %v1947, 0.5
        %v1954 = vmul.f32 %v1936, 0.044715
        %v1955 = vmul.f32 %v1939, 0.044715
        %v1956 = vmul.f32 %v1944, 0.044715
        %v1957 = vmul.f32 %v1947, 0.044715
        %v1958 = vmul.f32 %v1954, %v1936
        %v1959 = vmul.f32 %v1955, %v1939
        %v1960 = vmul.f32 %v1956, %v1944
        %v1961 = vmul.f32 %v1957, %v1947
        %v1962 = vmul.f32 %v1958, %v1936
        %v1963 = vmul.f32 %v1959, %v1939
        %v1964 = vmul.f32 %v1960, %v1944
        %v1965 = vmul.f32 %v1961, %v1947
        %v1966 = vadd.f32 %v1936, %v1962
        %v1967 = vadd.f32 %v1939, %v1963
        %v1968 = vadd.f32 %v1944, %v1964
        %v1969 = vadd.f32 %v1947, %v1965
        %v1970 = vmul.f32 %v1966, 0.7978846
        %v1971 = vmul.f32 %v1967, 0.7978846
        %v1972 = vmul.f32 %v1968, 0.7978846
        %v1973 = vmul.f32 %v1969, 0.7978846
        %v1974 = vtanh.pop %v1970
        %v1975 = vtanh.pop %v1971
        %v1976 = vtanh.pop %v1972
        %v1977 = vtanh.pop %v1973
        %v1978 = vadd.f32 %v1974, 1.0
        %v1979 = vadd.f32 %v1975, 1.0
        %v1980 = vadd.f32 %v1976, 1.0
        %v1981 = vadd.f32 %v1977, 1.0
        %v1982 = vmul.f32 %v1950, %v1978
        %v1983 = vmul.f32 %v1951, %v1979
        %v1984 = vmul.f32 %v1952, %v1980
        %v1985 = vmul.f32 %v1953, %v1981
        %v1986 = vpack.c.bf16 %v1983, %v1982
        %v1987 = vpack.c.bf16 %v1985, %v1984
        %v1988 = vld [vmem:[%s10] sm:$0xf]
        %v1989 = vld [vmem:[%s10 + $0x4] sm:$0xf]
        %v1990 = vld [vmem:[%s10 + $0x8] sm:$0xf]
        %v1991 = vld [vmem:[%s10 + $0xc] sm:$0xf]
        %v1992 = vld [vmem:[%s10 + $0x10] sm:$0xf]
        %v1993 = vld [vmem:[%s10 + $0x14] sm:$0xf]
        %v1994 = vld [vmem:[%s10 + $0x18] sm:$0xf]
        %v1995 = vld [vmem:[%s10 + $0x1c] sm:$0xf]
        %v1996 = vld [vmem:[%s11] sm:$0x1]
        %v1998 = vlaneseq
        %v1999 = vshrl.u32 %v1998, 7
        %v2000 = vsub.s32 0, %v1999
        %v2001 = vrot.slane %v1996, %v2000
        %v2011 = vunpack.c.l.b16 %v1988
        %v2012 = vunpack.c.l.b16 %v1989
        %v2013 = vunpack.c.l.b16 %v1990
        %v2014 = vunpack.c.l.b16 %v1991
        %v2015 = vunpack.c.l.b16 %v1992
        %v2016 = vunpack.c.l.b16 %v1993
        %v2017 = vunpack.c.l.b16 %v1994
        %v2018 = vunpack.c.l.b16 %v1995
        %v2019 = vpack.c.b16 %v2012, %v2011
        %v2020 = vpack.c.b16 %v2014, %v2013
        %v2021 = vpack.c.b16 %v2016, %v2015
        %v2022 = vpack.c.b16 %v2018, %v2017
        %v2028 = vsel %vm1527, %v1986, 0
        %v2031 = vsel %vm1527, %v1987, 0
        %2033 = vmatprep.subr.bf16.mxu0 0
        %2034 = vmatpush1.bf16.msra.mxu0 %v2019
        %2035 = vmatprep.subr.bf16.mxu0 0
        %2036 = vmatpush1.bf16.msra.mxu0 %v2020
        %2037 = vmatprep.subr.bf16.mxu0 0
        %2038 = vmatpush1.bf16.msra.mxu0 %v2021
        %2039 = vmatprep.subr.bf16.mxu0 0
        %2040 = vmatpush1.bf16.msra.mxu0 %v2022
        %2041 = vmatprep.subr.bf16.mxu0 0
        %2042 = vmatpush1.bf16.msra.mxu0 0
        %2043 = vmatprep.subr.bf16.mxu0 0
        %2044 = vmatpush1.bf16.msra.mxu0 0
        %2045 = vmatprep.subr.bf16.mxu0 0
        %2046 = vmatpush1.bf16.msra.mxu0 0
        %2047 = vmatprep.subr.bf16.mxu0 0
        %2048 = vmatpush1.bf16.msra.mxu0 0
        %2049 = vmatprep.subr.bf16.mxu0 0
        %2050 = vmatpush1.bf16.msra.mxu0 0
        %2051 = vmatprep.subr.bf16.mxu0 0
        %2052 = vmatpush1.bf16.msra.mxu0 0
        %2053 = vmatprep.subr.bf16.mxu0 0
        %2054 = vmatpush1.bf16.msra.mxu0 0
        %2055 = vmatprep.subr.bf16.mxu0 0
        %2056 = vmatpush1.bf16.msra.mxu0 0
        %2057 = vmatprep.subr.bf16.mxu0 0
        %2058 = vmatpush1.bf16.msra.mxu0 0
        %2059 = vmatprep.subr.bf16.mxu0 0
        %2060 = vmatpush1.bf16.msra.mxu0 0
        %2061 = vmatprep.subr.bf16.mxu0 0
        %2062 = vmatpush1.bf16.msra.mxu0 0
        %2063 = vmatprep.subr.bf16.mxu0 0
        %2064 = vmatpush1.bf16.msra.mxu0 0
        %2065 = vmatprep.mubr.bf16.mxu0 0
        %2066 = vmatmul.mubr.bf16.gmra.mrb[0].mxu0 %v2028
        %v2067 = vpop.f32.mrb[0].mxu0
        %v2068 = vadd.f32 %v2001, %v2067
        %v2069 = vpop.f32.mrb[0].mxu0
        %v2070 = vpop.f32.mrb[0].mxu0
        %v2071 = vadd.f32 %v2001, %v2070
        %v2072 = vpop.f32.mrb[0].mxu0
        %2073 = vmatprep.mubr.bf16.mxu0 0
        %2074 = vmatmul.mubr.bf16.gmra.mrb[0].mxu0 %v2031
        %v2075 = vpop.f32.mrb[0].mxu0
        %v2076 = vadd.f32 %v2001, %v2075
        %v2077 = vpop.f32.mrb[0].mxu0
        %v2078 = vpop.f32.mrb[0].mxu0
        %v2079 = vadd.f32 %v2001, %v2078
        %v2080 = vpop.f32.mrb[0].mxu0
        %2081 = vdwg.mxu0
        %2082 = vst.msk [vmem:[%s468] sm:$0xff] %vm935, %v2068
        %2083 = vst.msk [vmem:[%s468 + $0x8] sm:$0xff] %vm935, %v2071
        %2084 = vst.msk [vmem:[%s468 + $0x10] sm:$0xff] %vm935, %v2076
        %2085 = vst.msk [vmem:[%s468 + $0x18] sm:$0xff] %vm935, %v2079
      $region76: #{pointgcn_forward.8} parent=67 // pred_fallthru
        _
      %s2086 = smul.u32 4, %s27
      %p2087 = scmp.lt.s32.totalorder %s2086, 7
      %s2088 = scalar_select %p2087, %s2086, 7
      %s2089 = smul.addr %s2088, 8
      %s2090 = scalar_lea.vmem %s12, %s2089
      // Predicated region
      $region77: #{pointgcn_forward.8} parent=67 // pred_check
        %p2091 = pneg %p320
      $region78: #{pointgcn_forward.8} parent=67 // pred_check_branch
        %2093 = sbr.rel (%p2091) target = $region80
      $region79: #{pointgcn_forward.8} parent=67 // pred_region
        %s2094 = smul.u32 4, %s27
      $region80: #{pointgcn_forward.8} parent=67 // pred_fallthru
        _
    $region68: #{pointgcn_forward.8} parent=5 // pred_fallthru
      _
    %p2095 = scmp.le.s32.totalorder 2, %s18
    // Predicated region
    $region81: #{pointgcn_forward.8} parent=5 // pred_check
      %p2096 = pneg %p2095
    $region82: #{pointgcn_forward.8} parent=5 // pred_check_branch
      %2098 = sbr.rel (%p2096) target = $region84
    $region83: #{pointgcn_forward.8} parent=5 // pred_region
      %s2099 = ssub.s32 %s18, 2
      // Predicated region
      $region85: #{pointgcn_forward.8} parent=83 // pred_check
        %p2100 = pneg %p326
      $region86: #{pointgcn_forward.8} parent=83 // pred_check_branch
        %2102 = sbr.rel (%p2100) target = $region88
      $region87: #{pointgcn_forward.8} parent=83 // pred_region
        %s2103 = smul.u32 4, %s29
        %p2104 = scmp.lt.s32.totalorder %s2103, 7
        %s2105 = scalar_select %p2104, %s2103, 7
        %s2106 = smul.addr %s2105, 8
        %s2107 = scalar_lea.vmem %s12, %s2106
      $region88: #{pointgcn_forward.8} parent=83 // pred_fallthru
        _
    $region84: #{pointgcn_forward.8} parent=5 // pred_fallthru
      _
  $region6: #{pointgcn_forward.8} parent=0 // loop_footer
    %s22 = sadd.s32 1, %s18
  $region7: #{pointgcn_forward.8} parent=0 // loop_footer_branch
    %17 = sbr.rel target = $region3
  $region8: #{pointgcn_forward.8} parent=0 // loop_exit
    _

// kernel: pointgcn_forward.6
$region0: #{pointgcn_forward.6}
  #allocation0 [shape = 'u32[]', space=smem, size = 0x4, offset = 0x4, fixed_abs, tag = 'smem constant byte address 0x4 - core index']
  #allocation1 [shape = 'u32[144,128]{1,0:T(1,128)}', space=vmem, size = 0x12000, scoped, tag = 'internal scratch']
  #allocation2 [shape = 'f32[32,32]{1,0:T(8,128)}', space=vmem, size = 0x4000, scoped, tag = 'scratch operand']
  %s0 = inlined_call_operand.vmem [shape: s32[1,1024], index: 0, kind: input, shape index: {}]
  %s1 = inlined_call_operand.vmem [shape: bf16[1024,32], index: 1, kind: input, shape index: {}]
  %s2 = inlined_call_operand.vmem [shape: bf16[1024,8], index: 2, kind: input, shape index: {}]
  %s3 = inlined_call_operand.vmem [shape: bf16[32,64], index: 3, kind: input, shape index: {}]
  %s4 = inlined_call_operand.vmem [shape: bf16[8,64], index: 4, kind: input, shape index: {}]
  %s5 = inlined_call_operand.vmem [shape: f32[1,64], index: 5, kind: input, shape index: {}]
  %s6 = inlined_call_operand.vmem [shape: bf16[64,32], index: 6, kind: input, shape index: {}]
  %s7 = inlined_call_operand.vmem [shape: f32[1,32], index: 7, kind: input, shape index: {}]
  %s8 = inlined_call_operand.vmem [shape: bf16[32,64], index: 8, kind: input, shape index: {}]
  %s9 = inlined_call_operand.vmem [shape: f32[1,64], index: 9, kind: input, shape index: {}]
  %s10 = inlined_call_operand.vmem [shape: bf16[64,32], index: 10, kind: input, shape index: {}]
  %s11 = inlined_call_operand.vmem [shape: f32[1,32], index: 11, kind: input, shape index: {}]
  %s12 = inlined_call_operand.vmem [shape: f32[64,32], index: 12, kind: output, shape index: {}]
  %s13 = sld [smem:[#allocation0]]
  $region89: #{pointgcn_forward.6} parent=0
    _
  %s15 = ssub.s32 1, %s13
  %s16 = scalar_select 0, %s15, %s13
  loop: start=0, step=1, limit=10
  $region2: #{pointgcn_forward.6} parent=0 // loop_pre_header
    _
  $region3: #{pointgcn_forward.6} parent=0 // loop_header
    %s18 = sphi 0, %s22
    %p19 = scmp.ge.s32.totalorder %s18, 10
    %s25 = sphi 0, %s37
    %s26 = sphi 0, %s33
    %s27 = sphi 0, %s25
    %s28 = sphi 0, %s26
    %s29 = sphi 0, %s27
    %s30 = sphi 0, %s28
    %s40 = sphi 0, %s42
    %s43 = sphi 0, %s40
    %s44 = sphi 0, %s43
    %s60 = sphi 0, %s44
    %s66 = sphi 0, %s68
    %s69 = sphi 0, %s66
    %s70 = sphi 0, %s69
    %s86 = sphi 0, %s70
    %s92 = sphi 0, %s94
    %s95 = sphi 0, %s92
    %s96 = sphi 0, %s95
    %s112 = sphi 0, %s96
    %s116 = sphi 0, %s116
    %s118 = sphi 0, %s116
    %s119 = sphi 0, %s118
    %s133 = sphi 0, %s119
    %s137 = sphi 0, %s137
    %s139 = sphi 0, %s137
    %s140 = sphi 0, %s139
    %s154 = sphi 0, %s140
    %s158 = sphi 0, %s158
    %s160 = sphi 0, %s158
    %s161 = sphi 0, %s160
    %s175 = sphi 0, %s161
    %s179 = sphi 0, %s179
    %s181 = sphi 0, %s179
    %s182 = sphi 0, %s181
    %s196 = sphi 0, %s182
    %s200 = sphi 0, %s200
    %s202 = sphi 0, %s200
    %s203 = sphi 0, %s202
    %s217 = sphi 0, %s203
    %s221 = sphi 0, %s221
    %s223 = sphi 0, %s221
    %s224 = sphi 0, %s223
    %s238 = sphi 0, %s224
    %s242 = sphi 0, %s242
    %s244 = sphi 0, %s242
    %s245 = sphi 0, %s244
    %s259 = sphi 0, %s245
    %s263 = sphi 0, %s263
    %s265 = sphi 0, %s263
    %s266 = sphi 0, %s265
    %s280 = sphi 0, %s266
    %s284 = sphi 0, %s284
    %s286 = sphi 0, %s284
    %s287 = sphi 0, %s286
    %s301 = sphi 0, %s287
    %s307 = sphi 0, %s309
    %s310 = sphi 0, %s307
    %s311 = sphi 0, %s310
    %s327 = sphi 0, %s311
  $region4: #{pointgcn_forward.6} parent=0 // loop_header_branch
    %21 = sbr.rel (%p19) target = $region8
  $region5: #{pointgcn_forward.6} parent=0 // loop_body
    %s23 = ssub.s32 %s18, 1
    %s24 = ssub.s32 %s18, 2
    %s31 = sadd.s32 1, %s26
    %p32 = scmp.ge.s32.totalorder %s31, 4
    %s33 = scalar_select %p32, 0, %s31
    %s34 = sadd.s32 1, %s25
    %s35 = scalar_select %p32, %s34, %s25
    %p36 = scmp.ge.s32.totalorder %s35, 2
    %s37 = scalar_select %p36, 0, %s35
    %s38 = ssub.s32 %s26, %s33
    %p39 = scmp.eq.s32.totalorder %s38, 0
    %s41 = sadd.s32 %s40, 1
    %s42 = scalar_select %p39, %s40, %s41
    %p45 = pneg %p39
    %p46 = scmp.eq.s32.totalorder %s18, 7
    %p47 = por %p45, %p46
    %p48 = scmp.ne.s32.totalorder %s40, %s43
    %p49 = scmp.eq.s32.totalorder %s18, 0
    %p50 = por %p48, %p49
    %p51 = scmp.ne.s32.totalorder %s40, %s43
    %p52 = scmp.eq.s32.totalorder %s23, 7
    %p53 = por %p51, %p52
    %p54 = scmp.ne.s32.totalorder %s43, %s44
    %p55 = scmp.eq.s32.totalorder %s23, 0
    %p56 = por %p54, %p55
    %p57 = scmp.ne.s32.totalorder %s43, %s44
    %p58 = scmp.eq.s32.totalorder %s24, 7
    %p59 = por %p57, %p58
    %p61 = scmp.ne.s32.totalorder %s44, %s60
    %p62 = scmp.eq.s32.totalorder %s24, 0
    %p63 = por %p61, %p62
    %s64 = ssub.s32 %s26, %s33
    %p65 = scmp.eq.s32.totalorder %s64, 0
    %s67 = sadd.s32 %s66, 1
    %s68 = scalar_select %p65, %s66, %s67
    %p71 = pneg %p65
    %p72 = scmp.eq.s32.totalorder %s18, 7
    %p73 = por %p71, %p72
    %p74 = scmp.ne.s32.totalorder %s66, %s69
    %p75 = scmp.eq.s32.totalorder %s18, 0
    %p76 = por %p74, %p75
    %p77 = scmp.ne.s32.totalorder %s66, %s69
    %p78 = scmp.eq.s32.totalorder %s23, 7
    %p79 = por %p77, %p78
    %p80 = scmp.ne.s32.totalorder %s69, %s70
    %p81 = scmp.eq.s32.totalorder %s23, 0
    %p82 = por %p80, %p81
    %p83 = scmp.ne.s32.totalorder %s69, %s70
    %p84 = scmp.eq.s32.totalorder %s24, 7
    %p85 = por %p83, %p84
    %p87 = scmp.ne.s32.totalorder %s70, %s86
    %p88 = scmp.eq.s32.totalorder %s24, 0
    %p89 = por %p87, %p88
    %s90 = ssub.s32 %s26, %s33
    %p91 = scmp.eq.s32.totalorder %s90, 0
    %s93 = sadd.s32 %s92, 1
    %s94 = scalar_select %p91, %s92, %s93
    %p97 = pneg %p91
    %p98 = scmp.eq.s32.totalorder %s18, 7
    %p99 = por %p97, %p98
    %p100 = scmp.ne.s32.totalorder %s92, %s95
    %p101 = scmp.eq.s32.totalorder %s18, 0
    %p102 = por %p100, %p101
    %p103 = scmp.ne.s32.totalorder %s92, %s95
    %p104 = scmp.eq.s32.totalorder %s23, 7
    %p105 = por %p103, %p104
    %p106 = scmp.ne.s32.totalorder %s95, %s96
    %p107 = scmp.eq.s32.totalorder %s23, 0
    %p108 = por %p106, %p107
    %p109 = scmp.ne.s32.totalorder %s95, %s96
    %p110 = scmp.eq.s32.totalorder %s24, 7
    %p111 = por %p109, %p110
    %p113 = scmp.ne.s32.totalorder %s96, %s112
    %p114 = scmp.eq.s32.totalorder %s24, 0
    %p115 = por %p113, %p114
    %s117 = sadd.s32 %s116, 1
    %p120 = scmp.eq.s32.totalorder %s18, 7
    %p121 = scmp.ne.s32.totalorder %s116, %s118
    %p122 = scmp.eq.s32.totalorder %s18, 0
    %p123 = por %p121, %p122
    %p124 = scmp.ne.s32.totalorder %s116, %s118
    %p125 = scmp.eq.s32.totalorder %s23, 7
    %p126 = por %p124, %p125
    %p127 = scmp.ne.s32.totalorder %s118, %s119
    %p128 = scmp.eq.s32.totalorder %s23, 0
    %p129 = por %p127, %p128
    %p130 = scmp.ne.s32.totalorder %s118, %s119
    %p131 = scmp.eq.s32.totalorder %s24, 7
    %p132 = por %p130, %p131
    %p134 = scmp.ne.s32.totalorder %s119, %s133
    %p135 = scmp.eq.s32.totalorder %s24, 0
    %p136 = por %p134, %p135
    %s138 = sadd.s32 %s137, 1
    %p141 = scmp.eq.s32.totalorder %s18, 7
    %p142 = scmp.ne.s32.totalorder %s137, %s139
    %p143 = scmp.eq.s32.totalorder %s18, 0
    %p144 = por %p142, %p143
    %p145 = scmp.ne.s32.totalorder %s137, %s139
    %p146 = scmp.eq.s32.totalorder %s23, 7
    %p147 = por %p145, %p146
    %p148 = scmp.ne.s32.totalorder %s139, %s140
    %p149 = scmp.eq.s32.totalorder %s23, 0
    %p150 = por %p148, %p149
    %p151 = scmp.ne.s32.totalorder %s139, %s140
    %p152 = scmp.eq.s32.totalorder %s24, 7
    %p153 = por %p151, %p152
    %p155 = scmp.ne.s32.totalorder %s140, %s154
    %p156 = scmp.eq.s32.totalorder %s24, 0
    %p157 = por %p155, %p156
    %s159 = sadd.s32 %s158, 1
    %p162 = scmp.eq.s32.totalorder %s18, 7
    %p163 = scmp.ne.s32.totalorder %s158, %s160
    %p164 = scmp.eq.s32.totalorder %s18, 0
    %p165 = por %p163, %p164
    %p166 = scmp.ne.s32.totalorder %s158, %s160
    %p167 = scmp.eq.s32.totalorder %s23, 7
    %p168 = por %p166, %p167
    %p169 = scmp.ne.s32.totalorder %s160, %s161
    %p170 = scmp.eq.s32.totalorder %s23, 0
    %p171 = por %p169, %p170
    %p172 = scmp.ne.s32.totalorder %s160, %s161
    %p173 = scmp.eq.s32.totalorder %s24, 7
    %p174 = por %p172, %p173
    %p176 = scmp.ne.s32.totalorder %s161, %s175
    %p177 = scmp.eq.s32.totalorder %s24, 0
    %p178 = por %p176, %p177
    %s180 = sadd.s32 %s179, 1
    %p183 = scmp.eq.s32.totalorder %s18, 7
    %p184 = scmp.ne.s32.totalorder %s179, %s181
    %p185 = scmp.eq.s32.totalorder %s18, 0
    %p186 = por %p184, %p185
    %p187 = scmp.ne.s32.totalorder %s179, %s181
    %p188 = scmp.eq.s32.totalorder %s23, 7
    %p189 = por %p187, %p188
    %p190 = scmp.ne.s32.totalorder %s181, %s182
    %p191 = scmp.eq.s32.totalorder %s23, 0
    %p192 = por %p190, %p191
    %p193 = scmp.ne.s32.totalorder %s181, %s182
    %p194 = scmp.eq.s32.totalorder %s24, 7
    %p195 = por %p193, %p194
    %p197 = scmp.ne.s32.totalorder %s182, %s196
    %p198 = scmp.eq.s32.totalorder %s24, 0
    %p199 = por %p197, %p198
    %s201 = sadd.s32 %s200, 1
    %p204 = scmp.eq.s32.totalorder %s18, 7
    %p205 = scmp.ne.s32.totalorder %s200, %s202
    %p206 = scmp.eq.s32.totalorder %s18, 0
    %p207 = por %p205, %p206
    %p208 = scmp.ne.s32.totalorder %s200, %s202
    %p209 = scmp.eq.s32.totalorder %s23, 7
    %p210 = por %p208, %p209
    %p211 = scmp.ne.s32.totalorder %s202, %s203
    %p212 = scmp.eq.s32.totalorder %s23, 0
    %p213 = por %p211, %p212
    %p214 = scmp.ne.s32.totalorder %s202, %s203
    %p215 = scmp.eq.s32.totalorder %s24, 7
    %p216 = por %p214, %p215
    %p218 = scmp.ne.s32.totalorder %s203, %s217
    %p219 = scmp.eq.s32.totalorder %s24, 0
    %p220 = por %p218, %p219
    %s222 = sadd.s32 %s221, 1
    %p225 = scmp.eq.s32.totalorder %s18, 7
    %p226 = scmp.ne.s32.totalorder %s221, %s223
    %p227 = scmp.eq.s32.totalorder %s18, 0
    %p228 = por %p226, %p227
    %p229 = scmp.ne.s32.totalorder %s221, %s223
    %p230 = scmp.eq.s32.totalorder %s23, 7
    %p231 = por %p229, %p230
    %p232 = scmp.ne.s32.totalorder %s223, %s224
    %p233 = scmp.eq.s32.totalorder %s23, 0
    %p234 = por %p232, %p233
    %p235 = scmp.ne.s32.totalorder %s223, %s224
    %p236 = scmp.eq.s32.totalorder %s24, 7
    %p237 = por %p235, %p236
    %p239 = scmp.ne.s32.totalorder %s224, %s238
    %p240 = scmp.eq.s32.totalorder %s24, 0
    %p241 = por %p239, %p240
    %s243 = sadd.s32 %s242, 1
    %p246 = scmp.eq.s32.totalorder %s18, 7
    %p247 = scmp.ne.s32.totalorder %s242, %s244
    %p248 = scmp.eq.s32.totalorder %s18, 0
    %p249 = por %p247, %p248
    %p250 = scmp.ne.s32.totalorder %s242, %s244
    %p251 = scmp.eq.s32.totalorder %s23, 7
    %p252 = por %p250, %p251
    %p253 = scmp.ne.s32.totalorder %s244, %s245
    %p254 = scmp.eq.s32.totalorder %s23, 0
    %p255 = por %p253, %p254
    %p256 = scmp.ne.s32.totalorder %s244, %s245
    %p257 = scmp.eq.s32.totalorder %s24, 7
    %p258 = por %p256, %p257
    %p260 = scmp.ne.s32.totalorder %s245, %s259
    %p261 = scmp.eq.s32.totalorder %s24, 0
    %p262 = por %p260, %p261
    %s264 = sadd.s32 %s263, 1
    %p267 = scmp.eq.s32.totalorder %s18, 7
    %p268 = scmp.ne.s32.totalorder %s263, %s265
    %p269 = scmp.eq.s32.totalorder %s18, 0
    %p270 = por %p268, %p269
    %p271 = scmp.ne.s32.totalorder %s263, %s265
    %p272 = scmp.eq.s32.totalorder %s23, 7
    %p273 = por %p271, %p272
    %p274 = scmp.ne.s32.totalorder %s265, %s266
    %p275 = scmp.eq.s32.totalorder %s23, 0
    %p276 = por %p274, %p275
    %p277 = scmp.ne.s32.totalorder %s265, %s266
    %p278 = scmp.eq.s32.totalorder %s24, 7
    %p279 = por %p277, %p278
    %p281 = scmp.ne.s32.totalorder %s266, %s280
    %p282 = scmp.eq.s32.totalorder %s24, 0
    %p283 = por %p281, %p282
    %s285 = sadd.s32 %s284, 1
    %p288 = scmp.eq.s32.totalorder %s18, 7
    %p289 = scmp.ne.s32.totalorder %s284, %s286
    %p290 = scmp.eq.s32.totalorder %s18, 0
    %p291 = por %p289, %p290
    %p292 = scmp.ne.s32.totalorder %s284, %s286
    %p293 = scmp.eq.s32.totalorder %s23, 7
    %p294 = por %p292, %p293
    %p295 = scmp.ne.s32.totalorder %s286, %s287
    %p296 = scmp.eq.s32.totalorder %s23, 0
    %p297 = por %p295, %p296
    %p298 = scmp.ne.s32.totalorder %s286, %s287
    %p299 = scmp.eq.s32.totalorder %s24, 7
    %p300 = por %p298, %p299
    %p302 = scmp.ne.s32.totalorder %s287, %s301
    %p303 = scmp.eq.s32.totalorder %s24, 0
    %p304 = por %p302, %p303
    %s305 = ssub.s32 %s25, %s37
    %p306 = scmp.eq.s32.totalorder %s305, 0
    %s308 = sadd.s32 %s307, 1
    %s309 = scalar_select %p306, %s307, %s308
    %p312 = pneg %p306
    %p313 = scmp.eq.s32.totalorder %s18, 7
    %p314 = por %p312, %p313
    %p315 = scmp.ne.s32.totalorder %s307, %s310
    %p316 = scmp.eq.s32.totalorder %s18, 0
    %p317 = por %p315, %p316
    %p318 = scmp.ne.s32.totalorder %s307, %s310
    %p319 = scmp.eq.s32.totalorder %s23, 7
    %p320 = por %p318, %p319
    %p321 = scmp.ne.s32.totalorder %s310, %s311
    %p322 = scmp.eq.s32.totalorder %s23, 0
    %p323 = por %p321, %p322
    %p324 = scmp.ne.s32.totalorder %s310, %s311
    %p325 = scmp.eq.s32.totalorder %s24, 7
    %p326 = por %p324, %p325
    %p328 = scmp.ne.s32.totalorder %s311, %s327
    %p329 = scmp.eq.s32.totalorder %s24, 0
    %p330 = por %p328, %p329
    %p331 = scmp.le.s32.totalorder 1, %s18
    %p332 = scmp.lt.s32.totalorder %s18, 9
    %p333 = pnand %p331, %p332
    %p334 = pneg %p333
    // Predicated region
    $region9: #{pointgcn_forward.6} parent=5 // pred_check
      _
    $region10: #{pointgcn_forward.6} parent=5 // pred_check_branch
      %336 = sbr.rel (%p333) target = $region12
    $region11: #{pointgcn_forward.6} parent=5 // pred_region
      %s337 = ssub.s32 %s18, 1
      // Predicated region
      $region13: #{pointgcn_forward.6} parent=11 // pred_check
        %p338 = pneg %p129
      $region14: #{pointgcn_forward.6} parent=11 // pred_check_branch
        %340 = sbr.rel (%p338) target = $region16
      $region15: #{pointgcn_forward.6} parent=11 // pred_region
        _
      $region16: #{pointgcn_forward.6} parent=11 // pred_fallthru
        _
      // Predicated region
      $region17: #{pointgcn_forward.6} parent=11 // pred_check
        %p341 = pneg %p150
      $region18: #{pointgcn_forward.6} parent=11 // pred_check_branch
        %343 = sbr.rel (%p341) target = $region20
      $region19: #{pointgcn_forward.6} parent=11 // pred_region
        _
      $region20: #{pointgcn_forward.6} parent=11 // pred_fallthru
        _
      // Predicated region
      $region21: #{pointgcn_forward.6} parent=11 // pred_check
        %p344 = pneg %p171
      $region22: #{pointgcn_forward.6} parent=11 // pred_check_branch
        %346 = sbr.rel (%p344) target = $region24
      $region23: #{pointgcn_forward.6} parent=11 // pred_region
        _
      $region24: #{pointgcn_forward.6} parent=11 // pred_fallthru
        _
      // Predicated region
      $region25: #{pointgcn_forward.6} parent=11 // pred_check
        %p347 = pneg %p192
      $region26: #{pointgcn_forward.6} parent=11 // pred_check_branch
        %349 = sbr.rel (%p347) target = $region28
      $region27: #{pointgcn_forward.6} parent=11 // pred_region
        _
      $region28: #{pointgcn_forward.6} parent=11 // pred_fallthru
        _
      // Predicated region
      $region29: #{pointgcn_forward.6} parent=11 // pred_check
        %p350 = pneg %p213
      $region30: #{pointgcn_forward.6} parent=11 // pred_check_branch
        %352 = sbr.rel (%p350) target = $region32
      $region31: #{pointgcn_forward.6} parent=11 // pred_region
        _
      $region32: #{pointgcn_forward.6} parent=11 // pred_fallthru
        _
      // Predicated region
      $region33: #{pointgcn_forward.6} parent=11 // pred_check
        %p353 = pneg %p234
      $region34: #{pointgcn_forward.6} parent=11 // pred_check_branch
        %355 = sbr.rel (%p353) target = $region36
      $region35: #{pointgcn_forward.6} parent=11 // pred_region
        _
      $region36: #{pointgcn_forward.6} parent=11 // pred_fallthru
        _
      // Predicated region
      $region37: #{pointgcn_forward.6} parent=11 // pred_check
        %p356 = pneg %p255
      $region38: #{pointgcn_forward.6} parent=11 // pred_check_branch
        %358 = sbr.rel (%p356) target = $region40
      $region39: #{pointgcn_forward.6} parent=11 // pred_region
        _
      $region40: #{pointgcn_forward.6} parent=11 // pred_fallthru
        _
      // Predicated region
      $region41: #{pointgcn_forward.6} parent=11 // pred_check
        %p359 = pneg %p276
      $region42: #{pointgcn_forward.6} parent=11 // pred_check_branch
        %361 = sbr.rel (%p359) target = $region44
      $region43: #{pointgcn_forward.6} parent=11 // pred_region
        _
      $region44: #{pointgcn_forward.6} parent=11 // pred_fallthru
        _
      // Predicated region
      $region45: #{pointgcn_forward.6} parent=11 // pred_check
        %p362 = pneg %p297
      $region46: #{pointgcn_forward.6} parent=11 // pred_check_branch
        %364 = sbr.rel (%p362) target = $region48
      $region47: #{pointgcn_forward.6} parent=11 // pred_region
        _
      $region48: #{pointgcn_forward.6} parent=11 // pred_fallthru
        _
    $region12: #{pointgcn_forward.6} parent=5 // pred_fallthru
      _
    %p365 = scmp.lt.s32.totalorder %s18, 8
    // Predicated region
    $region49: #{pointgcn_forward.6} parent=5 // pred_check
      %p366 = pneg %p365
    $region50: #{pointgcn_forward.6} parent=5 // pred_check_branch
      %368 = sbr.rel (%p366) target = $region52
    $region51: #{pointgcn_forward.6} parent=5 // pred_region
      // Predicated region
      $region53: #{pointgcn_forward.6} parent=51 // pred_check
        %p369 = pneg %p50
      $region54: #{pointgcn_forward.6} parent=51 // pred_check_branch
        %371 = sbr.rel (%p369) target = $region56
      $region55: #{pointgcn_forward.6} parent=51 // pred_region
        %s372 = smul.u32 2, %s26
        %p373 = scmp.lt.s32.totalorder %s372, 7
        %s374 = scalar_select %p373, %s372, 7
        %s375 = scalar_lea.vmem %s0, %s374
        %s376 = smul.u32 2, %s26
      $region56: #{pointgcn_forward.6} parent=51 // pred_fallthru
        _
      // Predicated region
      $region57: #{pointgcn_forward.6} parent=51 // pred_check
        %p377 = pneg %p76
      $region58: #{pointgcn_forward.6} parent=51 // pred_check_branch
        %379 = sbr.rel (%p377) target = $region60
      $region59: #{pointgcn_forward.6} parent=51 // pred_region
        %s380 = smul.u32 32, %s26
        %p381 = scmp.lt.s32.totalorder %s380, 127
        %s382 = scalar_select %p381, %s380, 127
        %s383 = smul.addr %s382, 4
        %s384 = scalar_lea.vmem %s1, %s383
        %s385 = smul.u32 32, %s26
      $region60: #{pointgcn_forward.6} parent=51 // pred_fallthru
        _
      // Predicated region
      $region61: #{pointgcn_forward.6} parent=51 // pred_check
        %p386 = pneg %p102
      $region62: #{pointgcn_forward.6} parent=51 // pred_check_branch
        %388 = sbr.rel (%p386) target = $region64
      $region63: #{pointgcn_forward.6} parent=51 // pred_region
        %s389 = smul.u32 32, %s26
        %p390 = scmp.lt.s32.totalorder %s389, 127
        %s391 = scalar_select %p390, %s389, 127
        %s392 = smul.addr %s391, 4
        %s393 = scalar_lea.vmem %s2, %s392
        %s394 = smul.u32 32, %s26
      $region64: #{pointgcn_forward.6} parent=51 // pred_fallthru
        _
    $region52: #{pointgcn_forward.6} parent=5 // pred_fallthru
      _
    %p395 = scmp.le.s32.totalorder 1, %s18
    %p396 = scmp.lt.s32.totalorder %s18, 9
    %p397 = pnand %p395, %p396
    %p398 = pneg %p397
    // Predicated region
    $region65: #{pointgcn_forward.6} parent=5 // pred_check
      _
    $region66: #{pointgcn_forward.6} parent=5 // pred_check_branch
      %400 = sbr.rel (%p397) target = $region68
    $region67: #{pointgcn_forward.6} parent=5 // pred_region
      %s401 = ssub.s32 %s18, 1
      %s402 = smul.u32 2, %s28
      %p403 = scmp.lt.s32.totalorder %s402, 7
      %s404 = scalar_select %p403, %s402, 7
      %s405 = scalar_lea.vmem %s0, %s404
      %p406 = pneg %p56
      %p407 = pneg %p53
      %s408 = smul.u32 32, %s28
      %p409 = scmp.lt.s32.totalorder %s408, 127
      %s410 = scalar_select %p409, %s408, 127
      %s411 = smul.addr %s410, 4
      %s412 = scalar_lea.vmem %s1, %s411
      %p413 = pneg %p82
      %p414 = pneg %p79
      %s415 = smul.u32 32, %s28
      %p416 = scmp.lt.s32.totalorder %s415, 127
      %s417 = scalar_select %p416, %s415, 127
      %s418 = smul.addr %s417, 4
      %s419 = scalar_lea.vmem %s2, %s418
      %p420 = pneg %p108
      %p421 = pneg %p105
      %p422 = pneg %p129
      %p423 = pneg %p126
      %p424 = pneg %p150
      %p425 = pneg %p147
      %p426 = pneg %p171
      %p427 = pneg %p168
      %p428 = pneg %p192
      %p429 = pneg %p189
      %p430 = pneg %p213
      %p431 = pneg %p210
      %p432 = pneg %p234
      %p433 = pneg %p231
      %p434 = pneg %p255
      %p435 = pneg %p252
      %p436 = pneg %p276
      %p437 = pneg %p273
      %p438 = pneg %p297
      %p439 = pneg %p294
      %p440 = pneg %p323
      %p441 = pneg %p320
      %s442 = smul.u32 4, %s27
      %p443 = scmp.lt.s32.totalorder %s442, 7
      %s444 = scalar_select %p443, %s442, 7
      %s445 = smul.addr %s444, 8
      %s446 = scalar_lea.vmem %s12, %s445
      %s447 = smul.u32 2, %s28
      %p448 = scmp.lt.s32.totalorder %s447, 7
      %s449 = scalar_select %p448, %s447, 7
      %s450 = scalar_lea.vmem %s0, %s449
      %s451 = smul.u32 2, %s28
      %s452 = smul.u32 32, %s28
      %p453 = scmp.lt.s32.totalorder %s452, 127
      %s454 = scalar_select %p453, %s452, 127
      %s455 = smul.addr %s454, 4
      %s456 = scalar_lea.vmem %s1, %s455
      %s457 = smul.u32 32, %s28
      %s458 = smul.u32 32, %s28
      %p459 = scmp.lt.s32.totalorder %s458, 127
      %s460 = scalar_select %p459, %s458, 127
      %s461 = smul.addr %s460, 4
      %s462 = scalar_lea.vmem %s2, %s461
      %s463 = smul.u32 32, %s28
      %s464 = smul.u32 4, %s27
      %p465 = scmp.lt.s32.totalorder %s464, 7
      %s466 = scalar_select %p465, %s464, 7
      %s467 = smul.addr %s466, 8
      %s468 = scalar_lea.vmem %s12, %s467
      %s469 = smul.u32 4, %s27
      %p471 = scmp.eq.s32.totalorder %s28, 0
      // Predicated region
      $region69: #{pointgcn_forward.6} parent=67 // pred_check
        %p472 = pneg %p471
      $region70: #{pointgcn_forward.6} parent=67 // pred_check_branch
        %474 = sbr.rel (%p472) target = $region72
      $region71: #{pointgcn_forward.6} parent=67 // pred_region
        %vm475 = vcmask 261120
        %476 = vst.msk [vmem:[#allocation2] sm:$0xff] %vm475, 0.0
        %477 = vst.msk [vmem:[#allocation2 + $0x8] sm:$0xff] %vm475, 0.0
        %478 = vst.msk [vmem:[#allocation2 + $0x10] sm:$0xff] %vm475, 0.0
        %479 = vst.msk [vmem:[#allocation2 + $0x18] sm:$0xff] %vm475, 0.0
      $region72: #{pointgcn_forward.6} parent=67 // pred_fallthru
        _
      %v480 = vld [vmem:[%s456] sm:$0xf]
      %v481 = vld [vmem:[%s456 + $0x4] sm:$0xf]
      %v482 = vld [vmem:[%s456 + $0x8] sm:$0xf]
      %v483 = vld [vmem:[%s456 + $0xc] sm:$0xf]
      %v484 = vld [vmem:[%s456 + $0x10] sm:$0xf]
      %v485 = vld [vmem:[%s456 + $0x14] sm:$0xf]
      %v486 = vld [vmem:[%s456 + $0x18] sm:$0xf]
      %v487 = vld [vmem:[%s456 + $0x1c] sm:$0xf]
      %v488 = vld [vmem:[%s456 + $0x20] sm:$0xf]
      %v489 = vld [vmem:[%s456 + $0x24] sm:$0xf]
      %v490 = vld [vmem:[%s456 + $0x28] sm:$0xf]
      %v491 = vld [vmem:[%s456 + $0x2c] sm:$0xf]
      %v492 = vld [vmem:[%s456 + $0x30] sm:$0xf]
      %v493 = vld [vmem:[%s456 + $0x34] sm:$0xf]
      %v494 = vld [vmem:[%s456 + $0x38] sm:$0xf]
      %v495 = vld [vmem:[%s456 + $0x3c] sm:$0xf]
      %v496 = vld [vmem:[%s456 + $0x40] sm:$0xf]
      %v497 = vld [vmem:[%s456 + $0x44] sm:$0xf]
      %v498 = vld [vmem:[%s456 + $0x48] sm:$0xf]
      %v499 = vld [vmem:[%s456 + $0x4c] sm:$0xf]
      %v500 = vld [vmem:[%s456 + $0x50] sm:$0xf]
      %v501 = vld [vmem:[%s456 + $0x54] sm:$0xf]
      %v502 = vld [vmem:[%s456 + $0x58] sm:$0xf]
      %v503 = vld [vmem:[%s456 + $0x5c] sm:$0xf]
      %v504 = vld [vmem:[%s456 + $0x60] sm:$0xf]
      %v505 = vld [vmem:[%s456 + $0x64] sm:$0xf]
      %v506 = vld [vmem:[%s456 + $0x68] sm:$0xf]
      %v507 = vld [vmem:[%s456 + $0x6c] sm:$0xf]
      %v508 = vld [vmem:[%s456 + $0x70] sm:$0xf]
      %v509 = vld [vmem:[%s456 + $0x74] sm:$0xf]
      %v510 = vld [vmem:[%s456 + $0x78] sm:$0xf]
      %v511 = vld [vmem:[%s456 + $0x7c] sm:$0xf]
      %v512 = vld [vmem:[%s3] sm:$0xf]
      %v513 = vld [vmem:[%s3 + $0x4] sm:$0xf]
      %v514 = vld [vmem:[%s3 + $0x8] sm:$0xf]
      %v515 = vld [vmem:[%s3 + $0xc] sm:$0xf]
      %v516 = vld [vmem:[%s462] sm:$0xf]
      %v517 = vld [vmem:[%s462 + $0x4] sm:$0xf]
      %v518 = vld [vmem:[%s462 + $0x8] sm:$0xf]
      %v519 = vld [vmem:[%s462 + $0xc] sm:$0xf]
      %v520 = vld [vmem:[%s462 + $0x10] sm:$0xf]
      %v521 = vld [vmem:[%s462 + $0x14] sm:$0xf]
      %v522 = vld [vmem:[%s462 + $0x18] sm:$0xf]
      %v523 = vld [vmem:[%s462 + $0x1c] sm:$0xf]
      %v524 = vld [vmem:[%s462 + $0x20] sm:$0xf]
      %v525 = vld [vmem:[%s462 + $0x24] sm:$0xf]
      %v526 = vld [vmem:[%s462 + $0x28] sm:$0xf]
      %v527 = vld [vmem:[%s462 + $0x2c] sm:$0xf]
      %v528 = vld [vmem:[%s462 + $0x30] sm:$0xf]
      %v529 = vld [vmem:[%s462 + $0x34] sm:$0xf]
      %v530 = vld [vmem:[%s462 + $0x38] sm:$0xf]
      %v531 = vld [vmem:[%s462 + $0x3c] sm:$0xf]
      %v532 = vld [vmem:[%s462 + $0x40] sm:$0xf]
      %v533 = vld [vmem:[%s462 + $0x44] sm:$0xf]
      %v534 = vld [vmem:[%s462 + $0x48] sm:$0xf]
      %v535 = vld [vmem:[%s462 + $0x4c] sm:$0xf]
      %v536 = vld [vmem:[%s462 + $0x50] sm:$0xf]
      %v537 = vld [vmem:[%s462 + $0x54] sm:$0xf]
      %v538 = vld [vmem:[%s462 + $0x58] sm:$0xf]
      %v539 = vld [vmem:[%s462 + $0x5c] sm:$0xf]
      %v540 = vld [vmem:[%s462 + $0x60] sm:$0xf]
      %v541 = vld [vmem:[%s462 + $0x64] sm:$0xf]
      %v542 = vld [vmem:[%s462 + $0x68] sm:$0xf]
      %v543 = vld [vmem:[%s462 + $0x6c] sm:$0xf]
      %v544 = vld [vmem:[%s462 + $0x70] sm:$0xf]
      %v545 = vld [vmem:[%s462 + $0x74] sm:$0xf]
      %v546 = vld [vmem:[%s462 + $0x78] sm:$0xf]
      %v547 = vld [vmem:[%s462 + $0x7c] sm:$0xf]
      %v548 = vld [vmem:[%s4] sm:$0xf]
      %v581 = vunpack.c.l.b16 %v516
      %v582 = vunpack.c.l.b16 %v517
      %v583 = vunpack.c.l.b16 %v518
      %v584 = vunpack.c.l.b16 %v519
      %v585 = vunpack.c.l.b16 %v520
      %v586 = vunpack.c.l.b16 %v521
      %v587 = vunpack.c.l.b16 %v522
      %v588 = vunpack.c.l.b16 %v523
      %v589 = vunpack.c.l.b16 %v524
      %v590 = vunpack.c.l.b16 %v525
      %v591 = vunpack.c.l.b16 %v526
      %v592 = vunpack.c.l.b16 %v527
      %v593 = vunpack.c.l.b16 %v528
      %v594 = vunpack.c.l.b16 %v529
      %v595 = vunpack.c.l.b16 %v530
      %v596 = vunpack.c.l.b16 %v531
      %v597 = vunpack.c.l.b16 %v532
      %v598 = vunpack.c.l.b16 %v533
      %v599 = vunpack.c.l.b16 %v534
      %v600 = vunpack.c.l.b16 %v535
      %v601 = vunpack.c.l.b16 %v536
      %v602 = vunpack.c.l.b16 %v537
      %v603 = vunpack.c.l.b16 %v538
      %v604 = vunpack.c.l.b16 %v539
      %v605 = vunpack.c.l.b16 %v540
      %v606 = vunpack.c.l.b16 %v541
      %v607 = vunpack.c.l.b16 %v542
      %v608 = vunpack.c.l.b16 %v543
      %v609 = vunpack.c.l.b16 %v544
      %v610 = vunpack.c.l.b16 %v545
      %v611 = vunpack.c.l.b16 %v546
      %v612 = vunpack.c.l.b16 %v547
      %v613 = vpack.c.b16 %v582, %v581
      %v614 = vpack.c.b16 %v584, %v583
      %v615 = vpack.c.b16 %v586, %v585
      %v616 = vpack.c.b16 %v588, %v587
      %v617 = vpack.c.b16 %v590, %v589
      %v618 = vpack.c.b16 %v592, %v591
      %v619 = vpack.c.b16 %v594, %v593
      %v620 = vpack.c.b16 %v596, %v595
      %v621 = vpack.c.b16 %v598, %v597
      %v622 = vpack.c.b16 %v600, %v599
      %v623 = vpack.c.b16 %v602, %v601
      %v624 = vpack.c.b16 %v604, %v603
      %v625 = vpack.c.b16 %v606, %v605
      %v626 = vpack.c.b16 %v608, %v607
      %v627 = vpack.c.b16 %v610, %v609
      %v628 = vpack.c.b16 %v612, %v611
      %vm629 = vcmask 64512
      %v631 = vsel %vm629, %v613, 0
      %v634 = vsel %vm629, %v614, 0
      %v637 = vsel %vm629, %v615, 0
      %v640 = vsel %vm629, %v616, 0
      %v643 = vsel %vm629, %v617, 0
      %v646 = vsel %vm629, %v618, 0
      %v649 = vsel %vm629, %v619, 0
      %v652 = vsel %vm629, %v620, 0
      %v655 = vsel %vm629, %v621, 0
      %v658 = vsel %vm629, %v622, 0
      %v661 = vsel %vm629, %v623, 0
      %v664 = vsel %vm629, %v624, 0
      %v667 = vsel %vm629, %v625, 0
      %v670 = vsel %vm629, %v626, 0
      %v673 = vsel %vm629, %v627, 0
      %v676 = vsel %vm629, %v628, 0
      %vm678 = vcmask 1043456
      %v680 = vsel %vm678, %v548, 0
      %682 = vmatprep.subr.bf16.mxu0 0
      %683 = vmatpush1.bf16.msra.mxu0 %v680
      %684 = vmatprep.subr.bf16.mxu0 0
      %685 = vmatpush1.bf16.msra.mxu0 0
      %686 = vmatprep.subr.bf16.mxu0 0
      %687 = vmatpush1.bf16.msra.mxu0 0
      %688 = vmatprep.subr.bf16.mxu0 0
      %689 = vmatpush1.bf16.msra.mxu0 0
      %690 = vmatprep.subr.bf16.mxu0 0
      %691 = vmatpush1.bf16.msra.mxu0 0
      %692 = vmatprep.subr.bf16.mxu0 0
      %693 = vmatpush1.bf16.msra.mxu0 0
      %694 = vmatprep.subr.bf16.mxu0 0
      %695 = vmatpush1.bf16.msra.mxu0 0
      %696 = vmatprep.subr.bf16.mxu0 0
      %697 = vmatpush1.bf16.msra.mxu0 0
      %698 = vmatprep.subr.bf16.mxu0 0
      %699 = vmatpush1.bf16.msra.mxu0 0
      %700 = vmatprep.subr.bf16.mxu0 0
      %701 = vmatpush1.bf16.msra.mxu0 0
      %702 = vmatprep.subr.bf16.mxu0 0
      %703 = vmatpush1.bf16.msra.mxu0 0
      %704 = vmatprep.subr.bf16.mxu0 0
      %705 = vmatpush1.bf16.msra.mxu0 0
      %706 = vmatprep.subr.bf16.mxu0 0
      %707 = vmatpush1.bf16.msra.mxu0 0
      %708 = vmatprep.subr.bf16.mxu0 0
      %709 = vmatpush1.bf16.msra.mxu0 0
      %710 = vmatprep.subr.bf16.mxu0 0
      %711 = vmatpush1.bf16.msra.mxu0 0
      %712 = vmatprep.subr.bf16.mxu0 0
      %713 = vmatpush1.bf16.msra.mxu0 0
      %714 = vmatprep.mubr.bf16.mxu0 0
      %715 = vmatmul.mubr.bf16.gmra.mrb[0].mxu0 %v631
      %v716 = vpop.f32.mrb[0].mxu0
      %v717 = vadd.f32 0.0, %v716
      %v718 = vpop.f32.mrb[0].mxu0
      %v719 = vpop.f32.mrb[0].mxu0
      %v720 = vadd.f32 0.0, %v719
      %v721 = vpop.f32.mrb[0].mxu0
      %722 = vmatprep.mubr.bf16.mxu0 0
      %723 = vmatmul.mubr.bf16.gmra.mrb[0].mxu0 %v634
      %v724 = vpop.f32.mrb[0].mxu0
      %v725 = vadd.f32 0.0, %v724
      %v726 = vpop.f32.mrb[0].mxu0
      %v727 = vpop.f32.mrb[0].mxu0
      %v728 = vadd.f32 0.0, %v727
      %v729 = vpop.f32.mrb[0].mxu0
      %730 = vmatprep.mubr.bf16.mxu0 0
      %731 = vmatmul.mubr.bf16.gmra.mrb[0].mxu0 %v637
      %v732 = vpop.f32.mrb[0].mxu0
      %v733 = vadd.f32 0.0, %v732
      %v734 = vpop.f32.mrb[0].mxu0
      %v735 = vpop.f32.mrb[0].mxu0
      %v736 = vadd.f32 0.0, %v735
      %v737 = vpop.f32.mrb[0].mxu0
      %738 = vmatprep.mubr.bf16.mxu0 0
      %739 = vmatmul.mubr.bf16.gmra.mrb[0].mxu0 %v640
      %v740 = vpop.f32.mrb[0].mxu0
      %v741 = vadd.f32 0.0, %v740
      %v742 = vpop.f32.mrb[0].mxu0
      %v743 = vpop.f32.mrb[0].mxu0
      %v744 = vadd.f32 0.0, %v743
      %v745 = vpop.f32.mrb[0].mxu0
      %746 = vmatprep.mubr.bf16.mxu0 0
      %747 = vmatmul.mubr.bf16.gmra.mrb[0].mxu0 %v643
      %v748 = vpop.f32.mrb[0].mxu0
      %v749 = vadd.f32 0.0, %v748
      %v750 = vpop.f32.mrb[0].mxu0
      %v751 = vpop.f32.mrb[0].mxu0
      %v752 = vadd.f32 0.0, %v751
      %v753 = vpop.f32.mrb[0].mxu0
      %754 = vmatprep.mubr.bf16.mxu0 0
      %755 = vmatmul.mubr.bf16.gmra.mrb[0].mxu0 %v646
      %v756 = vpop.f32.mrb[0].mxu0
      %v757 = vadd.f32 0.0, %v756
      %v758 = vpop.f32.mrb[0].mxu0
      %v759 = vpop.f32.mrb[0].mxu0
      %v760 = vadd.f32 0.0, %v759
      %v761 = vpop.f32.mrb[0].mxu0
      %762 = vmatprep.mubr.bf16.mxu0 0
      %763 = vmatmul.mubr.bf16.gmra.mrb[0].mxu0 %v649
      %v764 = vpop.f32.mrb[0].mxu0
      %v765 = vadd.f32 0.0, %v764
      %v766 = vpop.f32.mrb[0].mxu0
      %v767 = vpop.f32.mrb[0].mxu0
      %v768 = vadd.f32 0.0, %v767
      %v769 = vpop.f32.mrb[0].mxu0
      %770 = vmatprep.mubr.bf16.mxu0 0
      %771 = vmatmul.mubr.bf16.gmra.mrb[0].mxu0 %v652
      %v772 = vpop.f32.mrb[0].mxu0
      %v773 = vadd.f32 0.0, %v772
      %v774 = vpop.f32.mrb[0].mxu0
      %v775 = vpop.f32.mrb[0].mxu0
      %v776 = vadd.f32 0.0, %v775
      %v777 = vpop.f32.mrb[0].mxu0
      %778 = vmatprep.mubr.bf16.mxu0 0
      %779 = vmatmul.mubr.bf16.gmra.mrb[0].mxu0 %v655
      %v780 = vpop.f32.mrb[0].mxu0
      %v781 = vadd.f32 0.0, %v780
      %v782 = vpop.f32.mrb[0].mxu0
      %v783 = vpop.f32.mrb[0].mxu0
      %v784 = vadd.f32 0.0, %v783
      %v785 = vpop.f32.mrb[0].mxu0
      %786 = vmatprep.mubr.bf16.mxu0 0
      %787 = vmatmul.mubr.bf16.gmra.mrb[0].mxu0 %v658
      %v788 = vpop.f32.mrb[0].mxu0
      %v789 = vadd.f32 0.0, %v788
      %v790 = vpop.f32.mrb[0].mxu0
      %v791 = vpop.f32.mrb[0].mxu0
      %v792 = vadd.f32 0.0, %v791
      %v793 = vpop.f32.mrb[0].mxu0
      %794 = vmatprep.mubr.bf16.mxu0 0
      %795 = vmatmul.mubr.bf16.gmra.mrb[0].mxu0 %v661
      %v796 = vpop.f32.mrb[0].mxu0
      %v797 = vadd.f32 0.0, %v796
      %v798 = vpop.f32.mrb[0].mxu0
      %v799 = vpop.f32.mrb[0].mxu0
      %v800 = vadd.f32 0.0, %v799
      %v801 = vpop.f32.mrb[0].mxu0
      %802 = vmatprep.mubr.bf16.mxu0 0
      %803 = vmatmul.mubr.bf16.gmra.mrb[0].mxu0 %v664
      %v804 = vpop.f32.mrb[0].mxu0
      %v805 = vadd.f32 0.0, %v804
      %v806 = vpop.f32.mrb[0].mxu0
      %v807 = vpop.f32.mrb[0].mxu0
      %v808 = vadd.f32 0.0, %v807
      %v809 = vpop.f32.mrb[0].mxu0
      %810 = vmatprep.mubr.bf16.mxu0 0
      %811 = vmatmul.mubr.bf16.gmra.mrb[0].mxu0 %v667
      %v812 = vpop.f32.mrb[0].mxu0
      %v813 = vadd.f32 0.0, %v812
      %v814 = vpop.f32.mrb[0].mxu0
      %v815 = vpop.f32.mrb[0].mxu0
      %v816 = vadd.f32 0.0, %v815
      %v817 = vpop.f32.mrb[0].mxu0
      %818 = vmatprep.mubr.bf16.mxu0 0
      %819 = vmatmul.mubr.bf16.gmra.mrb[0].mxu0 %v670
      %v820 = vpop.f32.mrb[0].mxu0
      %v821 = vadd.f32 0.0, %v820
      %v822 = vpop.f32.mrb[0].mxu0
      %v823 = vpop.f32.mrb[0].mxu0
      %v824 = vadd.f32 0.0, %v823
      %v825 = vpop.f32.mrb[0].mxu0
      %826 = vmatprep.mubr.bf16.mxu0 0
      %827 = vmatmul.mubr.bf16.gmra.mrb[0].mxu0 %v673
      %v828 = vpop.f32.mrb[0].mxu0
      %v829 = vadd.f32 0.0, %v828
      %v830 = vpop.f32.mrb[0].mxu0
      %v831 = vpop.f32.mrb[0].mxu0
      %v832 = vadd.f32 0.0, %v831
      %v833 = vpop.f32.mrb[0].mxu0
      %834 = vmatprep.mubr.bf16.mxu0 0
      %835 = vmatmul.mubr.bf16.gmra.mrb[0].mxu0 %v676
      %v836 = vpop.f32.mrb[0].mxu0
      %v837 = vadd.f32 0.0, %v836
      %v838 = vpop.f32.mrb[0].mxu0
      %v839 = vpop.f32.mrb[0].mxu0
      %v840 = vadd.f32 0.0, %v839
      %v841 = vpop.f32.mrb[0].mxu0
      %842 = vdwg.mxu0
      %v875 = vunpack.c.l.b16 %v480
      %v876 = vunpack.c.l.b16 %v481
      %v877 = vunpack.c.l.b16 %v482
      %v878 = vunpack.c.l.b16 %v483
      %v879 = vunpack.c.l.b16 %v484
      %v880 = vunpack.c.l.b16 %v485
      %v881 = vunpack.c.l.b16 %v486
      %v882 = vunpack.c.l.b16 %v487
      %v883 = vunpack.c.l.b16 %v488
      %v884 = vunpack.c.l.b16 %v489
      %v885 = vunpack.c.l.b16 %v490
      %v886 = vunpack.c.l.b16 %v491
      %v887 = vunpack.c.l.b16 %v492
      %v888 = vunpack.c.l.b16 %v493
      %v889 = vunpack.c.l.b16 %v494
      %v890 = vunpack.c.l.b16 %v495
      %v891 = vunpack.c.l.b16 %v496
      %v892 = vunpack.c.l.b16 %v497
      %v893 = vunpack.c.l.b16 %v498
      %v894 = vunpack.c.l.b16 %v499
      %v895 = vunpack.c.l.b16 %v500
      %v896 = vunpack.c.l.b16 %v501
      %v897 = vunpack.c.l.b16 %v502
      %v898 = vunpack.c.l.b16 %v503
      %v899 = vunpack.c.l.b16 %v504
      %v900 = vunpack.c.l.b16 %v505
      %v901 = vunpack.c.l.b16 %v506
      %v902 = vunpack.c.l.b16 %v507
      %v903 = vunpack.c.l.b16 %v508
      %v904 = vunpack.c.l.b16 %v509
      %v905 = vunpack.c.l.b16 %v510
      %v906 = vunpack.c.l.b16 %v511
      %v907 = vpack.c.b16 %v876, %v875
      %v908 = vpack.c.b16 %v878, %v877
      %v909 = vpack.c.b16 %v880, %v879
      %v910 = vpack.c.b16 %v882, %v881
      %v911 = vpack.c.b16 %v884, %v883
      %v912 = vpack.c.b16 %v886, %v885
      %v913 = vpack.c.b16 %v888, %v887
      %v914 = vpack.c.b16 %v890, %v889
      %v915 = vpack.c.b16 %v892, %v891
      %v916 = vpack.c.b16 %v894, %v893
      %v917 = vpack.c.b16 %v896, %v895
      %v918 = vpack.c.b16 %v898, %v897
      %v919 = vpack.c.b16 %v900, %v899
      %v920 = vpack.c.b16 %v902, %v901
      %v921 = vpack.c.b16 %v904, %v903
      %v922 = vpack.c.b16 %v906, %v905
      %v927 = vunpack.c.l.b16 %v512
      %v928 = vunpack.c.l.b16 %v513
      %v929 = vunpack.c.l.b16 %v514
      %v930 = vunpack.c.l.b16 %v515
      %v931 = vpack.c.b16 %v928, %v927
      %v932 = vpack.c.b16 %v930, %v929
      %vm935 = vcmask 261120
      %v937 = vsel %vm935, %v907, 0
      %v940 = vsel %vm935, %v908, 0
      %v943 = vsel %vm935, %v909, 0
      %v946 = vsel %vm935, %v910, 0
      %v949 = vsel %vm935, %v911, 0
      %v952 = vsel %vm935, %v912, 0
      %v955 = vsel %vm935, %v913, 0
      %v958 = vsel %vm935, %v914, 0
      %v961 = vsel %vm935, %v915, 0
      %v964 = vsel %vm935, %v916, 0
      %v967 = vsel %vm935, %v917, 0
      %v970 = vsel %vm935, %v918, 0
      %v973 = vsel %vm935, %v919, 0
      %v976 = vsel %vm935, %v920, 0
      %v979 = vsel %vm935, %v921, 0
      %v982 = vsel %vm935, %v922, 0
      %984 = vmatprep.subr.bf16.mxu0 0
      %985 = vmatpush1.bf16.msra.mxu0 %v931
      %986 = vmatprep.subr.bf16.mxu0 0
      %987 = vmatpush1.bf16.msra.mxu0 %v932
      %988 = vmatprep.subr.bf16.mxu0 0
      %989 = vmatpush1.bf16.msra.mxu0 0
      %990 = vmatprep.subr.bf16.mxu0 0
      %991 = vmatpush1.bf16.msra.mxu0 0
      %992 = vmatprep.subr.bf16.mxu0 0
      %993 = vmatpush1.bf16.msra.mxu0 0
      %994 = vmatprep.subr.bf16.mxu0 0
      %995 = vmatpush1.bf16.msra.mxu0 0
      %996 = vmatprep.subr.bf16.mxu0 0
      %997 = vmatpush1.bf16.msra.mxu0 0
      %998 = vmatprep.subr.bf16.mxu0 0
      %999 = vmatpush1.bf16.msra.mxu0 0
      %1000 = vmatprep.subr.bf16.mxu0 0
      %1001 = vmatpush1.bf16.msra.mxu0 0
      %1002 = vmatprep.subr.bf16.mxu0 0
      %1003 = vmatpush1.bf16.msra.mxu0 0
      %1004 = vmatprep.subr.bf16.mxu0 0
      %1005 = vmatpush1.bf16.msra.mxu0 0
      %1006 = vmatprep.subr.bf16.mxu0 0
      %1007 = vmatpush1.bf16.msra.mxu0 0
      %1008 = vmatprep.subr.bf16.mxu0 0
      %1009 = vmatpush1.bf16.msra.mxu0 0
      %1010 = vmatprep.subr.bf16.mxu0 0
      %1011 = vmatpush1.bf16.msra.mxu0 0
      %1012 = vmatprep.subr.bf16.mxu0 0
      %1013 = vmatpush1.bf16.msra.mxu0 0
      %1014 = vmatprep.subr.bf16.mxu0 0
      %1015 = vmatpush1.bf16.msra.mxu0 0
      %1016 = vmatprep.mubr.bf16.mxu0 0
      %1017 = vmatmul.mubr.bf16.gmra.mrb[0].mxu0 %v937
      %v1018 = vpop.f32.mrb[0].mxu0
      %v1019 = vadd.f32 %v717, %v1018
      %v1020 = vpop.f32.mrb[0].mxu0
      %v1021 = vpop.f32.mrb[0].mxu0
      %v1022 = vadd.f32 %v720, %v1021
      %v1023 = vpop.f32.mrb[0].mxu0
      %1024 = vmatprep.mubr.bf16.mxu0 0
      %1025 = vmatmul.mubr.bf16.gmra.mrb[0].mxu0 %v940
      %v1026 = vpop.f32.mrb[0].mxu0
      %v1027 = vadd.f32 %v725, %v1026
      %v1028 = vpop.f32.mrb[0].mxu0
      %v1029 = vpop.f32.mrb[0].mxu0
      %v1030 = vadd.f32 %v728, %v1029
      %v1031 = vpop.f32.mrb[0].mxu0
      %1032 = vmatprep.mubr.bf16.mxu0 0
      %1033 = vmatmul.mubr.bf16.gmra.mrb[0].mxu0 %v943
      %v1034 = vpop.f32.mrb[0].mxu0
      %v1035 = vadd.f32 %v733, %v1034
      %v1036 = vpop.f32.mrb[0].mxu0
      %v1037 = vpop.f32.mrb[0].mxu0
      %v1038 = vadd.f32 %v736, %v1037
      %v1039 = vpop.f32.mrb[0].mxu0
      %1040 = vmatprep.mubr.bf16.mxu0 0
      %1041 = vmatmul.mubr.bf16.gmra.mrb[0].mxu0 %v946
      %v1042 = vpop.f32.mrb[0].mxu0
      %v1043 = vadd.f32 %v741, %v1042
      %v1044 = vpop.f32.mrb[0].mxu0
      %v1045 = vpop.f32.mrb[0].mxu0
      %v1046 = vadd.f32 %v744, %v1045
      %v1047 = vpop.f32.mrb[0].mxu0
      %1048 = vmatprep.mubr.bf16.mxu0 0
      %1049 = vmatmul.mubr.bf16.gmra.mrb[0].mxu0 %v949
      %v1050 = vpop.f32.mrb[0].mxu0
      %v1051 = vadd.f32 %v749, %v1050
      %v1052 = vpop.f32.mrb[0].mxu0
      %v1053 = vpop.f32.mrb[0].mxu0
      %v1054 = vadd.f32 %v752, %v1053
      %v1055 = vpop.f32.mrb[0].mxu0
      %1056 = vmatprep.mubr.bf16.mxu0 0
      %1057 = vmatmul.mubr.bf16.gmra.mrb[0].mxu0 %v952
      %v1058 = vpop.f32.mrb[0].mxu0
      %v1059 = vadd.f32 %v757, %v1058
      %v1060 = vpop.f32.mrb[0].mxu0
      %v1061 = vpop.f32.mrb[0].mxu0
      %v1062 = vadd.f32 %v760, %v1061
      %v1063 = vpop.f32.mrb[0].mxu0
      %1064 = vmatprep.mubr.bf16.mxu0 0
      %1065 = vmatmul.mubr.bf16.gmra.mrb[0].mxu0 %v955
      %v1066 = vpop.f32.mrb[0].mxu0
      %v1067 = vadd.f32 %v765, %v1066
      %v1068 = vpop.f32.mrb[0].mxu0
      %v1069 = vpop.f32.mrb[0].mxu0
      %v1070 = vadd.f32 %v768, %v1069
      %v1071 = vpop.f32.mrb[0].mxu0
      %1072 = vmatprep.mubr.bf16.mxu0 0
      %1073 = vmatmul.mubr.bf16.gmra.mrb[0].mxu0 %v958
      %v1074 = vpop.f32.mrb[0].mxu0
      %v1075 = vadd.f32 %v773, %v1074
      %v1076 = vpop.f32.mrb[0].mxu0
      %v1077 = vpop.f32.mrb[0].mxu0
      %v1078 = vadd.f32 %v776, %v1077
      %v1079 = vpop.f32.mrb[0].mxu0
      %1080 = vmatprep.mubr.bf16.mxu0 0
      %1081 = vmatmul.mubr.bf16.gmra.mrb[0].mxu0 %v961
      %v1082 = vpop.f32.mrb[0].mxu0
      %v1083 = vadd.f32 %v781, %v1082
      %v1084 = vpop.f32.mrb[0].mxu0
      %v1085 = vpop.f32.mrb[0].mxu0
      %v1086 = vadd.f32 %v784, %v1085
      %v1087 = vpop.f32.mrb[0].mxu0
      %1088 = vmatprep.mubr.bf16.mxu0 0
      %1089 = vmatmul.mubr.bf16.gmra.mrb[0].mxu0 %v964
      %v1090 = vpop.f32.mrb[0].mxu0
      %v1091 = vadd.f32 %v789, %v1090
      %v1092 = vpop.f32.mrb[0].mxu0
      %v1093 = vpop.f32.mrb[0].mxu0
      %v1094 = vadd.f32 %v792, %v1093
      %v1095 = vpop.f32.mrb[0].mxu0
      %1096 = vmatprep.mubr.bf16.mxu0 0
      %1097 = vmatmul.mubr.bf16.gmra.mrb[0].mxu0 %v967
      %v1098 = vpop.f32.mrb[0].mxu0
      %v1099 = vadd.f32 %v797, %v1098
      %v1100 = vpop.f32.mrb[0].mxu0
      %v1101 = vpop.f32.mrb[0].mxu0
      %v1102 = vadd.f32 %v800, %v1101
      %v1103 = vpop.f32.mrb[0].mxu0
      %1104 = vmatprep.mubr.bf16.mxu0 0
      %1105 = vmatmul.mubr.bf16.gmra.mrb[0].mxu0 %v970
      %v1106 = vpop.f32.mrb[0].mxu0
      %v1107 = vadd.f32 %v805, %v1106
      %v1108 = vpop.f32.mrb[0].mxu0
      %v1109 = vpop.f32.mrb[0].mxu0
      %v1110 = vadd.f32 %v808, %v1109
      %v1111 = vpop.f32.mrb[0].mxu0
      %1112 = vmatprep.mubr.bf16.mxu0 0
      %1113 = vmatmul.mubr.bf16.gmra.mrb[0].mxu0 %v973
      %v1114 = vpop.f32.mrb[0].mxu0
      %v1115 = vadd.f32 %v813, %v1114
      %v1116 = vpop.f32.mrb[0].mxu0
      %v1117 = vpop.f32.mrb[0].mxu0
      %v1118 = vadd.f32 %v816, %v1117
      %v1119 = vpop.f32.mrb[0].mxu0
      %1120 = vmatprep.mubr.bf16.mxu0 0
      %1121 = vmatmul.mubr.bf16.gmra.mrb[0].mxu0 %v976
      %v1122 = vpop.f32.mrb[0].mxu0
      %v1123 = vadd.f32 %v821, %v1122
      %v1124 = vpop.f32.mrb[0].mxu0
      %v1125 = vpop.f32.mrb[0].mxu0
      %v1126 = vadd.f32 %v824, %v1125
      %v1127 = vpop.f32.mrb[0].mxu0
      %1128 = vmatprep.mubr.bf16.mxu0 0
      %1129 = vmatmul.mubr.bf16.gmra.mrb[0].mxu0 %v979
      %v1130 = vpop.f32.mrb[0].mxu0
      %v1131 = vadd.f32 %v829, %v1130
      %v1132 = vpop.f32.mrb[0].mxu0
      %v1133 = vpop.f32.mrb[0].mxu0
      %v1134 = vadd.f32 %v832, %v1133
      %v1135 = vpop.f32.mrb[0].mxu0
      %1136 = vmatprep.mubr.bf16.mxu0 0
      %1137 = vmatmul.mubr.bf16.gmra.mrb[0].mxu0 %v982
      %v1138 = vpop.f32.mrb[0].mxu0
      %v1139 = vadd.f32 %v837, %v1138
      %v1140 = vpop.f32.mrb[0].mxu0
      %v1141 = vpop.f32.mrb[0].mxu0
      %v1142 = vadd.f32 %v840, %v1141
      %v1143 = vpop.f32.mrb[0].mxu0
      %1144 = vdwg.mxu0
      %v1145 = vld [vmem:[%s5] sm:$0x1]
      %v1147 = vlaneseq
      %v1148 = vshrl.u32 %v1147, 7
      %v1149 = vsub.s32 0, %v1148
      %v1150 = vrot.slane %v1145, %v1149
      %v1152 = vadd.f32 %v1019, %v1150
      %v1153 = vadd.f32 %v1022, %v1150
      %v1154 = vadd.f32 %v1027, %v1150
      %v1155 = vadd.f32 %v1030, %v1150
      %v1156 = vadd.f32 %v1035, %v1150
      %v1157 = vadd.f32 %v1038, %v1150
      %v1158 = vadd.f32 %v1043, %v1150
      %v1159 = vadd.f32 %v1046, %v1150
      %v1160 = vadd.f32 %v1051, %v1150
      %v1161 = vadd.f32 %v1054, %v1150
      %v1162 = vadd.f32 %v1059, %v1150
      %v1163 = vadd.f32 %v1062, %v1150
      %v1164 = vadd.f32 %v1067, %v1150
      %v1165 = vadd.f32 %v1070, %v1150
      %v1166 = vadd.f32 %v1075, %v1150
      %v1167 = vadd.f32 %v1078, %v1150
      %v1168 = vadd.f32 %v1083, %v1150
      %v1169 = vadd.f32 %v1086, %v1150
      %v1170 = vadd.f32 %v1091, %v1150
      %v1171 = vadd.f32 %v1094, %v1150
      %v1172 = vadd.f32 %v1099, %v1150
      %v1173 = vadd.f32 %v1102, %v1150
      %v1174 = vadd.f32 %v1107, %v1150
      %v1175 = vadd.f32 %v1110, %v1150
      %v1176 = vadd.f32 %v1115, %v1150
      %v1177 = vadd.f32 %v1118, %v1150
      %v1178 = vadd.f32 %v1123, %v1150
      %v1179 = vadd.f32 %v1126, %v1150
      %v1180 = vadd.f32 %v1131, %v1150
      %v1181 = vadd.f32 %v1134, %v1150
      %v1182 = vadd.f32 %v1139, %v1150
      %v1183 = vadd.f32 %v1142, %v1150
      %v1184 = vmul.f32 %v1152, 0.5
      %v1185 = vmul.f32 %v1153, 0.5
      %v1186 = vmul.f32 %v1154, 0.5
      %v1187 = vmul.f32 %v1155, 0.5
      %v1188 = vmul.f32 %v1156, 0.5
      %v1189 = vmul.f32 %v1157, 0.5
      %v1190 = vmul.f32 %v1158, 0.5
      %v1191 = vmul.f32 %v1159, 0.5
      %v1192 = vmul.f32 %v1160, 0.5
      %v1193 = vmul.f32 %v1161, 0.5
      %v1194 = vmul.f32 %v1162, 0.5
      %v1195 = vmul.f32 %v1163, 0.5
      %v1196 = vmul.f32 %v1164, 0.5
      %v1197 = vmul.f32 %v1165, 0.5
      %v1198 = vmul.f32 %v1166, 0.5
      %v1199 = vmul.f32 %v1167, 0.5
      %v1200 = vmul.f32 %v1168, 0.5
      %v1201 = vmul.f32 %v1169, 0.5
      %v1202 = vmul.f32 %v1170, 0.5
      %v1203 = vmul.f32 %v1171, 0.5
      %v1204 = vmul.f32 %v1172, 0.5
      %v1205 = vmul.f32 %v1173, 0.5
      %v1206 = vmul.f32 %v1174, 0.5
      %v1207 = vmul.f32 %v1175, 0.5
      %v1208 = vmul.f32 %v1176, 0.5
      %v1209 = vmul.f32 %v1177, 0.5
      %v1210 = vmul.f32 %v1178, 0.5
      %v1211 = vmul.f32 %v1179, 0.5
      %v1212 = vmul.f32 %v1180, 0.5
      %v1213 = vmul.f32 %v1181, 0.5
      %v1214 = vmul.f32 %v1182, 0.5
      %v1215 = vmul.f32 %v1183, 0.5
      %v1216 = vmul.f32 %v1152, 0.044715
      %v1217 = vmul.f32 %v1153, 0.044715
      %v1218 = vmul.f32 %v1154, 0.044715
      %v1219 = vmul.f32 %v1155, 0.044715
      %v1220 = vmul.f32 %v1156, 0.044715
      %v1221 = vmul.f32 %v1157, 0.044715
      %v1222 = vmul.f32 %v1158, 0.044715
      %v1223 = vmul.f32 %v1159, 0.044715
      %v1224 = vmul.f32 %v1160, 0.044715
      %v1225 = vmul.f32 %v1161, 0.044715
      %v1226 = vmul.f32 %v1162, 0.044715
      %v1227 = vmul.f32 %v1163, 0.044715
      %v1228 = vmul.f32 %v1164, 0.044715
      %v1229 = vmul.f32 %v1165, 0.044715
      %v1230 = vmul.f32 %v1166, 0.044715
      %v1231 = vmul.f32 %v1167, 0.044715
      %v1232 = vmul.f32 %v1168, 0.044715
      %v1233 = vmul.f32 %v1169, 0.044715
      %v1234 = vmul.f32 %v1170, 0.044715
      %v1235 = vmul.f32 %v1171, 0.044715
      %v1236 = vmul.f32 %v1172, 0.044715
      %v1237 = vmul.f32 %v1173, 0.044715
      %v1238 = vmul.f32 %v1174, 0.044715
      %v1239 = vmul.f32 %v1175, 0.044715
      %v1240 = vmul.f32 %v1176, 0.044715
      %v1241 = vmul.f32 %v1177, 0.044715
      %v1242 = vmul.f32 %v1178, 0.044715
      %v1243 = vmul.f32 %v1179, 0.044715
      %v1244 = vmul.f32 %v1180, 0.044715
      %v1245 = vmul.f32 %v1181, 0.044715
      %v1246 = vmul.f32 %v1182, 0.044715
      %v1247 = vmul.f32 %v1183, 0.044715
      %v1248 = vmul.f32 %v1216, %v1152
      %v1249 = vmul.f32 %v1217, %v1153
      %v1250 = vmul.f32 %v1218, %v1154
      %v1251 = vmul.f32 %v1219, %v1155
      %v1252 = vmul.f32 %v1220, %v1156
      %v1253 = vmul.f32 %v1221, %v1157
      %v1254 = vmul.f32 %v1222, %v1158
      %v1255 = vmul.f32 %v1223, %v1159
      %v1256 = vmul.f32 %v1224, %v1160
      %v1257 = vmul.f32 %v1225, %v1161
      %v1258 = vmul.f32 %v1226, %v1162
      %v1259 = vmul.f32 %v1227, %v1163
      %v1260 = vmul.f32 %v1228, %v1164
      %v1261 = vmul.f32 %v1229, %v1165
      %v1262 = vmul.f32 %v1230, %v1166
      %v1263 = vmul.f32 %v1231, %v1167
      %v1264 = vmul.f32 %v1232, %v1168
      %v1265 = vmul.f32 %v1233, %v1169
      %v1266 = vmul.f32 %v1234, %v1170
      %v1267 = vmul.f32 %v1235, %v1171
      %v1268 = vmul.f32 %v1236, %v1172
      %v1269 = vmul.f32 %v1237, %v1173
      %v1270 = vmul.f32 %v1238, %v1174
      %v1271 = vmul.f32 %v1239, %v1175
      %v1272 = vmul.f32 %v1240, %v1176
      %v1273 = vmul.f32 %v1241, %v1177
      %v1274 = vmul.f32 %v1242, %v1178
      %v1275 = vmul.f32 %v1243, %v1179
      %v1276 = vmul.f32 %v1244, %v1180
      %v1277 = vmul.f32 %v1245, %v1181
      %v1278 = vmul.f32 %v1246, %v1182
      %v1279 = vmul.f32 %v1247, %v1183
      %v1280 = vmul.f32 %v1248, %v1152
      %v1281 = vmul.f32 %v1249, %v1153
      %v1282 = vmul.f32 %v1250, %v1154
      %v1283 = vmul.f32 %v1251, %v1155
      %v1284 = vmul.f32 %v1252, %v1156
      %v1285 = vmul.f32 %v1253, %v1157
      %v1286 = vmul.f32 %v1254, %v1158
      %v1287 = vmul.f32 %v1255, %v1159
      %v1288 = vmul.f32 %v1256, %v1160
      %v1289 = vmul.f32 %v1257, %v1161
      %v1290 = vmul.f32 %v1258, %v1162
      %v1291 = vmul.f32 %v1259, %v1163
      %v1292 = vmul.f32 %v1260, %v1164
      %v1293 = vmul.f32 %v1261, %v1165
      %v1294 = vmul.f32 %v1262, %v1166
      %v1295 = vmul.f32 %v1263, %v1167
      %v1296 = vmul.f32 %v1264, %v1168
      %v1297 = vmul.f32 %v1265, %v1169
      %v1298 = vmul.f32 %v1266, %v1170
      %v1299 = vmul.f32 %v1267, %v1171
      %v1300 = vmul.f32 %v1268, %v1172
      %v1301 = vmul.f32 %v1269, %v1173
      %v1302 = vmul.f32 %v1270, %v1174
      %v1303 = vmul.f32 %v1271, %v1175
      %v1304 = vmul.f32 %v1272, %v1176
      %v1305 = vmul.f32 %v1273, %v1177
      %v1306 = vmul.f32 %v1274, %v1178
      %v1307 = vmul.f32 %v1275, %v1179
      %v1308 = vmul.f32 %v1276, %v1180
      %v1309 = vmul.f32 %v1277, %v1181
      %v1310 = vmul.f32 %v1278, %v1182
      %v1311 = vmul.f32 %v1279, %v1183
      %v1312 = vadd.f32 %v1152, %v1280
      %v1313 = vadd.f32 %v1153, %v1281
      %v1314 = vadd.f32 %v1154, %v1282
      %v1315 = vadd.f32 %v1155, %v1283
      %v1316 = vadd.f32 %v1156, %v1284
      %v1317 = vadd.f32 %v1157, %v1285
      %v1318 = vadd.f32 %v1158, %v1286
      %v1319 = vadd.f32 %v1159, %v1287
      %v1320 = vadd.f32 %v1160, %v1288
      %v1321 = vadd.f32 %v1161, %v1289
      %v1322 = vadd.f32 %v1162, %v1290
      %v1323 = vadd.f32 %v1163, %v1291
      %v1324 = vadd.f32 %v1164, %v1292
      %v1325 = vadd.f32 %v1165, %v1293
      %v1326 = vadd.f32 %v1166, %v1294
      %v1327 = vadd.f32 %v1167, %v1295
      %v1328 = vadd.f32 %v1168, %v1296
      %v1329 = vadd.f32 %v1169, %v1297
      %v1330 = vadd.f32 %v1170, %v1298
      %v1331 = vadd.f32 %v1171, %v1299
      %v1332 = vadd.f32 %v1172, %v1300
      %v1333 = vadd.f32 %v1173, %v1301
      %v1334 = vadd.f32 %v1174, %v1302
      %v1335 = vadd.f32 %v1175, %v1303
      %v1336 = vadd.f32 %v1176, %v1304
      %v1337 = vadd.f32 %v1177, %v1305
      %v1338 = vadd.f32 %v1178, %v1306
      %v1339 = vadd.f32 %v1179, %v1307
      %v1340 = vadd.f32 %v1180, %v1308
      %v1341 = vadd.f32 %v1181, %v1309
      %v1342 = vadd.f32 %v1182, %v1310
      %v1343 = vadd.f32 %v1183, %v1311
      %v1344 = vmul.f32 %v1312, 0.7978846
      %v1345 = vmul.f32 %v1313, 0.7978846
      %v1346 = vmul.f32 %v1314, 0.7978846
      %v1347 = vmul.f32 %v1315, 0.7978846
      %v1348 = vmul.f32 %v1316, 0.7978846
      %v1349 = vmul.f32 %v1317, 0.7978846
      %v1350 = vmul.f32 %v1318, 0.7978846
      %v1351 = vmul.f32 %v1319, 0.7978846
      %v1352 = vmul.f32 %v1320, 0.7978846
      %v1353 = vmul.f32 %v1321, 0.7978846
      %v1354 = vmul.f32 %v1322, 0.7978846
      %v1355 = vmul.f32 %v1323, 0.7978846
      %v1356 = vmul.f32 %v1324, 0.7978846
      %v1357 = vmul.f32 %v1325, 0.7978846
      %v1358 = vmul.f32 %v1326, 0.7978846
      %v1359 = vmul.f32 %v1327, 0.7978846
      %v1360 = vmul.f32 %v1328, 0.7978846
      %v1361 = vmul.f32 %v1329, 0.7978846
      %v1362 = vmul.f32 %v1330, 0.7978846
      %v1363 = vmul.f32 %v1331, 0.7978846
      %v1364 = vmul.f32 %v1332, 0.7978846
      %v1365 = vmul.f32 %v1333, 0.7978846
      %v1366 = vmul.f32 %v1334, 0.7978846
      %v1367 = vmul.f32 %v1335, 0.7978846
      %v1368 = vmul.f32 %v1336, 0.7978846
      %v1369 = vmul.f32 %v1337, 0.7978846
      %v1370 = vmul.f32 %v1338, 0.7978846
      %v1371 = vmul.f32 %v1339, 0.7978846
      %v1372 = vmul.f32 %v1340, 0.7978846
      %v1373 = vmul.f32 %v1341, 0.7978846
      %v1374 = vmul.f32 %v1342, 0.7978846
      %v1375 = vmul.f32 %v1343, 0.7978846
      %v1376 = vtanh.pop %v1344
      %v1377 = vtanh.pop %v1345
      %v1378 = vtanh.pop %v1346
      %v1379 = vtanh.pop %v1347
      %v1380 = vtanh.pop %v1348
      %v1381 = vtanh.pop %v1349
      %v1382 = vtanh.pop %v1350
      %v1383 = vtanh.pop %v1351
      %v1384 = vtanh.pop %v1352
      %v1385 = vtanh.pop %v1353
      %v1386 = vtanh.pop %v1354
      %v1387 = vtanh.pop %v1355
      %v1388 = vtanh.pop %v1356
      %v1389 = vtanh.pop %v1357
      %v1390 = vtanh.pop %v1358
      %v1391 = vtanh.pop %v1359
      %v1392 = vtanh.pop %v1360
      %v1393 = vtanh.pop %v1361
      %v1394 = vtanh.pop %v1362
      %v1395 = vtanh.pop %v1363
      %v1396 = vtanh.pop %v1364
      %v1397 = vtanh.pop %v1365
      %v1398 = vtanh.pop %v1366
      %v1399 = vtanh.pop %v1367
      %v1400 = vtanh.pop %v1368
      %v1401 = vtanh.pop %v1369
      %v1402 = vtanh.pop %v1370
      %v1403 = vtanh.pop %v1371
      %v1404 = vtanh.pop %v1372
      %v1405 = vtanh.pop %v1373
      %v1406 = vtanh.pop %v1374
      %v1407 = vtanh.pop %v1375
      %v1408 = vadd.f32 %v1376, 1.0
      %v1409 = vadd.f32 %v1377, 1.0
      %v1410 = vadd.f32 %v1378, 1.0
      %v1411 = vadd.f32 %v1379, 1.0
      %v1412 = vadd.f32 %v1380, 1.0
      %v1413 = vadd.f32 %v1381, 1.0
      %v1414 = vadd.f32 %v1382, 1.0
      %v1415 = vadd.f32 %v1383, 1.0
      %v1416 = vadd.f32 %v1384, 1.0
      %v1417 = vadd.f32 %v1385, 1.0
      %v1418 = vadd.f32 %v1386, 1.0
      %v1419 = vadd.f32 %v1387, 1.0
      %v1420 = vadd.f32 %v1388, 1.0
      %v1421 = vadd.f32 %v1389, 1.0
      %v1422 = vadd.f32 %v1390, 1.0
      %v1423 = vadd.f32 %v1391, 1.0
      %v1424 = vadd.f32 %v1392, 1.0
      %v1425 = vadd.f32 %v1393, 1.0
      %v1426 = vadd.f32 %v1394, 1.0
      %v1427 = vadd.f32 %v1395, 1.0
      %v1428 = vadd.f32 %v1396, 1.0
      %v1429 = vadd.f32 %v1397, 1.0
      %v1430 = vadd.f32 %v1398, 1.0
      %v1431 = vadd.f32 %v1399, 1.0
      %v1432 = vadd.f32 %v1400, 1.0
      %v1433 = vadd.f32 %v1401, 1.0
      %v1434 = vadd.f32 %v1402, 1.0
      %v1435 = vadd.f32 %v1403, 1.0
      %v1436 = vadd.f32 %v1404, 1.0
      %v1437 = vadd.f32 %v1405, 1.0
      %v1438 = vadd.f32 %v1406, 1.0
      %v1439 = vadd.f32 %v1407, 1.0
      %v1440 = vmul.f32 %v1184, %v1408
      %v1441 = vmul.f32 %v1185, %v1409
      %v1442 = vmul.f32 %v1186, %v1410
      %v1443 = vmul.f32 %v1187, %v1411
      %v1444 = vmul.f32 %v1188, %v1412
      %v1445 = vmul.f32 %v1189, %v1413
      %v1446 = vmul.f32 %v1190, %v1414
      %v1447 = vmul.f32 %v1191, %v1415
      %v1448 = vmul.f32 %v1192, %v1416
      %v1449 = vmul.f32 %v1193, %v1417
      %v1450 = vmul.f32 %v1194, %v1418
      %v1451 = vmul.f32 %v1195, %v1419
      %v1452 = vmul.f32 %v1196, %v1420
      %v1453 = vmul.f32 %v1197, %v1421
      %v1454 = vmul.f32 %v1198, %v1422
      %v1455 = vmul.f32 %v1199, %v1423
      %v1456 = vmul.f32 %v1200, %v1424
      %v1457 = vmul.f32 %v1201, %v1425
      %v1458 = vmul.f32 %v1202, %v1426
      %v1459 = vmul.f32 %v1203, %v1427
      %v1460 = vmul.f32 %v1204, %v1428
      %v1461 = vmul.f32 %v1205, %v1429
      %v1462 = vmul.f32 %v1206, %v1430
      %v1463 = vmul.f32 %v1207, %v1431
      %v1464 = vmul.f32 %v1208, %v1432
      %v1465 = vmul.f32 %v1209, %v1433
      %v1466 = vmul.f32 %v1210, %v1434
      %v1467 = vmul.f32 %v1211, %v1435
      %v1468 = vmul.f32 %v1212, %v1436
      %v1469 = vmul.f32 %v1213, %v1437
      %v1470 = vmul.f32 %v1214, %v1438
      %v1471 = vmul.f32 %v1215, %v1439
      %v1472 = vpack.c.bf16 %v1441, %v1440
      %v1473 = vpack.c.bf16 %v1443, %v1442
      %v1474 = vpack.c.bf16 %v1445, %v1444
      %v1475 = vpack.c.bf16 %v1447, %v1446
      %v1476 = vpack.c.bf16 %v1449, %v1448
      %v1477 = vpack.c.bf16 %v1451, %v1450
      %v1478 = vpack.c.bf16 %v1453, %v1452
      %v1479 = vpack.c.bf16 %v1455, %v1454
      %v1480 = vpack.c.bf16 %v1457, %v1456
      %v1481 = vpack.c.bf16 %v1459, %v1458
      %v1482 = vpack.c.bf16 %v1461, %v1460
      %v1483 = vpack.c.bf16 %v1463, %v1462
      %v1484 = vpack.c.bf16 %v1465, %v1464
      %v1485 = vpack.c.bf16 %v1467, %v1466
      %v1486 = vpack.c.bf16 %v1469, %v1468
      %v1487 = vpack.c.bf16 %v1471, %v1470
      %v1488 = vld [vmem:[%s6] sm:$0xf]
      %v1489 = vld [vmem:[%s6 + $0x4] sm:$0xf]
      %v1490 = vld [vmem:[%s6 + $0x8] sm:$0xf]
      %v1491 = vld [vmem:[%s6 + $0xc] sm:$0xf]
      %v1492 = vld [vmem:[%s6 + $0x10] sm:$0xf]
      %v1493 = vld [vmem:[%s6 + $0x14] sm:$0xf]
      %v1494 = vld [vmem:[%s6 + $0x18] sm:$0xf]
      %v1495 = vld [vmem:[%s6 + $0x1c] sm:$0xf]
      %v1496 = vld [vmem:[%s7] sm:$0x1]
      %v1498 = vlaneseq
      %v1499 = vshrl.u32 %v1498, 7
      %v1500 = vsub.s32 0, %v1499
      %v1501 = vrot.slane %v1496, %v1500
      %v1511 = vunpack.c.l.b16 %v1488
      %v1512 = vunpack.c.l.b16 %v1489
      %v1513 = vunpack.c.l.b16 %v1490
      %v1514 = vunpack.c.l.b16 %v1491
      %v1515 = vunpack.c.l.b16 %v1492
      %v1516 = vunpack.c.l.b16 %v1493
      %v1517 = vunpack.c.l.b16 %v1494
      %v1518 = vunpack.c.l.b16 %v1495
      %v1519 = vpack.c.b16 %v1512, %v1511
      %v1520 = vpack.c.b16 %v1514, %v1513
      %v1521 = vpack.c.b16 %v1516, %v1515
      %v1522 = vpack.c.b16 %v1518, %v1517
      %vm1527 = vcmask 523264
      %v1529 = vsel %vm1527, %v1472, 0
      %v1532 = vsel %vm1527, %v1473, 0
      %v1535 = vsel %vm1527, %v1474, 0
      %v1538 = vsel %vm1527, %v1475, 0
      %v1541 = vsel %vm1527, %v1476, 0
      %v1544 = vsel %vm1527, %v1477, 0
      %v1547 = vsel %vm1527, %v1478, 0
      %v1550 = vsel %vm1527, %v1479, 0
      %v1553 = vsel %vm1527, %v1480, 0
      %v1556 = vsel %vm1527, %v1481, 0
      %v1559 = vsel %vm1527, %v1482, 0
      %v1562 = vsel %vm1527, %v1483, 0
      %v1565 = vsel %vm1527, %v1484, 0
      %v1568 = vsel %vm1527, %v1485, 0
      %v1571 = vsel %vm1527, %v1486, 0
      %v1574 = vsel %vm1527, %v1487, 0
      %1576 = vmatprep.subr.bf16.mxu0 0
      %1577 = vmatpush1.bf16.msra.mxu0 %v1519
      %1578 = vmatprep.subr.bf16.mxu0 0
      %1579 = vmatpush1.bf16.msra.mxu0 %v1520
      %1580 = vmatprep.subr.bf16.mxu0 0
      %1581 = vmatpush1.bf16.msra.mxu0 %v1521
      %1582 = vmatprep.subr.bf16.mxu0 0
      %1583 = vmatpush1.bf16.msra.mxu0 %v1522
      %1584 = vmatprep.subr.bf16.mxu0 0
      %1585 = vmatpush1.bf16.msra.mxu0 0
      %1586 = vmatprep.subr.bf16.mxu0 0
      %1587 = vmatpush1.bf16.msra.mxu0 0
      %1588 = vmatprep.subr.bf16.mxu0 0
      %1589 = vmatpush1.bf16.msra.mxu0 0
      %1590 = vmatprep.subr.bf16.mxu0 0
      %1591 = vmatpush1.bf16.msra.mxu0 0
      %1592 = vmatprep.subr.bf16.mxu0 0
      %1593 = vmatpush1.bf16.msra.mxu0 0
      %1594 = vmatprep.subr.bf16.mxu0 0
      %1595 = vmatpush1.bf16.msra.mxu0 0
      %1596 = vmatprep.subr.bf16.mxu0 0
      %1597 = vmatpush1.bf16.msra.mxu0 0
      %1598 = vmatprep.subr.bf16.mxu0 0
      %1599 = vmatpush1.bf16.msra.mxu0 0
      %1600 = vmatprep.subr.bf16.mxu0 0
      %1601 = vmatpush1.bf16.msra.mxu0 0
      %1602 = vmatprep.subr.bf16.mxu0 0
      %1603 = vmatpush1.bf16.msra.mxu0 0
      %1604 = vmatprep.subr.bf16.mxu0 0
      %1605 = vmatpush1.bf16.msra.mxu0 0
      %1606 = vmatprep.subr.bf16.mxu0 0
      %1607 = vmatpush1.bf16.msra.mxu0 0
      %1608 = vmatprep.mubr.bf16.mxu0 0
      %1609 = vmatmul.mubr.bf16.gmra.mrb[0].mxu0 %v1529
      %v1610 = vpop.f32.mrb[0].mxu0
      %v1611 = vadd.f32 %v1501, %v1610
      %v1612 = vpop.f32.mrb[0].mxu0
      %v1613 = vpop.f32.mrb[0].mxu0
      %v1614 = vadd.f32 %v1501, %v1613
      %v1615 = vpop.f32.mrb[0].mxu0
      %1616 = vmatprep.mubr.bf16.mxu0 0
      %1617 = vmatmul.mubr.bf16.gmra.mrb[0].mxu0 %v1532
      %v1618 = vpop.f32.mrb[0].mxu0
      %v1619 = vadd.f32 %v1501, %v1618
      %v1620 = vpop.f32.mrb[0].mxu0
      %v1621 = vpop.f32.mrb[0].mxu0
      %v1622 = vadd.f32 %v1501, %v1621
      %v1623 = vpop.f32.mrb[0].mxu0
      %1624 = vmatprep.mubr.bf16.mxu0 0
      %1625 = vmatmul.mubr.bf16.gmra.mrb[0].mxu0 %v1535
      %v1626 = vpop.f32.mrb[0].mxu0
      %v1627 = vadd.f32 %v1501, %v1626
      %v1628 = vpop.f32.mrb[0].mxu0
      %v1629 = vpop.f32.mrb[0].mxu0
      %v1630 = vadd.f32 %v1501, %v1629
      %v1631 = vpop.f32.mrb[0].mxu0
      %1632 = vmatprep.mubr.bf16.mxu0 0
      %1633 = vmatmul.mubr.bf16.gmra.mrb[0].mxu0 %v1538
      %v1634 = vpop.f32.mrb[0].mxu0
      %v1635 = vadd.f32 %v1501, %v1634
      %v1636 = vpop.f32.mrb[0].mxu0
      %v1637 = vpop.f32.mrb[0].mxu0
      %v1638 = vadd.f32 %v1501, %v1637
      %v1639 = vpop.f32.mrb[0].mxu0
      %1640 = vmatprep.mubr.bf16.mxu0 0
      %1641 = vmatmul.mubr.bf16.gmra.mrb[0].mxu0 %v1541
      %v1642 = vpop.f32.mrb[0].mxu0
      %v1643 = vadd.f32 %v1501, %v1642
      %v1644 = vpop.f32.mrb[0].mxu0
      %v1645 = vpop.f32.mrb[0].mxu0
      %v1646 = vadd.f32 %v1501, %v1645
      %v1647 = vpop.f32.mrb[0].mxu0
      %1648 = vmatprep.mubr.bf16.mxu0 0
      %1649 = vmatmul.mubr.bf16.gmra.mrb[0].mxu0 %v1544
      %v1650 = vpop.f32.mrb[0].mxu0
      %v1651 = vadd.f32 %v1501, %v1650
      %v1652 = vpop.f32.mrb[0].mxu0
      %v1653 = vpop.f32.mrb[0].mxu0
      %v1654 = vadd.f32 %v1501, %v1653
      %v1655 = vpop.f32.mrb[0].mxu0
      %1656 = vmatprep.mubr.bf16.mxu0 0
      %1657 = vmatmul.mubr.bf16.gmra.mrb[0].mxu0 %v1547
      %v1658 = vpop.f32.mrb[0].mxu0
      %v1659 = vadd.f32 %v1501, %v1658
      %v1660 = vpop.f32.mrb[0].mxu0
      %v1661 = vpop.f32.mrb[0].mxu0
      %v1662 = vadd.f32 %v1501, %v1661
      %v1663 = vpop.f32.mrb[0].mxu0
      %1664 = vmatprep.mubr.bf16.mxu0 0
      %1665 = vmatmul.mubr.bf16.gmra.mrb[0].mxu0 %v1550
      %v1666 = vpop.f32.mrb[0].mxu0
      %v1667 = vadd.f32 %v1501, %v1666
      %v1668 = vpop.f32.mrb[0].mxu0
      %v1669 = vpop.f32.mrb[0].mxu0
      %v1670 = vadd.f32 %v1501, %v1669
      %v1671 = vpop.f32.mrb[0].mxu0
      %1672 = vmatprep.mubr.bf16.mxu0 0
      %1673 = vmatmul.mubr.bf16.gmra.mrb[0].mxu0 %v1553
      %v1674 = vpop.f32.mrb[0].mxu0
      %v1675 = vadd.f32 %v1501, %v1674
      %v1676 = vpop.f32.mrb[0].mxu0
      %v1677 = vpop.f32.mrb[0].mxu0
      %v1678 = vadd.f32 %v1501, %v1677
      %v1679 = vpop.f32.mrb[0].mxu0
      %1680 = vmatprep.mubr.bf16.mxu0 0
      %1681 = vmatmul.mubr.bf16.gmra.mrb[0].mxu0 %v1556
      %v1682 = vpop.f32.mrb[0].mxu0
      %v1683 = vadd.f32 %v1501, %v1682
      %v1684 = vpop.f32.mrb[0].mxu0
      %v1685 = vpop.f32.mrb[0].mxu0
      %v1686 = vadd.f32 %v1501, %v1685
      %v1687 = vpop.f32.mrb[0].mxu0
      %1688 = vmatprep.mubr.bf16.mxu0 0
      %1689 = vmatmul.mubr.bf16.gmra.mrb[0].mxu0 %v1559
      %v1690 = vpop.f32.mrb[0].mxu0
      %v1691 = vadd.f32 %v1501, %v1690
      %v1692 = vpop.f32.mrb[0].mxu0
      %v1693 = vpop.f32.mrb[0].mxu0
      %v1694 = vadd.f32 %v1501, %v1693
      %v1695 = vpop.f32.mrb[0].mxu0
      %1696 = vmatprep.mubr.bf16.mxu0 0
      %1697 = vmatmul.mubr.bf16.gmra.mrb[0].mxu0 %v1562
      %v1698 = vpop.f32.mrb[0].mxu0
      %v1699 = vadd.f32 %v1501, %v1698
      %v1700 = vpop.f32.mrb[0].mxu0
      %v1701 = vpop.f32.mrb[0].mxu0
      %v1702 = vadd.f32 %v1501, %v1701
      %v1703 = vpop.f32.mrb[0].mxu0
      %1704 = vmatprep.mubr.bf16.mxu0 0
      %1705 = vmatmul.mubr.bf16.gmra.mrb[0].mxu0 %v1565
      %v1706 = vpop.f32.mrb[0].mxu0
      %v1707 = vadd.f32 %v1501, %v1706
      %v1708 = vpop.f32.mrb[0].mxu0
      %v1709 = vpop.f32.mrb[0].mxu0
      %v1710 = vadd.f32 %v1501, %v1709
      %v1711 = vpop.f32.mrb[0].mxu0
      %1712 = vmatprep.mubr.bf16.mxu0 0
      %1713 = vmatmul.mubr.bf16.gmra.mrb[0].mxu0 %v1568
      %v1714 = vpop.f32.mrb[0].mxu0
      %v1715 = vadd.f32 %v1501, %v1714
      %v1716 = vpop.f32.mrb[0].mxu0
      %v1717 = vpop.f32.mrb[0].mxu0
      %v1718 = vadd.f32 %v1501, %v1717
      %v1719 = vpop.f32.mrb[0].mxu0
      %1720 = vmatprep.mubr.bf16.mxu0 0
      %1721 = vmatmul.mubr.bf16.gmra.mrb[0].mxu0 %v1571
      %v1722 = vpop.f32.mrb[0].mxu0
      %v1723 = vadd.f32 %v1501, %v1722
      %v1724 = vpop.f32.mrb[0].mxu0
      %v1725 = vpop.f32.mrb[0].mxu0
      %v1726 = vadd.f32 %v1501, %v1725
      %v1727 = vpop.f32.mrb[0].mxu0
      %1728 = vmatprep.mubr.bf16.mxu0 0
      %1729 = vmatmul.mubr.bf16.gmra.mrb[0].mxu0 %v1574
      %v1730 = vpop.f32.mrb[0].mxu0
      %v1731 = vadd.f32 %v1501, %v1730
      %v1732 = vpop.f32.mrb[0].mxu0
      %v1733 = vpop.f32.mrb[0].mxu0
      %v1734 = vadd.f32 %v1501, %v1733
      %v1735 = vpop.f32.mrb[0].mxu0
      %1736 = vdwg.mxu0
      %v1737 = vlaneseq
      %v1738 = vshrl.u32 %v1737, 7
      %v1739 = vadd.s32 %v1738, 8
      %v1740 = vadd.s32 %v1738, 16
      %v1741 = vadd.s32 %v1738, 24
      %s1742 = smul.u32 %s27, 32
      %v1743 = vstv %s1742
      %v1744 = vadd.s32 %v1738, %v1743
      %v1745 = vadd.s32 %v1739, %v1743
      %v1746 = vadd.s32 %v1740, %v1743
      %v1747 = vadd.s32 %v1741, %v1743
      %v1748 = vld [vmem:[%s450] sm:$0x3]
      %v1749 = vlaneseq
      %v1750 = vshrl.u32 %v1749, 7
      %v1751 = vsub.s32 0, %v1750
      %v1752 = vrot.slane %v1748, %v1751
      %v1753 = vlaneseq
      %v1754 = vshrl.u32 %v1753, 7
      %v1755 = vsub.s32 1, %v1754
      %v1756 = vrot.slane %v1748, %v1755
      %vm1757 = vcmp.eq.s32.totalorder %v1744, %v1752
      %vm1758 = vcmp.eq.s32.totalorder %v1744, %v1756
      %vm1759 = vcmp.eq.s32.totalorder %v1745, %v1752
      %vm1760 = vcmp.eq.s32.totalorder %v1745, %v1756
      %vm1761 = vcmp.eq.s32.totalorder %v1746, %v1752
      %vm1762 = vcmp.eq.s32.totalorder %v1746, %v1756
      %vm1763 = vcmp.eq.s32.totalorder %v1747, %v1752
      %vm1764 = vcmp.eq.s32.totalorder %v1747, %v1756
      %v1765 = vsel %vm1757, 1, 0
      %v1766 = vsel %vm1758, 1, 0
      %v1767 = vsel %vm1759, 1, 0
      %v1768 = vsel %vm1760, 1, 0
      %v1769 = vsel %vm1761, 1, 0
      %v1770 = vsel %vm1762, 1, 0
      %v1771 = vsel %vm1763, 1, 0
      %v1772 = vsel %vm1764, 1, 0
      %v1773 = vcvt.s32.f32 %v1765
      %v1774 = vcvt.s32.f32 %v1766
      %v1775 = vcvt.s32.f32 %v1767
      %v1776 = vcvt.s32.f32 %v1768
      %v1777 = vcvt.s32.f32 %v1769
      %v1778 = vcvt.s32.f32 %v1770
      %v1779 = vcvt.s32.f32 %v1771
      %v1780 = vcvt.s32.f32 %v1772
      %v1781 = vpack.c.bf16 %v1775, %v1773
      %v1782 = vpack.c.bf16 %v1776, %v1774
      %v1783 = vpack.c.bf16 %v1779, %v1777
      %v1784 = vpack.c.bf16 %v1780, %v1778
      %v1785 = vld [vmem:[#allocation2] sm:$0xff]
      %v1786 = vld [vmem:[#allocation2 + $0x8] sm:$0xff]
      %v1787 = vld [vmem:[#allocation2 + $0x10] sm:$0xff]
      %v1788 = vld [vmem:[#allocation2 + $0x18] sm:$0xff]
      %v1789 = vpack.c.bf16 %v1614, %v1611
      %v1790 = vpack.c.bf16 %v1622, %v1619
      %v1791 = vpack.c.bf16 %v1630, %v1627
      %v1792 = vpack.c.bf16 %v1638, %v1635
      %v1793 = vpack.c.bf16 %v1646, %v1643
      %v1794 = vpack.c.bf16 %v1654, %v1651
      %v1795 = vpack.c.bf16 %v1662, %v1659
      %v1796 = vpack.c.bf16 %v1670, %v1667
      %v1797 = vpack.c.bf16 %v1678, %v1675
      %v1798 = vpack.c.bf16 %v1686, %v1683
      %v1799 = vpack.c.bf16 %v1694, %v1691
      %v1800 = vpack.c.bf16 %v1702, %v1699
      %v1801 = vpack.c.bf16 %v1710, %v1707
      %v1802 = vpack.c.bf16 %v1718, %v1715
      %v1803 = vpack.c.bf16 %v1726, %v1723
      %v1804 = vpack.c.bf16 %v1734, %v1731
      %1805 = vmatprep.subr.bf16.mxu0 0
      %1806 = vmatpush1.bf16.msra.mxu0 %v1789
      %1807 = vmatprep.subr.bf16.mxu0 0
      %1808 = vmatpush1.bf16.msra.mxu0 %v1790
      %1809 = vmatprep.subr.bf16.mxu0 0
      %1810 = vmatpush1.bf16.msra.mxu0 %v1791
      %1811 = vmatprep.subr.bf16.mxu0 0
      %1812 = vmatpush1.bf16.msra.mxu0 %v1792
      %1813 = vmatprep.subr.bf16.mxu0 0
      %1814 = vmatpush1.bf16.msra.mxu0 %v1793
      %1815 = vmatprep.subr.bf16.mxu0 0
      %1816 = vmatpush1.bf16.msra.mxu0 %v1794
      %1817 = vmatprep.subr.bf16.mxu0 0
      %1818 = vmatpush1.bf16.msra.mxu0 %v1795
      %1819 = vmatprep.subr.bf16.mxu0 0
      %1820 = vmatpush1.bf16.msra.mxu0 %v1796
      %1821 = vmatprep.subr.bf16.mxu0 0
      %1822 = vmatpush1.bf16.msra.mxu0 %v1797
      %1823 = vmatprep.subr.bf16.mxu0 0
      %1824 = vmatpush1.bf16.msra.mxu0 %v1798
      %1825 = vmatprep.subr.bf16.mxu0 0
      %1826 = vmatpush1.bf16.msra.mxu0 %v1799
      %1827 = vmatprep.subr.bf16.mxu0 0
      %1828 = vmatpush1.bf16.msra.mxu0 %v1800
      %1829 = vmatprep.subr.bf16.mxu0 0
      %1830 = vmatpush1.bf16.msra.mxu0 %v1801
      %1831 = vmatprep.subr.bf16.mxu0 0
      %1832 = vmatpush1.bf16.msra.mxu0 %v1802
      %1833 = vmatprep.subr.bf16.mxu0 0
      %1834 = vmatpush1.bf16.msra.mxu0 %v1803
      %1835 = vmatprep.subr.bf16.mxu0 0
      %1836 = vmatpush1.bf16.msra.mxu0 %v1804
      %1837 = vmatprep.mubr.bf16.mxu0 %v1782
      %1838 = vmatmul.mubr.bf16.gmra.mrb[0].mxu0 %v1781
      %v1839 = vpop.f32.mrb[0].mxu0
      %v1840 = vadd.f32 0.0, %v1839
      %v1841 = vpop.f32.mrb[0].mxu0
      %v1842 = vpop.f32.mrb[0].mxu0
      %v1843 = vadd.f32 0.0, %v1842
      %v1844 = vpop.f32.mrb[0].mxu0
      %1845 = vmatprep.mubr.bf16.mxu0 %v1784
      %1846 = vmatmul.mubr.bf16.gmra.mrb[0].mxu0 %v1783
      %v1847 = vpop.f32.mrb[0].mxu0
      %v1848 = vadd.f32 0.0, %v1847
      %v1849 = vpop.f32.mrb[0].mxu0
      %v1850 = vpop.f32.mrb[0].mxu0
      %v1851 = vadd.f32 0.0, %v1850
      %v1852 = vpop.f32.mrb[0].mxu0
      %1853 = vdwg.mxu0
      %v1854 = vadd.f32 %v1785, %v1840
      %v1855 = vadd.f32 %v1786, %v1843
      %v1856 = vadd.f32 %v1787, %v1848
      %v1857 = vadd.f32 %v1788, %v1851
      %1858 = vst.msk [vmem:[#allocation2] sm:$0xff] %vm935, %v1854
      %1859 = vst.msk [vmem:[#allocation2 + $0x8] sm:$0xff] %vm935, %v1855
      %1860 = vst.msk [vmem:[#allocation2 + $0x10] sm:$0xff] %vm935, %v1856
      %1861 = vst.msk [vmem:[#allocation2 + $0x18] sm:$0xff] %vm935, %v1857
      %p1862 = scmp.eq.s32.totalorder %s28, 3
      // Predicated region
      $region73: #{pointgcn_forward.6} parent=67 // pred_check
        %p1863 = pneg %p1862
      $region74: #{pointgcn_forward.6} parent=67 // pred_check_branch
        %1865 = sbr.rel (%p1863) target = $region76
      $region75: #{pointgcn_forward.6} parent=67 // pred_region
        %v1866 = vld [vmem:[#allocation2] sm:$0xff]
        %v1867 = vld [vmem:[#allocation2 + $0x8] sm:$0xff]
        %v1868 = vld [vmem:[#allocation2 + $0x10] sm:$0xff]
        %v1869 = vld [vmem:[#allocation2 + $0x18] sm:$0xff]
        %v1870 = vpack.c.bf16 %v1867, %v1866
        %v1871 = vpack.c.bf16 %v1869, %v1868
        %v1872 = vld [vmem:[%s8] sm:$0xf]
        %v1873 = vld [vmem:[%s8 + $0x4] sm:$0xf]
        %v1874 = vld [vmem:[%s8 + $0x8] sm:$0xf]
        %v1875 = vld [vmem:[%s8 + $0xc] sm:$0xf]
        %v1876 = vld [vmem:[%s9] sm:$0x1]
        %v1878 = vlaneseq
        %v1879 = vshrl.u32 %v1878, 7
        %v1880 = vsub.s32 0, %v1879
        %v1881 = vrot.slane %v1876, %v1880
        %v1887 = vunpack.c.l.b16 %v1872
        %v1888 = vunpack.c.l.b16 %v1873
        %v1889 = vunpack.c.l.b16 %v1874
        %v1890 = vunpack.c.l.b16 %v1875
        %v1891 = vpack.c.b16 %v1888, %v1887
        %v1892 = vpack.c.b16 %v1890, %v1889
        %v1896 = vsel %vm935, %v1870, 0
        %v1899 = vsel %vm935, %v1871, 0
        %1901 = vmatprep.subr.bf16.mxu0 0
        %1902 = vmatpush1.bf16.msra.mxu0 %v1891
        %1903 = vmatprep.subr.bf16.mxu0 0
        %1904 = vmatpush1.bf16.msra.mxu0 %v1892
        %1905 = vmatprep.subr.bf16.mxu0 0
        %1906 = vmatpush1.bf16.msra.mxu0 0
        %1907 = vmatprep.subr.bf16.mxu0 0
        %1908 = vmatpush1.bf16.msra.mxu0 0
        %1909 = vmatprep.subr.bf16.mxu0 0
        %1910 = vmatpush1.bf16.msra.mxu0 0
        %1911 = vmatprep.subr.bf16.mxu0 0
        %1912 = vmatpush1.bf16.msra.mxu0 0
        %1913 = vmatprep.subr.bf16.mxu0 0
        %1914 = vmatpush1.bf16.msra.mxu0 0
        %1915 = vmatprep.subr.bf16.mxu0 0
        %1916 = vmatpush1.bf16.msra.mxu0 0
        %1917 = vmatprep.subr.bf16.mxu0 0
        %1918 = vmatpush1.bf16.msra.mxu0 0
        %1919 = vmatprep.subr.bf16.mxu0 0
        %1920 = vmatpush1.bf16.msra.mxu0 0
        %1921 = vmatprep.subr.bf16.mxu0 0
        %1922 = vmatpush1.bf16.msra.mxu0 0
        %1923 = vmatprep.subr.bf16.mxu0 0
        %1924 = vmatpush1.bf16.msra.mxu0 0
        %1925 = vmatprep.subr.bf16.mxu0 0
        %1926 = vmatpush1.bf16.msra.mxu0 0
        %1927 = vmatprep.subr.bf16.mxu0 0
        %1928 = vmatpush1.bf16.msra.mxu0 0
        %1929 = vmatprep.subr.bf16.mxu0 0
        %1930 = vmatpush1.bf16.msra.mxu0 0
        %1931 = vmatprep.subr.bf16.mxu0 0
        %1932 = vmatpush1.bf16.msra.mxu0 0
        %1933 = vmatprep.mubr.bf16.mxu0 0
        %1934 = vmatmul.mubr.bf16.gmra.mrb[0].mxu0 %v1896
        %v1935 = vpop.f32.mrb[0].mxu0
        %v1936 = vadd.f32 %v1881, %v1935
        %v1937 = vpop.f32.mrb[0].mxu0
        %v1938 = vpop.f32.mrb[0].mxu0
        %v1939 = vadd.f32 %v1881, %v1938
        %v1940 = vpop.f32.mrb[0].mxu0
        %1941 = vmatprep.mubr.bf16.mxu0 0
        %1942 = vmatmul.mubr.bf16.gmra.mrb[0].mxu0 %v1899
        %v1943 = vpop.f32.mrb[0].mxu0
        %v1944 = vadd.f32 %v1881, %v1943
        %v1945 = vpop.f32.mrb[0].mxu0
        %v1946 = vpop.f32.mrb[0].mxu0
        %v1947 = vadd.f32 %v1881, %v1946
        %v1948 = vpop.f32.mrb[0].mxu0
        %1949 = vdwg.mxu0
        %v1950 = vmul.f32 %v1936, 0.5
        %v1951 = vmul.f32 %v1939, 0.5
        %v1952 = vmul.f32 %v1944, 0.5
        %v1953 = vmul.f32 %v1947, 0.5
        %v1954 = vmul.f32 %v1936, 0.044715
        %v1955 = vmul.f32 %v1939, 0.044715
        %v1956 = vmul.f32 %v1944, 0.044715
        %v1957 = vmul.f32 %v1947, 0.044715
        %v1958 = vmul.f32 %v1954, %v1936
        %v1959 = vmul.f32 %v1955, %v1939
        %v1960 = vmul.f32 %v1956, %v1944
        %v1961 = vmul.f32 %v1957, %v1947
        %v1962 = vmul.f32 %v1958, %v1936
        %v1963 = vmul.f32 %v1959, %v1939
        %v1964 = vmul.f32 %v1960, %v1944
        %v1965 = vmul.f32 %v1961, %v1947
        %v1966 = vadd.f32 %v1936, %v1962
        %v1967 = vadd.f32 %v1939, %v1963
        %v1968 = vadd.f32 %v1944, %v1964
        %v1969 = vadd.f32 %v1947, %v1965
        %v1970 = vmul.f32 %v1966, 0.7978846
        %v1971 = vmul.f32 %v1967, 0.7978846
        %v1972 = vmul.f32 %v1968, 0.7978846
        %v1973 = vmul.f32 %v1969, 0.7978846
        %v1974 = vtanh.pop %v1970
        %v1975 = vtanh.pop %v1971
        %v1976 = vtanh.pop %v1972
        %v1977 = vtanh.pop %v1973
        %v1978 = vadd.f32 %v1974, 1.0
        %v1979 = vadd.f32 %v1975, 1.0
        %v1980 = vadd.f32 %v1976, 1.0
        %v1981 = vadd.f32 %v1977, 1.0
        %v1982 = vmul.f32 %v1950, %v1978
        %v1983 = vmul.f32 %v1951, %v1979
        %v1984 = vmul.f32 %v1952, %v1980
        %v1985 = vmul.f32 %v1953, %v1981
        %v1986 = vpack.c.bf16 %v1983, %v1982
        %v1987 = vpack.c.bf16 %v1985, %v1984
        %v1988 = vld [vmem:[%s10] sm:$0xf]
        %v1989 = vld [vmem:[%s10 + $0x4] sm:$0xf]
        %v1990 = vld [vmem:[%s10 + $0x8] sm:$0xf]
        %v1991 = vld [vmem:[%s10 + $0xc] sm:$0xf]
        %v1992 = vld [vmem:[%s10 + $0x10] sm:$0xf]
        %v1993 = vld [vmem:[%s10 + $0x14] sm:$0xf]
        %v1994 = vld [vmem:[%s10 + $0x18] sm:$0xf]
        %v1995 = vld [vmem:[%s10 + $0x1c] sm:$0xf]
        %v1996 = vld [vmem:[%s11] sm:$0x1]
        %v1998 = vlaneseq
        %v1999 = vshrl.u32 %v1998, 7
        %v2000 = vsub.s32 0, %v1999
        %v2001 = vrot.slane %v1996, %v2000
        %v2011 = vunpack.c.l.b16 %v1988
        %v2012 = vunpack.c.l.b16 %v1989
        %v2013 = vunpack.c.l.b16 %v1990
        %v2014 = vunpack.c.l.b16 %v1991
        %v2015 = vunpack.c.l.b16 %v1992
        %v2016 = vunpack.c.l.b16 %v1993
        %v2017 = vunpack.c.l.b16 %v1994
        %v2018 = vunpack.c.l.b16 %v1995
        %v2019 = vpack.c.b16 %v2012, %v2011
        %v2020 = vpack.c.b16 %v2014, %v2013
        %v2021 = vpack.c.b16 %v2016, %v2015
        %v2022 = vpack.c.b16 %v2018, %v2017
        %v2028 = vsel %vm1527, %v1986, 0
        %v2031 = vsel %vm1527, %v1987, 0
        %2033 = vmatprep.subr.bf16.mxu0 0
        %2034 = vmatpush1.bf16.msra.mxu0 %v2019
        %2035 = vmatprep.subr.bf16.mxu0 0
        %2036 = vmatpush1.bf16.msra.mxu0 %v2020
        %2037 = vmatprep.subr.bf16.mxu0 0
        %2038 = vmatpush1.bf16.msra.mxu0 %v2021
        %2039 = vmatprep.subr.bf16.mxu0 0
        %2040 = vmatpush1.bf16.msra.mxu0 %v2022
        %2041 = vmatprep.subr.bf16.mxu0 0
        %2042 = vmatpush1.bf16.msra.mxu0 0
        %2043 = vmatprep.subr.bf16.mxu0 0
        %2044 = vmatpush1.bf16.msra.mxu0 0
        %2045 = vmatprep.subr.bf16.mxu0 0
        %2046 = vmatpush1.bf16.msra.mxu0 0
        %2047 = vmatprep.subr.bf16.mxu0 0
        %2048 = vmatpush1.bf16.msra.mxu0 0
        %2049 = vmatprep.subr.bf16.mxu0 0
        %2050 = vmatpush1.bf16.msra.mxu0 0
        %2051 = vmatprep.subr.bf16.mxu0 0
        %2052 = vmatpush1.bf16.msra.mxu0 0
        %2053 = vmatprep.subr.bf16.mxu0 0
        %2054 = vmatpush1.bf16.msra.mxu0 0
        %2055 = vmatprep.subr.bf16.mxu0 0
        %2056 = vmatpush1.bf16.msra.mxu0 0
        %2057 = vmatprep.subr.bf16.mxu0 0
        %2058 = vmatpush1.bf16.msra.mxu0 0
        %2059 = vmatprep.subr.bf16.mxu0 0
        %2060 = vmatpush1.bf16.msra.mxu0 0
        %2061 = vmatprep.subr.bf16.mxu0 0
        %2062 = vmatpush1.bf16.msra.mxu0 0
        %2063 = vmatprep.subr.bf16.mxu0 0
        %2064 = vmatpush1.bf16.msra.mxu0 0
        %2065 = vmatprep.mubr.bf16.mxu0 0
        %2066 = vmatmul.mubr.bf16.gmra.mrb[0].mxu0 %v2028
        %v2067 = vpop.f32.mrb[0].mxu0
        %v2068 = vadd.f32 %v2001, %v2067
        %v2069 = vpop.f32.mrb[0].mxu0
        %v2070 = vpop.f32.mrb[0].mxu0
        %v2071 = vadd.f32 %v2001, %v2070
        %v2072 = vpop.f32.mrb[0].mxu0
        %2073 = vmatprep.mubr.bf16.mxu0 0
        %2074 = vmatmul.mubr.bf16.gmra.mrb[0].mxu0 %v2031
        %v2075 = vpop.f32.mrb[0].mxu0
        %v2076 = vadd.f32 %v2001, %v2075
        %v2077 = vpop.f32.mrb[0].mxu0
        %v2078 = vpop.f32.mrb[0].mxu0
        %v2079 = vadd.f32 %v2001, %v2078
        %v2080 = vpop.f32.mrb[0].mxu0
        %2081 = vdwg.mxu0
        %v2082 = vmul.f32 %v2068, 0.5
        %v2083 = vmul.f32 %v2071, 0.5
        %v2084 = vmul.f32 %v2076, 0.5
        %v2085 = vmul.f32 %v2079, 0.5
        %v2086 = vmul.f32 %v2068, 0.044715
        %v2087 = vmul.f32 %v2071, 0.044715
        %v2088 = vmul.f32 %v2076, 0.044715
        %v2089 = vmul.f32 %v2079, 0.044715
        %v2090 = vmul.f32 %v2086, %v2068
        %v2091 = vmul.f32 %v2087, %v2071
        %v2092 = vmul.f32 %v2088, %v2076
        %v2093 = vmul.f32 %v2089, %v2079
        %v2094 = vmul.f32 %v2090, %v2068
        %v2095 = vmul.f32 %v2091, %v2071
        %v2096 = vmul.f32 %v2092, %v2076
        %v2097 = vmul.f32 %v2093, %v2079
        %v2098 = vadd.f32 %v2068, %v2094
        %v2099 = vadd.f32 %v2071, %v2095
        %v2100 = vadd.f32 %v2076, %v2096
        %v2101 = vadd.f32 %v2079, %v2097
        %v2102 = vmul.f32 %v2098, 0.7978846
        %v2103 = vmul.f32 %v2099, 0.7978846
        %v2104 = vmul.f32 %v2100, 0.7978846
        %v2105 = vmul.f32 %v2101, 0.7978846
        %v2106 = vtanh.pop %v2102
        %v2107 = vtanh.pop %v2103
        %v2108 = vtanh.pop %v2104
        %v2109 = vtanh.pop %v2105
        %v2110 = vadd.f32 %v2106, 1.0
        %v2111 = vadd.f32 %v2107, 1.0
        %v2112 = vadd.f32 %v2108, 1.0
        %v2113 = vadd.f32 %v2109, 1.0
        %v2114 = vmul.f32 %v2082, %v2110
        %v2115 = vmul.f32 %v2083, %v2111
        %v2116 = vmul.f32 %v2084, %v2112
        %v2117 = vmul.f32 %v2085, %v2113
        %2118 = vst.msk [vmem:[%s468] sm:$0xff] %vm935, %v2114
        %2119 = vst.msk [vmem:[%s468 + $0x8] sm:$0xff] %vm935, %v2115
        %2120 = vst.msk [vmem:[%s468 + $0x10] sm:$0xff] %vm935, %v2116
        %2121 = vst.msk [vmem:[%s468 + $0x18] sm:$0xff] %vm935, %v2117
      $region76: #{pointgcn_forward.6} parent=67 // pred_fallthru
        _
      %s2122 = smul.u32 4, %s27
      %p2123 = scmp.lt.s32.totalorder %s2122, 7
      %s2124 = scalar_select %p2123, %s2122, 7
      %s2125 = smul.addr %s2124, 8
      %s2126 = scalar_lea.vmem %s12, %s2125
      // Predicated region
      $region77: #{pointgcn_forward.6} parent=67 // pred_check
        %p2127 = pneg %p320
      $region78: #{pointgcn_forward.6} parent=67 // pred_check_branch
        %2129 = sbr.rel (%p2127) target = $region80
      $region79: #{pointgcn_forward.6} parent=67 // pred_region
        %s2130 = smul.u32 4, %s27
      $region80: #{pointgcn_forward.6} parent=67 // pred_fallthru
        _
    $region68: #{pointgcn_forward.6} parent=5 // pred_fallthru
      _
    %p2131 = scmp.le.s32.totalorder 2, %s18
    // Predicated region
    $region81: #{pointgcn_forward.6} parent=5 // pred_check
      %p2132 = pneg %p2131
    $region82: #{pointgcn_forward.6} parent=5 // pred_check_branch
      %2134 = sbr.rel (%p2132) target = $region84
    $region83: #{pointgcn_forward.6} parent=5 // pred_region
      %s2135 = ssub.s32 %s18, 2
      // Predicated region
      $region85: #{pointgcn_forward.6} parent=83 // pred_check
        %p2136 = pneg %p326
      $region86: #{pointgcn_forward.6} parent=83 // pred_check_branch
        %2138 = sbr.rel (%p2136) target = $region88
      $region87: #{pointgcn_forward.6} parent=83 // pred_region
        %s2139 = smul.u32 4, %s29
        %p2140 = scmp.lt.s32.totalorder %s2139, 7
        %s2141 = scalar_select %p2140, %s2139, 7
        %s2142 = smul.addr %s2141, 8
        %s2143 = scalar_lea.vmem %s12, %s2142
      $region88: #{pointgcn_forward.6} parent=83 // pred_fallthru
        _
    $region84: #{pointgcn_forward.6} parent=5 // pred_fallthru
      _
  $region6: #{pointgcn_forward.6} parent=0 // loop_footer
    %s22 = sadd.s32 1, %s18
  $region7: #{pointgcn_forward.6} parent=0 // loop_footer_branch
    %17 = sbr.rel target = $region3
  $region8: #{pointgcn_forward.6} parent=0 // loop_exit
    _

</llo_original>
